<compile_context>
chip_gen: v5e
topology: v5e:2x2
jax: 0.10.0
libtpu: 0.0.40
codegen_flags: <defaults>
</compile_context>

<pallas_src>
import jax
import jax.numpy as jnp
from jax.experimental import pallas as pl
from jax.experimental.pallas import tpu as pltpu


# ------------------------------------------------------------------
# helpers
# ------------------------------------------------------------------
def _full_spec(a):
    nd = a.ndim
    return pl.BlockSpec(a.shape, lambda i: (0,) * nd)


def _block_diag(adj):
    """(G, N, N) per-graph adjacency -> (G*N, G*N) block-diagonal matrix."""
    G, n, _ = adj.shape
    eye = jnp.eye(G, dtype=adj.dtype)
    return jnp.einsum("gij,gh->gihj", adj, eye).reshape(G * n, G * n)


# ------------------------------------------------------------------
# Pallas kernel 1: fused residual GCN branch over the stacked batch
#   init = x @ W_fc1 + b_fc1
#   h    = relu(adj_bd @ (x @ W1) + b1)
#   out  = adj_bd @ (h @ W2) + b2 + init
# x is (4*B*N, F); adj_bd is block-diagonal so graphs never mix.
# ------------------------------------------------------------------
def _gcn_branch_kernel(x_ref, adj_ref, w1_ref, b1_ref, w2_ref, b2_ref,
                       wfc_ref, bfc_ref, out_ref):
    x = x_ref[...]            # (GN, F)
    adj = adj_ref[...]        # (GN, GN)
    init = jnp.dot(x, wfc_ref[...], preferred_element_type=jnp.float32) + bfc_ref[...]
    h = jnp.dot(x, w1_ref[...], preferred_element_type=jnp.float32)
    h = jnp.dot(adj, h, preferred_element_type=jnp.float32) + b1_ref[...]
    h = jnp.maximum(h, 0.0)
    o = jnp.dot(h, w2_ref[...], preferred_element_type=jnp.float32)
    o = jnp.dot(adj, o, preferred_element_type=jnp.float32) + b2_ref[...]
    out_ref[...] = (o + init).astype(out_ref.dtype)


def gcn_branch(x_flat, adj_bd, w1, b1, w2, b2, wfc, bfc):
    GN = x_flat.shape[0]
    C = w2.shape[1]
    args = (x_flat, adj_bd, w1, b1, w2, b2, wfc, bfc)
    return pl.pallas_call(
        _gcn_branch_kernel,
        out_shape=jax.ShapeDtypeStruct((GN, C), jnp.float32),
        grid=(1,),
        in_specs=[_full_spec(a) for a in args],
        out_specs=pl.BlockSpec((GN, C), lambda i: (0, 0)),
        compiler_params=pltpu.CompilerParams(dimension_semantics=("arbitrary",)),
    )(*args)


# ------------------------------------------------------------------
# Pallas kernel 2: fused Set2Set readout (both branches) + MLP head
#   pool_sol, pool_slv : Set2Set(nclass, steps=2, layers=1) over N nodes
#   feat = [pool_sol | after_solute | pool_slv | after_solvent]   (4B, 8*nclass)
#   out  = fc5(relu(fc4(relu(fc3(relu(fc2(feat)))))))             (4B, 1)
# ------------------------------------------------------------------
def _set2set_head_kernel(xs_ref, xv_ref, asol_ref, aslv_ref,
                         wih_ref, whh_ref, bl_ref,
                         w2_ref, b2_ref, w3_ref, b3_ref,
                         w4_ref, b4_ref, w5_ref, b5_ref, out_ref):
    G = xs_ref.shape[0]          # 4 * batch_size graphs per branch
    C = xs_ref.shape[2]          # nclass
    wih = wih_ref[...]           # (2C, 4C)
    whh = whh_ref[...]           # (C, 4C)
    bl = bl_ref[...]             # (1, 4C)  == b_ih + b_hh

    def set2set_pool(x):         # x: (G, N, C) -> (G, 2C)
        q_star = jnp.zeros((G, 2 * C), jnp.float32)
        h = jnp.zeros((G, C), jnp.float32)
        c = jnp.zeros((G, C), jnp.float32)
        for _ in range(2):       # processing_steps = 2, unrolled
            gates = (jnp.dot(q_star, wih, preferred_element_type=jnp.float32)
                     + jnp.dot(h, whh, preferred_element_type=jnp.float32) + bl)
            i = jax.nn.sigmoid(gates[:, 0 * C:1 * C])
            f = jax.nn.sigmoid(gates[:, 1 * C:2 * C])
            g = jnp.tanh(gates[:, 2 * C:3 * C])
            o = jax.nn.sigmoid(gates[:, 3 * C:4 * C])
            c = f * c + i * g
            h = o * jnp.tanh(c)
            q3 = h.reshape(G, 1, C)
            e = jnp.einsum("gqc,gnc->gqn", q3, x,
                           preferred_element_type=jnp.float32)        # (G,1,N)
            e = e - jnp.max(e, axis=-1, keepdims=True)
            p = jnp.exp(e)
            p = p / jnp.sum(p, axis=-1, keepdims=True)
            r = jnp.einsum("gqn,gnc->gqc", p, x,
                           preferred_element_type=jnp.float32)        # (G,1,C)
            q_star = jnp.concatenate([h, r.reshape(G, C)], axis=-1)   # (G, 2C)
        return q_star

    pool_sol = set2set_pool(xs_ref[...])
    pool_slv = set2set_pool(xv_ref[...])
    # lane-dense concatenated feature: (G, 8*nclass) == (4B, 128) for nclass=16
    feat = jnp.concatenate([pool_sol, asol_ref[...], pool_slv, aslv_ref[...]],
                           axis=-1)
    h = jnp.maximum(jnp.dot(feat, w2_ref[...],
                            preferred_element_type=jnp.float32) + b2_ref[...], 0.0)
    h = jnp.maximum(jnp.dot(h, w3_ref[...],
                            preferred_element_type=jnp.float32) + b3_ref[...], 0.0)
    h = jnp.maximum(jnp.dot(h, w4_ref[...],
                            preferred_element_type=jnp.float32) + b4_ref[...], 0.0)
    out = jnp.dot(h, w5_ref[...], preferred_element_type=jnp.float32) + b5_ref[...]
    out_ref[...] = out.astype(out_ref.dtype)


def set2set_head(x_sol, x_slv, after_sol, after_slv,
                 wih, whh, bl, w2, b2, w3, b3, w4, b4, w5, b5):
    G = x_sol.shape[0]
    args = (x_sol, x_slv, after_sol, after_slv, wih, whh, bl,
            w2, b2, w3, b3, w4, b4, w5, b5)
    return pl.pallas_call(
        _set2set_head_kernel,
        out_shape=jax.ShapeDtypeStruct((G, 1), jnp.float32),
        grid=(1,),
        in_specs=[_full_spec(a) for a in args],
        out_specs=pl.BlockSpec((G, 1), lambda i: (0, 0)),
        compiler_params=pltpu.CompilerParams(dimension_semantics=("arbitrary",)),
    )(*args)


# ------------------------------------------------------------------
# Plain-JAX glue: embedding + single-step bidirectional GRU (tiny)
# ------------------------------------------------------------------
def _gru_one_dir(x, p):
    # PyTorch GRU gate order: r, z, n.  seq_len == 1, h0 == 0.
    H = p["w_hh"].shape[1]
    gi = x @ p["w_ih"].T + p["b_ih"]           # (L, 3H)
    gh = p["b_hh"]                              # (3H,)  (W_hh @ h0 == 0)
    r = jax.nn.sigmoid(gi[:, :H] + gh[:H])
    z = jax.nn.sigmoid(gi[:, H:2 * H] + gh[H:2 * H])
    n = jnp.tanh(gi[:, 2 * H:] + r * gh[2 * H:])
    return (1.0 - z) * n                        # (L, H)


def rnn_feature(emb_table, gru_params, smile_ids, batch_size):
    # mirrors MyNewGCN.rnn(): unsqueeze(0) -> GRU -> relu -> mean over tokens
    xs = jnp.take(emb_table, smile_ids, axis=0)                        # (L, 100)
    y = jnp.concatenate([_gru_one_dir(xs, gru_params["fwd"]),
                         _gru_one_dir(xs, gru_params["bwd"])], axis=1)  # (L, 2C)
    y = jax.nn.relu(y)
    mean = jnp.mean(y, axis=0, keepdims=True)                           # (1, 2C)
    return jnp.tile(mean, (batch_size, 1))                              # (B, 2C)


# ------------------------------------------------------------------
# Full forward
# ------------------------------------------------------------------
def my_new_gcn_forward(params, batch_size,
                       solute_ACE, solvent_ACE, solute_adj, solvent_adj_ACE,
                       solute_NMF, solvent_NMF, solvent_adj_NMF,
                       solute_wat, solvent_wat, solvent_adj_wat,
                       solute_DMF, solvent_DMF, solvent_adj_DMF, smiles):
    B = batch_size
    rnn_f = lambda ids: rnn_feature(params["embed"], params["gru"], ids, B)
    after_solute = rnn_f(smiles[0])
    after_ACE = rnn_f(smiles[1])
    after_NMF = rnn_f(smiles[2])
    after_wat = rnn_f(smiles[3])
    after_DMF = rnn_f(smiles[4])

    fc1 = params["fc1"]
    sp, vp = params["solute_gcn"], params["solvent_gcn"]
    C = fc1["w"].shape[1]
    Ns, Fdim = solute_ACE.shape[1], solute_ACE.shape[2]
    Nv = solvent_ACE.shape[1]

    # Stack the 4 systems along the batch axis and fold everything into rows.
    x_sol = jnp.concatenate([solute_ACE, solute_NMF, solute_wat, solute_DMF],
                            axis=0).reshape(4 * B * Ns, Fdim)
    x_slv = jnp.concatenate([solvent_ACE, solvent_NMF, solvent_wat, solvent_DMF],
                            axis=0).reshape(4 * B * Nv, Fdim)
    adj_sol_bd = _block_diag(jnp.tile(solute_adj, (4, 1, 1)))
    adj_slv_bd = _block_diag(jnp.concatenate(
        [solvent_adj_ACE, solvent_adj_NMF, solvent_adj_wat, solvent_adj_DMF],
        axis=0))

    sol = gcn_branch(x_sol, adj_sol_bd, sp["w1"], sp["b1"], sp["w2"], sp["b2"],
                     fc1["w"], fc1["b"]).reshape(4 * B, Ns, C)
    slv = gcn_branch(x_slv, adj_slv_bd, vp["w1"], vp["b1"], vp["w2"], vp["b2"],
                     fc1["w"], fc1["b"]).reshape(4 * B, Nv, C)

    after_sol_stack = jnp.tile(after_solute, (4, 1))                    # (4B, 2C)
    after_slv_stack = jnp.concatenate([after_ACE, after_NMF,
                                       after_wat, after_DMF], axis=0)   # (4B, 2C)

    s2s, hp = params["set2set"], params["head"]
    out = set2set_head(sol, slv, after_sol_stack, after_slv_stack,
                       s2s["w_ih"], s2s["w_hh"], s2s["b_ih"] + s2s["b_hh"],
                       hp["w2"], hp["b2"], hp["w3"], hp["b3"],
                       hp["w4"], hp["b4"], hp["w5"], hp["b5"])          # (4B, 1)
    return out


# ------------------------------------------------------------------
# Deterministic parameter init
# ------------------------------------------------------------------
def init_params(key, nfeat, nhid, nclass):
    keys = iter(jax.random.split(key, 40))

    def w(shape, scale=0.1):
        return scale * jax.random.normal(next(keys), shape, jnp.float32)

    return {
        "embed": w((100, 100)),                 # vocab=100, dim=100 (GRU input_size)
        "gru": {
            "fwd": {"w_ih": w((3 * nclass, 100)), "w_hh": w((3 * nclass, nclass)),
                    "b_ih": w((3 * nclass,)), "b_hh": w((3 * nclass,))},
            "bwd": {"w_ih": w((3 * nclass, 100)), "w_hh": w((3 * nclass, nclass)),
                    "b_ih": w((3 * nclass,)), "b_hh": w((3 * nclass,))},
        },
        "solute_gcn": {"w1": w((nfeat, nhid)), "b1": w((1, nhid)),
                       "w2": w((nhid, nclass)), "b2": w((1, nclass))},
        "solvent_gcn": {"w1": w((nfeat, nhid)), "b1": w((1, nhid)),
                        "w2": w((nhid, nclass)), "b2": w((1, nclass))},
        "fc1": {"w": w((nfeat, nclass)), "b": w((1, nclass))},
        # Set2Set LSTMCell weights stored as (in, out) so the kernel does x @ W;
        # gate order i, f, g, o as in torch.nn.LSTM.
        "set2set": {"w_ih": w((2 * nclass, 4 * nclass)),
                    "w_hh": w((nclass, 4 * nclass)),
                    "b_ih": w((1, 4 * nclass)), "b_hh": w((1, 4 * nclass))},
        "head": {"w2": w((8 * nclass, nclass)), "b2": w((1, nclass)),
                 "w3": w((nclass, 64)), "b3": w((1, 64)),
                 "w4": w((64, 32)), "b4": w((1, 32)),
                 "w5": w((32, 1)), "b5": w((1, 1))},
    }


# ------------------------------------------------------------------
if __name__ == "__main__":
    B = 2                 # batch_size
    nfeat, nhid, nclass = 32, 32, 16
    N_solute, N_solvent, L = 8, 8, 12

    key = jax.random.PRNGKey(0)
    pkey, dkey = jax.random.split(key)
    params = init_params(pkey, nfeat, nhid, nclass)

    dks = jax.random.split(dkey, 16)

    def feats(k, n):
        return 0.5 * jax.random.normal(k, (B, n, nfeat), jnp.float32)

    def norm_adj(k, n):
        a = jnp.abs(jax.random.normal(k, (B, n, n), jnp.float32))
        a = a + jnp.transpose(a, (0, 2, 1)) + jnp.eye(n, dtype=jnp.float32)
        return a / jnp.sum(a, axis=-1, keepdims=True)

    solute_ACE = feats(dks[0], N_solute)
    solute_NMF = feats(dks[1], N_solute)
    solute_wat = feats(dks[2], N_solute)
    solute_DMF = feats(dks[3], N_solute)
    solvent_ACE = feats(dks[4], N_solvent)
    solvent_NMF = feats(dks[5], N_solvent)
    solvent_wat = feats(dks[6], N_solvent)
    solvent_DMF = feats(dks[7], N_solvent)
    solute_adj = norm_adj(dks[8], N_solute)
    solvent_adj_ACE = norm_adj(dks[9], N_solvent)
    solvent_adj_NMF = norm_adj(dks[10], N_solvent)
    solvent_adj_wat = norm_adj(dks[11], N_solvent)
    solvent_adj_DMF = norm_adj(dks[12], N_solvent)
    smiles = jax.random.randint(dks[13], (5, L), 0, 100, jnp.int32)

    fwd = jax.jit(my_new_gcn_forward, static_argnums=(1,))
    out = fwd(params, B,
              solute_ACE, solvent_ACE, solute_adj, solvent_adj_ACE,
              solute_NMF, solvent_NMF, solvent_adj_NMF,
              solute_wat, solvent_wat, solvent_adj_wat,
              solute_DMF, solvent_DMF, solvent_adj_DMF, smiles)
    out = jax.block_until_ready(out)

    assert out.shape == (4 * B, 1), out.shape
    assert bool(jnp.all(jnp.isfinite(out)))
    print("KERNEL_OK")
</pallas_src>

<mosaic_0001>
module attributes {stable_mosaic.version = 11 : i64} {
  func.func @_gcn_branch_kernel(%arg0: i32, %arg1: memref<64x32xf32, #tpu.memory_space<vmem>>, %arg2: memref<64x64xf32, #tpu.memory_space<vmem>>, %arg3: memref<32x32xf32, #tpu.memory_space<vmem>>, %arg4: memref<1x32xf32, #tpu.memory_space<vmem>>, %arg5: memref<32x16xf32, #tpu.memory_space<vmem>>, %arg6: memref<1x16xf32, #tpu.memory_space<vmem>>, %arg7: memref<32x16xf32, #tpu.memory_space<vmem>>, %arg8: memref<1x16xf32, #tpu.memory_space<vmem>>, %arg9: memref<64x16xf32, #tpu.memory_space<vmem>>) attributes {dimension_semantics = [#tpu.dimension_semantics<arbitrary>], iteration_bounds = array<i64: 1>, scalar_prefetch = 0 : i64, scratch_operands = 0 : i64, tpu.core_type = #tpu.core_type<tc>, window_params = [{pipeline_mode = #tpu.pipeline_mode<synchronous>, transform_indices = @transform_0, window_bounds = array<i64: 64, 32>}, {pipeline_mode = #tpu.pipeline_mode<synchronous>, transform_indices = @transform_1, window_bounds = array<i64: 64, 64>}, {pipeline_mode = #tpu.pipeline_mode<synchronous>, transform_indices = @transform_2, window_bounds = array<i64: 32, 32>}, {pipeline_mode = #tpu.pipeline_mode<synchronous>, transform_indices = @transform_3, window_bounds = array<i64: 1, 32>}, {pipeline_mode = #tpu.pipeline_mode<synchronous>, transform_indices = @transform_4, window_bounds = array<i64: 32, 16>}, {pipeline_mode = #tpu.pipeline_mode<synchronous>, transform_indices = @transform_5, window_bounds = array<i64: 1, 16>}, {pipeline_mode = #tpu.pipeline_mode<synchronous>, transform_indices = @transform_6, window_bounds = array<i64: 32, 16>}, {pipeline_mode = #tpu.pipeline_mode<synchronous>, transform_indices = @transform_7, window_bounds = array<i64: 1, 16>}, {pipeline_mode = #tpu.pipeline_mode<synchronous>, transform_indices = @transform_8, window_bounds = array<i64: 64, 16>}]} {
    %c0 = arith.constant 0 : index
    %c0_0 = arith.constant 0 : index
    %0 = vector.load %arg1[%c0, %c0_0] : memref<64x32xf32, #tpu.memory_space<vmem>>, vector<64x32xf32>
    %c0_1 = arith.constant 0 : index
    %c0_2 = arith.constant 0 : index
    %1 = vector.load %arg2[%c0_1, %c0_2] : memref<64x64xf32, #tpu.memory_space<vmem>>, vector<64x64xf32>
    %c0_3 = arith.constant 0 : index
    %c0_4 = arith.constant 0 : index
    %2 = vector.load %arg7[%c0_3, %c0_4] : memref<32x16xf32, #tpu.memory_space<vmem>>, vector<32x16xf32>
    %cst = arith.constant dense<0.000000e+00> : vector<64x16xf32>
    %3 = tpu.matmul %0, %2, %cst {dimension_numbers = #tpu.dot_dimension_numbers<[1], [0], [0], [1], [0, 0, 1, 1], [], []>} : vector<64x32xf32>, vector<32x16xf32>, vector<64x16xf32> -> vector<64x16xf32>
    %c0_5 = arith.constant 0 : index
    %c0_6 = arith.constant 0 : index
    %4 = vector.load %arg8[%c0_5, %c0_6] : memref<1x16xf32, #tpu.memory_space<vmem>>, vector<1x16xf32>
    %5 = vector.broadcast %4 : vector<1x16xf32> to vector<64x16xf32>
    %6 = arith.addf %3, %5 : vector<64x16xf32>
    %c0_7 = arith.constant 0 : index
    %c0_8 = arith.constant 0 : index
    %7 = vector.load %arg3[%c0_7, %c0_8] : memref<32x32xf32, #tpu.memory_space<vmem>>, vector<32x32xf32>
    %cst_9 = arith.constant dense<0.000000e+00> : vector<64x32xf32>
    %8 = tpu.matmul %0, %7, %cst_9 {dimension_numbers = #tpu.dot_dimension_numbers<[1], [0], [0], [1], [0, 0, 1, 1], [], []>} : vector<64x32xf32>, vector<32x32xf32>, vector<64x32xf32> -> vector<64x32xf32>
    %cst_10 = arith.constant dense<0.000000e+00> : vector<64x32xf32>
    %9 = tpu.matmul %1, %8, %cst_10 {dimension_numbers = #tpu.dot_dimension_numbers<[1], [0], [0], [1], [0, 0, 1, 1], [], []>} : vector<64x64xf32>, vector<64x32xf32>, vector<64x32xf32> -> vector<64x32xf32>
    %c0_11 = arith.constant 0 : index
    %c0_12 = arith.constant 0 : index
    %10 = vector.load %arg4[%c0_11, %c0_12] : memref<1x32xf32, #tpu.memory_space<vmem>>, vector<1x32xf32>
    %11 = vector.broadcast %10 : vector<1x32xf32> to vector<64x32xf32>
    %12 = arith.addf %9, %11 : vector<64x32xf32>
    %cst_13 = arith.constant 0.000000e+00 : f32
    %13 = vector.broadcast %cst_13 : f32 to vector<64x32xf32>
    %14 = arith.maximumf %12, %13 : vector<64x32xf32>
    %c0_14 = arith.constant 0 : index
    %c0_15 = arith.constant 0 : index
    %15 = vector.load %arg5[%c0_14, %c0_15] : memref<32x16xf32, #tpu.memory_space<vmem>>, vector<32x16xf32>
    %cst_16 = arith.constant dense<0.000000e+00> : vector<64x16xf32>
    %16 = tpu.matmul %14, %15, %cst_16 {dimension_numbers = #tpu.dot_dimension_numbers<[1], [0], [0], [1], [0, 0, 1, 1], [], []>} : vector<64x32xf32>, vector<32x16xf32>, vector<64x16xf32> -> vector<64x16xf32>
    %cst_17 = arith.constant dense<0.000000e+00> : vector<64x16xf32>
    %17 = tpu.matmul %1, %16, %cst_17 {dimension_numbers = #tpu.dot_dimension_numbers<[1], [0], [0], [1], [0, 0, 1, 1], [], []>} : vector<64x64xf32>, vector<64x16xf32>, vector<64x16xf32> -> vector<64x16xf32>
    %c0_18 = arith.constant 0 : index
    %c0_19 = arith.constant 0 : index
    %18 = vector.load %arg6[%c0_18, %c0_19] : memref<1x16xf32, #tpu.memory_space<vmem>>, vector<1x16xf32>
    %19 = vector.broadcast %18 : vector<1x16xf32> to vector<64x16xf32>
    %20 = arith.addf %17, %19 : vector<64x16xf32>
    %21 = arith.addf %20, %6 : vector<64x16xf32>
    %c0_20 = arith.constant 0 : index
    %c0_21 = arith.constant 0 : index
    %22 = vector.load %arg9[%c0_20, %c0_21] : memref<64x16xf32, #tpu.memory_space<vmem>>, vector<64x16xf32>
    tpu.vector_store %arg9[%c0_20, %c0_21], %21 {strides = array<i32>} : memref<64x16xf32, #tpu.memory_space<vmem>>, vector<64x16xf32>,
    return
  }
  func.func @transform_0(%arg0: i32) -> (i32, i32) {
    %c0_i32 = arith.constant 0 : i32
    %c0_i32_0 = arith.constant 0 : i32
    %c0_i32_1 = arith.constant 0 : i32
    return %c0_i32, %c0_i32_0 : i32, i32
  }
  func.func @transform_1(%arg0: i32) -> (i32, i32) {
    %c0_i32 = arith.constant 0 : i32
    %c0_i32_0 = arith.constant 0 : i32
    %c0_i32_1 = arith.constant 0 : i32
    return %c0_i32, %c0_i32_0 : i32, i32
  }
  func.func @transform_2(%arg0: i32) -> (i32, i32) {
    %c0_i32 = arith.constant 0 : i32
    %c0_i32_0 = arith.constant 0 : i32
    %c0_i32_1 = arith.constant 0 : i32
    return %c0_i32, %c0_i32_0 : i32, i32
  }
  func.func @transform_3(%arg0: i32) -> (i32, i32) {
    %c0_i32 = arith.constant 0 : i32
    %c0_i32_0 = arith.constant 0 : i32
    %c0_i32_1 = arith.constant 0 : i32
    return %c0_i32, %c0_i32_0 : i32, i32
  }
  func.func @transform_4(%arg0: i32) -> (i32, i32) {
    %c0_i32 = arith.constant 0 : i32
    %c0_i32_0 = arith.constant 0 : i32
    %c0_i32_1 = arith.constant 0 : i32
    return %c0_i32, %c0_i32_0 : i32, i32
  }
  func.func @transform_5(%arg0: i32) -> (i32, i32) {
    %c0_i32 = arith.constant 0 : i32
    %c0_i32_0 = arith.constant 0 : i32
    %c0_i32_1 = arith.constant 0 : i32
    return %c0_i32, %c0_i32_0 : i32, i32
  }
  func.func @transform_6(%arg0: i32) -> (i32, i32) {
    %c0_i32 = arith.constant 0 : i32
    %c0_i32_0 = arith.constant 0 : i32
    %c0_i32_1 = arith.constant 0 : i32
    return %c0_i32, %c0_i32_0 : i32, i32
  }
  func.func @transform_7(%arg0: i32) -> (i32, i32) {
    %c0_i32 = arith.constant 0 : i32
    %c0_i32_0 = arith.constant 0 : i32
    %c0_i32_1 = arith.constant 0 : i32
    return %c0_i32, %c0_i32_0 : i32, i32
  }
  func.func @transform_8(%arg0: i32) -> (i32, i32) {
    %c0_i32 = arith.constant 0 : i32
    %c0_i32_0 = arith.constant 0 : i32
    %c0_i32_1 = arith.constant 0 : i32
    return %c0_i32, %c0_i32_0 : i32, i32
  }
}

module attributes {stable_mosaic.version = 11 : i64} {
  func.func @_set2set_head_kernel(%arg0: i32, %arg1: memref<8x8x16xf32, #tpu.memory_space<vmem>>, %arg2: memref<8x8x16xf32, #tpu.memory_space<vmem>>, %arg3: memref<8x32xf32, #tpu.memory_space<vmem>>, %arg4: memref<8x32xf32, #tpu.memory_space<vmem>>, %arg5: memref<32x64xf32, #tpu.memory_space<vmem>>, %arg6: memref<16x64xf32, #tpu.memory_space<vmem>>, %arg7: memref<1x64xf32, #tpu.memory_space<vmem>>, %arg8: memref<128x16xf32, #tpu.memory_space<vmem>>, %arg9: memref<1x16xf32, #tpu.memory_space<vmem>>, %arg10: memref<16x64xf32, #tpu.memory_space<vmem>>, %arg11: memref<1x64xf32, #tpu.memory_space<vmem>>, %arg12: memref<64x32xf32, #tpu.memory_space<vmem>>, %arg13: memref<1x32xf32, #tpu.memory_space<vmem>>, %arg14: memref<32x1xf32, #tpu.memory_space<vmem>>, %arg15: memref<1x1xf32, #tpu.memory_space<vmem>>, %arg16: memref<8x1xf32, #tpu.memory_space<vmem>>) attributes {dimension_semantics = [#tpu.dimension_semantics<arbitrary>], iteration_bounds = array<i64: 1>, scalar_prefetch = 0 : i64, scratch_operands = 0 : i64, tpu.core_type = #tpu.core_type<tc>, window_params = [{pipeline_mode = #tpu.pipeline_mode<synchronous>, transform_indices = @transform_0, window_bounds = array<i64: 8, 8, 16>}, {pipeline_mode = #tpu.pipeline_mode<synchronous>, transform_indices = @transform_1, window_bounds = array<i64: 8, 8, 16>}, {pipeline_mode = #tpu.pipeline_mode<synchronous>, transform_indices = @transform_2, window_bounds = array<i64: 8, 32>}, {pipeline_mode = #tpu.pipeline_mode<synchronous>, transform_indices = @transform_3, window_bounds = array<i64: 8, 32>}, {pipeline_mode = #tpu.pipeline_mode<synchronous>, transform_indices = @transform_4, window_bounds = array<i64: 32, 64>}, {pipeline_mode = #tpu.pipeline_mode<synchronous>, transform_indices = @transform_5, window_bounds = array<i64: 16, 64>}, {pipeline_mode = #tpu.pipeline_mode<synchronous>, transform_indices = @transform_6, window_bounds = array<i64: 1, 64>}, {pipeline_mode = #tpu.pipeline_mode<synchronous>, transform_indices = @transform_7, window_bounds = array<i64: 128, 16>}, {pipeline_mode = #tpu.pipeline_mode<synchronous>, transform_indices = @transform_8, window_bounds = array<i64: 1, 16>}, {pipeline_mode = #tpu.pipeline_mode<synchronous>, transform_indices = @transform_9, window_bounds = array<i64: 16, 64>}, {pipeline_mode = #tpu.pipeline_mode<synchronous>, transform_indices = @transform_10, window_bounds = array<i64: 1, 64>}, {pipeline_mode = #tpu.pipeline_mode<synchronous>, transform_indices = @transform_11, window_bounds = array<i64: 64, 32>}, {pipeline_mode = #tpu.pipeline_mode<synchronous>, transform_indices = @transform_12, window_bounds = array<i64: 1, 32>}, {pipeline_mode = #tpu.pipeline_mode<synchronous>, transform_indices = @transform_13, window_bounds = array<i64: 32, 1>}, {pipeline_mode = #tpu.pipeline_mode<synchronous>, transform_indices = @transform_14, window_bounds = array<i64: 1, 1>}, {pipeline_mode = #tpu.pipeline_mode<synchronous>, transform_indices = @transform_15, window_bounds = array<i64: 8, 1>}]} {
    %c0 = arith.constant 0 : index
    %c0_0 = arith.constant 0 : index
    %0 = vector.load %arg5[%c0, %c0_0] : memref<32x64xf32, #tpu.memory_space<vmem>>, vector<32x64xf32>
    %c0_1 = arith.constant 0 : index
    %c0_2 = arith.constant 0 : index
    %1 = vector.load %arg6[%c0_1, %c0_2] : memref<16x64xf32, #tpu.memory_space<vmem>>, vector<16x64xf32>
    %c0_3 = arith.constant 0 : index
    %c0_4 = arith.constant 0 : index
    %2 = vector.load %arg7[%c0_3, %c0_4] : memref<1x64xf32, #tpu.memory_space<vmem>>, vector<1x64xf32>
    %c0_5 = arith.constant 0 : index
    %c0_6 = arith.constant 0 : index
    %c0_7 = arith.constant 0 : index
    %3 = vector.load %arg1[%c0_5, %c0_6, %c0_7] : memref<8x8x16xf32, #tpu.memory_space<vmem>>, vector<8x8x16xf32>
    %cst = arith.constant 0.000000e+00 : f32
    %4 = vector.broadcast %cst : f32 to vector<8x32xf32>
    %cst_8 = arith.constant 0.000000e+00 : f32
    %5 = vector.broadcast %cst_8 : f32 to vector<8x16xf32>
    %cst_9 = arith.constant 0.000000e+00 : f32
    %6 = vector.broadcast %cst_9 : f32 to vector<8x16xf32>
    %cst_10 = arith.constant dense<0.000000e+00> : vector<8x64xf32>
    %7 = tpu.matmul %4, %0, %cst_10 {dimension_numbers = #tpu.dot_dimension_numbers<[1], [0], [0], [1], [0, 0, 1, 1], [], []>} : vector<8x32xf32>, vector<32x64xf32>, vector<8x64xf32> -> vector<8x64xf32>
    %cst_11 = arith.constant dense<0.000000e+00> : vector<8x64xf32>
    %8 = tpu.matmul %5, %1, %cst_11 {dimension_numbers = #tpu.dot_dimension_numbers<[1], [0], [0], [1], [0, 0, 1, 1], [], []>} : vector<8x16xf32>, vector<16x64xf32>, vector<8x64xf32> -> vector<8x64xf32>
    %9 = arith.addf %7, %8 : vector<8x64xf32>
    %10 = vector.broadcast %2 : vector<1x64xf32> to vector<8x64xf32>
    %11 = arith.addf %9, %10 : vector<8x64xf32>
    %12 = vector.extract_strided_slice %11 {offsets = [0, 0], sizes = [8, 16], strides = [1, 1]} : vector<8x64xf32> to vector<8x16xf32>
    %13 = arith.negf %12 : vector<8x16xf32>
    %14 = math.exp %13 : vector<8x16xf32>
    %cst_12 = arith.constant 1.000000e+00 : f32
    %15 = vector.broadcast %cst_12 : f32 to vector<8x16xf32>
    %16 = arith.addf %15, %14 : vector<8x16xf32>
    %17 = arith.divf %15, %16 : vector<8x16xf32>
    %18 = vector.extract_strided_slice %11 {offsets = [0, 16], sizes = [8, 16], strides = [1, 1]} : vector<8x64xf32> to vector<8x16xf32>
    %19 = arith.negf %18 : vector<8x16xf32>
    %20 = math.exp %19 : vector<8x16xf32>
    %cst_13 = arith.constant 1.000000e+00 : f32
    %21 = vector.broadcast %cst_13 : f32 to vector<8x16xf32>
    %22 = arith.addf %21, %20 : vector<8x16xf32>
    %23 = arith.divf %21, %22 : vector<8x16xf32>
    %24 = vector.extract_strided_slice %11 {offsets = [0, 32], sizes = [8, 16], strides = [1, 1]} : vector<8x64xf32> to vector<8x16xf32>
    %25 = math.tanh %24 : vector<8x16xf32>
    %26 = vector.extract_strided_slice %11 {offsets = [0, 48], sizes = [8, 16], strides = [1, 1]} : vector<8x64xf32> to vector<8x16xf32>
    %27 = arith.negf %26 : vector<8x16xf32>
    %28 = math.exp %27 : vector<8x16xf32>
    %cst_14 = arith.constant 1.000000e+00 : f32
    %29 = vector.broadcast %cst_14 : f32 to vector<8x16xf32>
    %30 = arith.addf %29, %28 : vector<8x16xf32>
    %31 = arith.divf %29, %30 : vector<8x16xf32>
    %32 = arith.mulf %23, %6 : vector<8x16xf32>
    %33 = arith.mulf %17, %25 : vector<8x16xf32>
    %34 = arith.addf %32, %33 : vector<8x16xf32>
    %35 = math.tanh %34 : vector<8x16xf32>
    %36 = arith.mulf %31, %35 : vector<8x16xf32>
    %37 = vector.shape_cast %36 : vector<8x16xf32> to vector<8x1x16xf32>
    "tpu.trace_start"() <{level = 10 : i32, message = "gqc,gnc->gqn"}> : () -> ()
    %cst_15 = arith.constant dense<0.000000e+00> : vector<8x1x8xf32>
    %38 = tpu.matmul %37, %3, %cst_15 {dimension_numbers = #tpu.dot_dimension_numbers<[2], [2], [1], [1], [0, 0, 0, 1, 1, 1], [0], [0]>} : vector<8x1x16xf32>, vector<8x8x16xf32>, vector<8x1x8xf32> -> vector<8x1x8xf32>
    "tpu.trace_stop"() : () -> ()
    %cst_16 = arith.constant dense<0xFF800000> : vector<8x1xf32>
    %39 = vector.multi_reduction <maximumf>, %38, %cst_16 [2] : vector<8x1x8xf32> to vector<8x1xf32>
    %40 = vector.shape_cast %39 : vector<8x1xf32> to vector<8x1x1xf32>
    %41 = vector.broadcast %40 : vector<8x1x1xf32> to vector<8x1x8xf32>
    %42 = arith.subf %38, %41 : vector<8x1x8xf32>
    %43 = math.exp %42 : vector<8x1x8xf32>
    %cst_17 = arith.constant dense<0.000000e+00> : vector<8x1xf32>
    %44 = vector.multi_reduction <add>, %43, %cst_17 [2] : vector<8x1x8xf32> to vector<8x1xf32>
    %45 = vector.shape_cast %44 : vector<8x1xf32> to vector<8x1x1xf32>
    %46 = vector.broadcast %45 : vector<8x1x1xf32> to vector<8x1x8xf32>
    %47 = arith.divf %43, %46 : vector<8x1x8xf32>
    "tpu.trace_start"() <{level = 10 : i32, message = "gqn,gnc->gqc"}> : () -> ()
    %cst_18 = arith.constant dense<0.000000e+00> : vector<8x1x16xf32>
    %48 = tpu.matmul %47, %3, %cst_18 {dimension_numbers = #tpu.dot_dimension_numbers<[2], [1], [1], [2], [0, 0, 0, 1, 1, 2], [0], [0]>} : vector<8x1x8xf32>, vector<8x8x16xf32>, vector<8x1x16xf32> -> vector<8x1x16xf32>
    "tpu.trace_stop"() : () -> ()
    %49 = vector.shape_cast %48 : vector<8x1x16xf32> to vector<8x16xf32>
    %50 = tpu.concatenate %36, %49 in 1 : vector<8x16xf32>, vector<8x16xf32> -> vector<8x32xf32>
    %cst_19 = arith.constant dense<0.000000e+00> : vector<8x64xf32>
    %51 = tpu.matmul %50, %0, %cst_19 {dimension_numbers = #tpu.dot_dimension_numbers<[1], [0], [0], [1], [0, 0, 1, 1], [], []>} : vector<8x32xf32>, vector<32x64xf32>, vector<8x64xf32> -> vector<8x64xf32>
    %cst_20 = arith.constant dense<0.000000e+00> : vector<8x64xf32>
    %52 = tpu.matmul %36, %1, %cst_20 {dimension_numbers = #tpu.dot_dimension_numbers<[1], [0], [0], [1], [0, 0, 1, 1], [], []>} : vector<8x16xf32>, vector<16x64xf32>, vector<8x64xf32> -> vector<8x64xf32>
    %53 = arith.addf %51, %52 : vector<8x64xf32>
    %54 = vector.broadcast %2 : vector<1x64xf32> to vector<8x64xf32>
    %55 = arith.addf %53, %54 : vector<8x64xf32>
    %56 = vector.extract_strided_slice %55 {offsets = [0, 0], sizes = [8, 16], strides = [1, 1]} : vector<8x64xf32> to vector<8x16xf32>
    %57 = arith.negf %56 : vector<8x16xf32>
    %58 = math.exp %57 : vector<8x16xf32>
    %cst_21 = arith.constant 1.000000e+00 : f32
    %59 = vector.broadcast %cst_21 : f32 to vector<8x16xf32>
    %60 = arith.addf %59, %58 : vector<8x16xf32>
    %61 = arith.divf %59, %60 : vector<8x16xf32>
    %62 = vector.extract_strided_slice %55 {offsets = [0, 16], sizes = [8, 16], strides = [1, 1]} : vector<8x64xf32> to vector<8x16xf32>
    %63 = arith.negf %62 : vector<8x16xf32>
    %64 = math.exp %63 : vector<8x16xf32>
    %cst_22 = arith.constant 1.000000e+00 : f32
    %65 = vector.broadcast %cst_22 : f32 to vector<8x16xf32>
    %66 = arith.addf %65, %64 : vector<8x16xf32>
    %67 = arith.divf %65, %66 : vector<8x16xf32>
    %68 = vector.extract_strided_slice %55 {offsets = [0, 32], sizes = [8, 16], strides = [1, 1]} : vector<8x64xf32> to vector<8x16xf32>
    %69 = math.tanh %68 : vector<8x16xf32>
    %70 = vector.extract_strided_slice %55 {offsets = [0, 48], sizes = [8, 16], strides = [1, 1]} : vector<8x64xf32> to vector<8x16xf32>
    %71 = arith.negf %70 : vector<8x16xf32>
    %72 = math.exp %71 : vector<8x16xf32>
    %cst_23 = arith.constant 1.000000e+00 : f32
    %73 = vector.broadcast %cst_23 : f32 to vector<8x16xf32>
    %74 = arith.addf %73, %72 : vector<8x16xf32>
    %75 = arith.divf %73, %74 : vector<8x16xf32>
    %76 = arith.mulf %67, %34 : vector<8x16xf32>
    %77 = arith.mulf %61, %69 : vector<8x16xf32>
    %78 = arith.addf %76, %77 : vector<8x16xf32>
    %79 = math.tanh %78 : vector<8x16xf32>
    %80 = arith.mulf %75, %79 : vector<8x16xf32>
    %81 = vector.shape_cast %80 : vector<8x16xf32> to vector<8x1x16xf32>
    "tpu.trace_start"() <{level = 10 : i32, message = "gqc,gnc->gqn"}> : () -> ()
    %cst_24 = arith.constant dense<0.000000e+00> : vector<8x1x8xf32>
    %82 = tpu.matmul %81, %3, %cst_24 {dimension_numbers = #tpu.dot_dimension_numbers<[2], [2], [1], [1], [0, 0, 0, 1, 1, 1], [0], [0]>} : vector<8x1x16xf32>, vector<8x8x16xf32>, vector<8x1x8xf32> -> vector<8x1x8xf32>
    "tpu.trace_stop"() : () -> ()
    %cst_25 = arith.constant dense<0xFF800000> : vector<8x1xf32>
    %83 = vector.multi_reduction <maximumf>, %82, %cst_25 [2] : vector<8x1x8xf32> to vector<8x1xf32>
    %84 = vector.shape_cast %83 : vector<8x1xf32> to vector<8x1x1xf32>
    %85 = vector.broadcast %84 : vector<8x1x1xf32> to vector<8x1x8xf32>
    %86 = arith.subf %82, %85 : vector<8x1x8xf32>
    %87 = math.exp %86 : vector<8x1x8xf32>
    %cst_26 = arith.constant dense<0.000000e+00> : vector<8x1xf32>
    %88 = vector.multi_reduction <add>, %87, %cst_26 [2] : vector<8x1x8xf32> to vector<8x1xf32>
    %89 = vector.shape_cast %88 : vector<8x1xf32> to vector<8x1x1xf32>
    %90 = vector.broadcast %89 : vector<8x1x1xf32> to vector<8x1x8xf32>
    %91 = arith.divf %87, %90 : vector<8x1x8xf32>
    "tpu.trace_start"() <{level = 10 : i32, message = "gqn,gnc->gqc"}> : () -> ()
    %cst_27 = arith.constant dense<0.000000e+00> : vector<8x1x16xf32>
    %92 = tpu.matmul %91, %3, %cst_27 {dimension_numbers = #tpu.dot_dimension_numbers<[2], [1], [1], [2], [0, 0, 0, 1, 1, 2], [0], [0]>} : vector<8x1x8xf32>, vector<8x8x16xf32>, vector<8x1x16xf32> -> vector<8x1x16xf32>
    "tpu.trace_stop"() : () -> ()
    %93 = vector.shape_cast %92 : vector<8x1x16xf32> to vector<8x16xf32>
    %94 = tpu.concatenate %80, %93 in 1 : vector<8x16xf32>, vector<8x16xf32> -> vector<8x32xf32>
    %c0_28 = arith.constant 0 : index
    %c0_29 = arith.constant 0 : index
    %c0_30 = arith.constant 0 : index
    %95 = vector.load %arg2[%c0_28, %c0_29, %c0_30] : memref<8x8x16xf32, #tpu.memory_space<vmem>>, vector<8x8x16xf32>
    %cst_31 = arith.constant 0.000000e+00 : f32
    %96 = vector.broadcast %cst_31 : f32 to vector<8x32xf32>
    %cst_32 = arith.constant 0.000000e+00 : f32
    %97 = vector.broadcast %cst_32 : f32 to vector<8x16xf32>
    %cst_33 = arith.constant 0.000000e+00 : f32
    %98 = vector.broadcast %cst_33 : f32 to vector<8x16xf32>
    %cst_34 = arith.constant dense<0.000000e+00> : vector<8x64xf32>
    %99 = tpu.matmul %96, %0, %cst_34 {dimension_numbers = #tpu.dot_dimension_numbers<[1], [0], [0], [1], [0, 0, 1, 1], [], []>} : vector<8x32xf32>, vector<32x64xf32>, vector<8x64xf32> -> vector<8x64xf32>
    %cst_35 = arith.constant dense<0.000000e+00> : vector<8x64xf32>
    %100 = tpu.matmul %97, %1, %cst_35 {dimension_numbers = #tpu.dot_dimension_numbers<[1], [0], [0], [1], [0, 0, 1, 1], [], []>} : vector<8x16xf32>, vector<16x64xf32>, vector<8x64xf32> -> vector<8x64xf32>
    %101 = arith.addf %99, %100 : vector<8x64xf32>
    %102 = vector.broadcast %2 : vector<1x64xf32> to vector<8x64xf32>
    %103 = arith.addf %101, %102 : vector<8x64xf32>
    %104 = vector.extract_strided_slice %103 {offsets = [0, 0], sizes = [8, 16], strides = [1, 1]} : vector<8x64xf32> to vector<8x16xf32>
    %105 = arith.negf %104 : vector<8x16xf32>
    %106 = math.exp %105 : vector<8x16xf32>
    %cst_36 = arith.constant 1.000000e+00 : f32
    %107 = vector.broadcast %cst_36 : f32 to vector<8x16xf32>
    %108 = arith.addf %107, %106 : vector<8x16xf32>
    %109 = arith.divf %107, %108 : vector<8x16xf32>
    %110 = vector.extract_strided_slice %103 {offsets = [0, 16], sizes = [8, 16], strides = [1, 1]} : vector<8x64xf32> to vector<8x16xf32>
    %111 = arith.negf %110 : vector<8x16xf32>
    %112 = math.exp %111 : vector<8x16xf32>
    %cst_37 = arith.constant 1.000000e+00 : f32
    %113 = vector.broadcast %cst_37 : f32 to vector<8x16xf32>
    %114 = arith.addf %113, %112 : vector<8x16xf32>
    %115 = arith.divf %113, %114 : vector<8x16xf32>
    %116 = vector.extract_strided_slice %103 {offsets = [0, 32], sizes = [8, 16], strides = [1, 1]} : vector<8x64xf32> to vector<8x16xf32>
    %117 = math.tanh %116 : vector<8x16xf32>
    %118 = vector.extract_strided_slice %103 {offsets = [0, 48], sizes = [8, 16], strides = [1, 1]} : vector<8x64xf32> to vector<8x16xf32>
    %119 = arith.negf %118 : vector<8x16xf32>
    %120 = math.exp %119 : vector<8x16xf32>
    %cst_38 = arith.constant 1.000000e+00 : f32
    %121 = vector.broadcast %cst_38 : f32 to vector<8x16xf32>
    %122 = arith.addf %121, %120 : vector<8x16xf32>
    %123 = arith.divf %121, %122 : vector<8x16xf32>
    %124 = arith.mulf %115, %98 : vector<8x16xf32>
    %125 = arith.mulf %109, %117 : vector<8x16xf32>
    %126 = arith.addf %124, %125 : vector<8x16xf32>
    %127 = math.tanh %126 : vector<8x16xf32>
    %128 = arith.mulf %123, %127 : vector<8x16xf32>
    %129 = vector.shape_cast %128 : vector<8x16xf32> to vector<8x1x16xf32>
    "tpu.trace_start"() <{level = 10 : i32, message = "gqc,gnc->gqn"}> : () -> ()
    %cst_39 = arith.constant dense<0.000000e+00> : vector<8x1x8xf32>
    %130 = tpu.matmul %129, %95, %cst_39 {dimension_numbers = #tpu.dot_dimension_numbers<[2], [2], [1], [1], [0, 0, 0, 1, 1, 1], [0], [0]>} : vector<8x1x16xf32>, vector<8x8x16xf32>, vector<8x1x8xf32> -> vector<8x1x8xf32>
    "tpu.trace_stop"() : () -> ()
    %cst_40 = arith.constant dense<0xFF800000> : vector<8x1xf32>
    %131 = vector.multi_reduction <maximumf>, %130, %cst_40 [2] : vector<8x1x8xf32> to vector<8x1xf32>
    %132 = vector.shape_cast %131 : vector<8x1xf32> to vector<8x1x1xf32>
    %133 = vector.broadcast %132 : vector<8x1x1xf32> to vector<8x1x8xf32>
    %134 = arith.subf %130, %133 : vector<8x1x8xf32>
    %135 = math.exp %134 : vector<8x1x8xf32>
    %cst_41 = arith.constant dense<0.000000e+00> : vector<8x1xf32>
    %136 = vector.multi_reduction <add>, %135, %cst_41 [2] : vector<8x1x8xf32> to vector<8x1xf32>
    %137 = vector.shape_cast %136 : vector<8x1xf32> to vector<8x1x1xf32>
    %138 = vector.broadcast %137 : vector<8x1x1xf32> to vector<8x1x8xf32>
    %139 = arith.divf %135, %138 : vector<8x1x8xf32>
    "tpu.trace_start"() <{level = 10 : i32, message = "gqn,gnc->gqc"}> : () -> ()
    %cst_42 = arith.constant dense<0.000000e+00> : vector<8x1x16xf32>
    %140 = tpu.matmul %139, %95, %cst_42 {dimension_numbers = #tpu.dot_dimension_numbers<[2], [1], [1], [2], [0, 0, 0, 1, 1, 2], [0], [0]>} : vector<8x1x8xf32>, vector<8x8x16xf32>, vector<8x1x16xf32> -> vector<8x1x16xf32>
    "tpu.trace_stop"() : () -> ()
    %141 = vector.shape_cast %140 : vector<8x1x16xf32> to vector<8x16xf32>
    %142 = tpu.concatenate %128, %141 in 1 : vector<8x16xf32>, vector<8x16xf32> -> vector<8x32xf32>
    %cst_43 = arith.constant dense<0.000000e+00> : vector<8x64xf32>
    %143 = tpu.matmul %142, %0, %cst_43 {dimension_numbers = #tpu.dot_dimension_numbers<[1], [0], [0], [1], [0, 0, 1, 1], [], []>} : vector<8x32xf32>, vector<32x64xf32>, vector<8x64xf32> -> vector<8x64xf32>
    %cst_44 = arith.constant dense<0.000000e+00> : vector<8x64xf32>
    %144 = tpu.matmul %128, %1, %cst_44 {dimension_numbers = #tpu.dot_dimension_numbers<[1], [0], [0], [1], [0, 0, 1, 1], [], []>} : vector<8x16xf32>, vector<16x64xf32>, vector<8x64xf32> -> vector<8x64xf32>
    %145 = arith.addf %143, %144 : vector<8x64xf32>
    %146 = vector.broadcast %2 : vector<1x64xf32> to vector<8x64xf32>
    %147 = arith.addf %145, %146 : vector<8x64xf32>
    %148 = vector.extract_strided_slice %147 {offsets = [0, 0], sizes = [8, 16], strides = [1, 1]} : vector<8x64xf32> to vector<8x16xf32>
    %149 = arith.negf %148 : vector<8x16xf32>
    %150 = math.exp %149 : vector<8x16xf32>
    %cst_45 = arith.constant 1.000000e+00 : f32
    %151 = vector.broadcast %cst_45 : f32 to vector<8x16xf32>
    %152 = arith.addf %151, %150 : vector<8x16xf32>
    %153 = arith.divf %151, %152 : vector<8x16xf32>
    %154 = vector.extract_strided_slice %147 {offsets = [0, 16], sizes = [8, 16], strides = [1, 1]} : vector<8x64xf32> to vector<8x16xf32>
    %155 = arith.negf %154 : vector<8x16xf32>
    %156 = math.exp %155 : vector<8x16xf32>
    %cst_46 = arith.constant 1.000000e+00 : f32
    %157 = vector.broadcast %cst_46 : f32 to vector<8x16xf32>
    %158 = arith.addf %157, %156 : vector<8x16xf32>
    %159 = arith.divf %157, %158 : vector<8x16xf32>
    %160 = vector.extract_strided_slice %147 {offsets = [0, 32], sizes = [8, 16], strides = [1, 1]} : vector<8x64xf32> to vector<8x16xf32>
    %161 = math.tanh %160 : vector<8x16xf32>
    %162 = vector.extract_strided_slice %147 {offsets = [0, 48], sizes = [8, 16], strides = [1, 1]} : vector<8x64xf32> to vector<8x16xf32>
    %163 = arith.negf %162 : vector<8x16xf32>
    %164 = math.exp %163 : vector<8x16xf32>
    %cst_47 = arith.constant 1.000000e+00 : f32
    %165 = vector.broadcast %cst_47 : f32 to vector<8x16xf32>
    %166 = arith.addf %165, %164 : vector<8x16xf32>
    %167 = arith.divf %165, %166 : vector<8x16xf32>
    %168 = arith.mulf %159, %126 : vector<8x16xf32>
    %169 = arith.mulf %153, %161 : vector<8x16xf32>
    %170 = arith.addf %168, %169 : vector<8x16xf32>
    %171 = math.tanh %170 : vector<8x16xf32>
    %172 = arith.mulf %167, %171 : vector<8x16xf32>
    %173 = vector.shape_cast %172 : vector<8x16xf32> to vector<8x1x16xf32>
    "tpu.trace_start"() <{level = 10 : i32, message = "gqc,gnc->gqn"}> : () -> ()
    %cst_48 = arith.constant dense<0.000000e+00> : vector<8x1x8xf32>
    %174 = tpu.matmul %173, %95, %cst_48 {dimension_numbers = #tpu.dot_dimension_numbers<[2], [2], [1], [1], [0, 0, 0, 1, 1, 1], [0], [0]>} : vector<8x1x16xf32>, vector<8x8x16xf32>, vector<8x1x8xf32> -> vector<8x1x8xf32>
    "tpu.trace_stop"() : () -> ()
    %cst_49 = arith.constant dense<0xFF800000> : vector<8x1xf32>
    %175 = vector.multi_reduction <maximumf>, %174, %cst_49 [2] : vector<8x1x8xf32> to vector<8x1xf32>
    %176 = vector.shape_cast %175 : vector<8x1xf32> to vector<8x1x1xf32>
    %177 = vector.broadcast %176 : vector<8x1x1xf32> to vector<8x1x8xf32>
    %178 = arith.subf %174, %177 : vector<8x1x8xf32>
    %179 = math.exp %178 : vector<8x1x8xf32>
    %cst_50 = arith.constant dense<0.000000e+00> : vector<8x1xf32>
    %180 = vector.multi_reduction <add>, %179, %cst_50 [2] : vector<8x1x8xf32> to vector<8x1xf32>
    %181 = vector.shape_cast %180 : vector<8x1xf32> to vector<8x1x1xf32>
    %182 = vector.broadcast %181 : vector<8x1x1xf32> to vector<8x1x8xf32>
    %183 = arith.divf %179, %182 : vector<8x1x8xf32>
    "tpu.trace_start"() <{level = 10 : i32, message = "gqn,gnc->gqc"}> : () -> ()
    %cst_51 = arith.constant dense<0.000000e+00> : vector<8x1x16xf32>
    %184 = tpu.matmul %183, %95, %cst_51 {dimension_numbers = #tpu.dot_dimension_numbers<[2], [1], [1], [2], [0, 0, 0, 1, 1, 2], [0], [0]>} : vector<8x1x8xf32>, vector<8x8x16xf32>, vector<8x1x16xf32> -> vector<8x1x16xf32>
    "tpu.trace_stop"() : () -> ()
    %185 = vector.shape_cast %184 : vector<8x1x16xf32> to vector<8x16xf32>
    %186 = tpu.concatenate %172, %185 in 1 : vector<8x16xf32>, vector<8x16xf32> -> vector<8x32xf32>
    %c0_52 = arith.constant 0 : index
    %c0_53 = arith.constant 0 : index
    %187 = vector.load %arg3[%c0_52, %c0_53] : memref<8x32xf32, #tpu.memory_space<vmem>>, vector<8x32xf32>
    %c0_54 = arith.constant 0 : index
    %c0_55 = arith.constant 0 : index
    %188 = vector.load %arg4[%c0_54, %c0_55] : memref<8x32xf32, #tpu.memory_space<vmem>>, vector<8x32xf32>
    %189 = tpu.concatenate %94, %187, %186, %188 in 1 : vector<8x32xf32>, vector<8x32xf32>, vector<8x32xf32>, vector<8x32xf32> -> vector<8x128xf32>
    %c0_56 = arith.constant 0 : index
    %c0_57 = arith.constant 0 : index
    %190 = vector.load %arg8[%c0_56, %c0_57] : memref<128x16xf32, #tpu.memory_space<vmem>>, vector<128x16xf32>
    %cst_58 = arith.constant dense<0.000000e+00> : vector<8x16xf32>
    %191 = tpu.matmul %189, %190, %cst_58 {dimension_numbers = #tpu.dot_dimension_numbers<[1], [0], [0], [1], [0, 0, 1, 1], [], []>} : vector<8x128xf32>, vector<128x16xf32>, vector<8x16xf32> -> vector<8x16xf32>
    %c0_59 = arith.constant 0 : index
    %c0_60 = arith.constant 0 : index
    %192 = vector.load %arg9[%c0_59, %c0_60] : memref<1x16xf32, #tpu.memory_space<vmem>>, vector<1x16xf32>
    %193 = vector.broadcast %192 : vector<1x16xf32> to vector<8x16xf32>
    %194 = arith.addf %191, %193 : vector<8x16xf32>
    %cst_61 = arith.constant 0.000000e+00 : f32
    %195 = vector.broadcast %cst_61 : f32 to vector<8x16xf32>
    %196 = arith.maximumf %194, %195 : vector<8x16xf32>
    %c0_62 = arith.constant 0 : index
    %c0_63 = arith.constant 0 : index
    %197 = vector.load %arg10[%c0_62, %c0_63] : memref<16x64xf32, #tpu.memory_space<vmem>>, vector<16x64xf32>
    %cst_64 = arith.constant dense<0.000000e+00> : vector<8x64xf32>
    %198 = tpu.matmul %196, %197, %cst_64 {dimension_numbers = #tpu.dot_dimension_numbers<[1], [0], [0], [1], [0, 0, 1, 1], [], []>} : vector<8x16xf32>, vector<16x64xf32>, vector<8x64xf32> -> vector<8x64xf32>
    %c0_65 = arith.constant 0 : index
    %c0_66 = arith.constant 0 : index
    %199 = vector.load %arg11[%c0_65, %c0_66] : memref<1x64xf32, #tpu.memory_space<vmem>>, vector<1x64xf32>
    %200 = vector.broadcast %199 : vector<1x64xf32> to vector<8x64xf32>
    %201 = arith.addf %198, %200 : vector<8x64xf32>
    %cst_67 = arith.constant 0.000000e+00 : f32
    %202 = vector.broadcast %cst_67 : f32 to vector<8x64xf32>
    %203 = arith.maximumf %201, %202 : vector<8x64xf32>
    %c0_68 = arith.constant 0 : index
    %c0_69 = arith.constant 0 : index
    %204 = vector.load %arg12[%c0_68, %c0_69] : memref<64x32xf32, #tpu.memory_space<vmem>>, vector<64x32xf32>
    %cst_70 = arith.constant dense<0.000000e+00> : vector<8x32xf32>
    %205 = tpu.matmul %203, %204, %cst_70 {dimension_numbers = #tpu.dot_dimension_numbers<[1], [0], [0], [1], [0, 0, 1, 1], [], []>} : vector<8x64xf32>, vector<64x32xf32>, vector<8x32xf32> -> vector<8x32xf32>
    %c0_71 = arith.constant 0 : index
    %c0_72 = arith.constant 0 : index
    %206 = vector.load %arg13[%c0_71, %c0_72] : memref<1x32xf32, #tpu.memory_space<vmem>>, vector<1x32xf32>
    %207 = vector.broadcast %206 : vector<1x32xf32> to vector<8x32xf32>
    %208 = arith.addf %205, %207 : vector<8x32xf32>
    %cst_73 = arith.constant 0.000000e+00 : f32
    %209 = vector.broadcast %cst_73 : f32 to vector<8x32xf32>
    %210 = arith.maximumf %208, %209 : vector<8x32xf32>
    %c0_74 = arith.constant 0 : index
    %c0_75 = arith.constant 0 : index
    %211 = vector.load %arg14[%c0_74, %c0_75] : memref<32x1xf32, #tpu.memory_space<vmem>>, vector<32x1xf32>
    %cst_76 = arith.constant dense<0.000000e+00> : vector<8x1xf32>
    %212 = tpu.matmul %210, %211, %cst_76 {dimension_numbers = #tpu.dot_dimension_numbers<[1], [0], [0], [1], [0, 0, 1, 1], [], []>} : vector<8x32xf32>, vector<32x1xf32>, vector<8x1xf32> -> vector<8x1xf32>
    %c0_77 = arith.constant 0 : index
    %c0_78 = arith.constant 0 : index
    %213 = vector.load %arg15[%c0_77, %c0_78] : memref<1x1xf32, #tpu.memory_space<vmem>>, vector<1x1xf32>
    %214 = vector.broadcast %213 : vector<1x1xf32> to vector<8x1xf32>
    %215 = arith.addf %212, %214 : vector<8x1xf32>
    %c0_79 = arith.constant 0 : index
    %c0_80 = arith.constant 0 : index
    %216 = vector.load %arg16[%c0_79, %c0_80] : memref<8x1xf32, #tpu.memory_space<vmem>>, vector<8x1xf32>
    tpu.vector_store %arg16[%c0_79, %c0_80], %215 {strides = array<i32>} : memref<8x1xf32, #tpu.memory_space<vmem>>, vector<8x1xf32>,
    return
  }
  func.func @transform_0(%arg0: i32) -> (i32, i32, i32) {
    %c0_i32 = arith.constant 0 : i32
    %c0_i32_0 = arith.constant 0 : i32
    %c0_i32_1 = arith.constant 0 : i32
    %c0_i32_2 = arith.constant 0 : i32
    return %c0_i32, %c0_i32_0, %c0_i32_1 : i32, i32, i32
  }
  func.func @transform_1(%arg0: i32) -> (i32, i32, i32) {
    %c0_i32 = arith.constant 0 : i32
    %c0_i32_0 = arith.constant 0 : i32
    %c0_i32_1 = arith.constant 0 : i32
    %c0_i32_2 = arith.constant 0 : i32
    return %c0_i32, %c0_i32_0, %c0_i32_1 : i32, i32, i32
  }
  func.func @transform_2(%arg0: i32) -> (i32, i32) {
    %c0_i32 = arith.constant 0 : i32
    %c0_i32_0 = arith.constant 0 : i32
    %c0_i32_1 = arith.constant 0 : i32
    return %c0_i32, %c0_i32_0 : i32, i32
  }
  func.func @transform_3(%arg0: i32) -> (i32, i32) {
    %c0_i32 = arith.constant 0 : i32
    %c0_i32_0 = arith.constant 0 : i32
    %c0_i32_1 = arith.constant 0 : i32
    return %c0_i32, %c0_i32_0 : i32, i32
  }
  func.func @transform_4(%arg0: i32) -> (i32, i32) {
    %c0_i32 = arith.constant 0 : i32
    %c0_i32_0 = arith.constant 0 : i32
    %c0_i32_1 = arith.constant 0 : i32
    return %c0_i32, %c0_i32_0 : i32, i32
  }
  func.func @transform_5(%arg0: i32) -> (i32, i32) {
    %c0_i32 = arith.constant 0 : i32
    %c0_i32_0 = arith.constant 0 : i32
    %c0_i32_1 = arith.constant 0 : i32
    return %c0_i32, %c0_i32_0 : i32, i32
  }
  func.func @transform_6(%arg0: i32) -> (i32, i32) {
    %c0_i32 = arith.constant 0 : i32
    %c0_i32_0 = arith.constant 0 : i32
    %c0_i32_1 = arith.constant 0 : i32
    return %c0_i32, %c0_i32_0 : i32, i32
  }
  func.func @transform_7(%arg0: i32) -> (i32, i32) {
    %c0_i32 = arith.constant 0 : i32
    %c0_i32_0 = arith.constant 0 : i32
    %c0_i32_1 = arith.constant 0 : i32
    return %c0_i32, %c0_i32_0 : i32, i32
  }
  func.func @transform_8(%arg0: i32) -> (i32, i32) {
    %c0_i32 = arith.constant 0 : i32
    %c0_i32_0 = arith.constant 0 : i32
    %c0_i32_1 = arith.constant 0 : i32
    return %c0_i32, %c0_i32_0 : i32, i32
  }
  func.func @transform_9(%arg0: i32) -> (i32, i32) {
    %c0_i32 = arith.constant 0 : i32
    %c0_i32_0 = arith.constant 0 : i32
    %c0_i32_1 = arith.constant 0 : i32
    return %c0_i32, %c0_i32_0 : i32, i32
  }
  func.func @transform_10(%arg0: i32) -> (i32, i32) {
    %c0_i32 = arith.constant 0 : i32
    %c0_i32_0 = arith.constant 0 : i32
    %c0_i32_1 = arith.constant 0 : i32
    return %c0_i32, %c0_i32_0 : i32, i32
  }
  func.func @transform_11(%arg0: i32) -> (i32, i32) {
    %c0_i32 = arith.constant 0 : i32
    %c0_i32_0 = arith.constant 0 : i32
    %c0_i32_1 = arith.constant 0 : i32
    return %c0_i32, %c0_i32_0 : i32, i32
  }
  func.func @transform_12(%arg0: i32) -> (i32, i32) {
    %c0_i32 = arith.constant 0 : i32
    %c0_i32_0 = arith.constant 0 : i32
    %c0_i32_1 = arith.constant 0 : i32
    return %c0_i32, %c0_i32_0 : i32, i32
  }
  func.func @transform_13(%arg0: i32) -> (i32, i32) {
    %c0_i32 = arith.constant 0 : i32
    %c0_i32_0 = arith.constant 0 : i32
    %c0_i32_1 = arith.constant 0 : i32
    return %c0_i32, %c0_i32_0 : i32, i32
  }
  func.func @transform_14(%arg0: i32) -> (i32, i32) {
    %c0_i32 = arith.constant 0 : i32
    %c0_i32_0 = arith.constant 0 : i32
    %c0_i32_1 = arith.constant 0 : i32
    return %c0_i32, %c0_i32_0 : i32, i32
  }
  func.func @transform_15(%arg0: i32) -> (i32, i32) {
    %c0_i32 = arith.constant 0 : i32
    %c0_i32_0 = arith.constant 0 : i32
    %c0_i32_1 = arith.constant 0 : i32
    return %c0_i32, %c0_i32_0 : i32, i32
  }
}

</mosaic_0001>

<llo_original>
// kernel: my_new_gcn_forward.3
$region0: #{my_new_gcn_forward.3}
  #allocation0 [shape = 'u32[]', space=smem, size = 0x4, offset = 0x4, fixed_abs, tag = 'smem constant byte address 0x4 - core index']
  #allocation1 [shape = 'u32[72,128]{1,0:T(1,128)}', space=vmem, size = 0x9000, scoped, tag = 'internal scratch']
  %s0 = inlined_call_operand.vmem [shape: f32[64,32], index: 0, kind: input, shape index: {}]
  %s1 = inlined_call_operand.vmem [shape: f32[64,64], index: 1, kind: input, shape index: {}]
  %s2 = inlined_call_operand.vmem [shape: f32[32,32], index: 2, kind: input, shape index: {}]
  %s3 = inlined_call_operand.vmem [shape: f32[1,32], index: 3, kind: input, shape index: {}]
  %s4 = inlined_call_operand.vmem [shape: f32[32,16], index: 4, kind: input, shape index: {}]
  %s5 = inlined_call_operand.vmem [shape: f32[1,16], index: 5, kind: input, shape index: {}]
  %s6 = inlined_call_operand.vmem [shape: f32[32,16], index: 6, kind: input, shape index: {}]
  %s7 = inlined_call_operand.vmem [shape: f32[1,16], index: 7, kind: input, shape index: {}]
  %s8 = inlined_call_operand.vmem [shape: f32[64,16], index: 8, kind: output, shape index: {}]
  %s9 = sld [smem:[#allocation0]]
  $region42: #{my_new_gcn_forward.3} parent=0
    _
  %s11 = ssub.s32 1, %s9
  %s12 = scalar_select 0, %s11, %s9
  // Predicated region
  $region2: #{my_new_gcn_forward.3} parent=0 // pred_check
    _
  $region3: #{my_new_gcn_forward.3} parent=0 // pred_check_branch
    %14 = sbr.rel (0) target = $region5
  $region4: #{my_new_gcn_forward.3} parent=0 // pred_region
    _
  $region5: #{my_new_gcn_forward.3} parent=0 // pred_fallthru
    _
  // Predicated region
  $region6: #{my_new_gcn_forward.3} parent=0 // pred_check
    _
  $region7: #{my_new_gcn_forward.3} parent=0 // pred_check_branch
    %16 = sbr.rel (0) target = $region9
  $region8: #{my_new_gcn_forward.3} parent=0 // pred_region
    _
  $region9: #{my_new_gcn_forward.3} parent=0 // pred_fallthru
    _
  // Predicated region
  $region10: #{my_new_gcn_forward.3} parent=0 // pred_check
    _
  $region11: #{my_new_gcn_forward.3} parent=0 // pred_check_branch
    %18 = sbr.rel (0) target = $region13
  $region12: #{my_new_gcn_forward.3} parent=0 // pred_region
    _
  $region13: #{my_new_gcn_forward.3} parent=0 // pred_fallthru
    _
  // Predicated region
  $region14: #{my_new_gcn_forward.3} parent=0 // pred_check
    _
  $region15: #{my_new_gcn_forward.3} parent=0 // pred_check_branch
    %20 = sbr.rel (0) target = $region17
  $region16: #{my_new_gcn_forward.3} parent=0 // pred_region
    _
  $region17: #{my_new_gcn_forward.3} parent=0 // pred_fallthru
    _
  // Predicated region
  $region18: #{my_new_gcn_forward.3} parent=0 // pred_check
    _
  $region19: #{my_new_gcn_forward.3} parent=0 // pred_check_branch
    %22 = sbr.rel (0) target = $region21
  $region20: #{my_new_gcn_forward.3} parent=0 // pred_region
    _
  $region21: #{my_new_gcn_forward.3} parent=0 // pred_fallthru
    _
  // Predicated region
  $region22: #{my_new_gcn_forward.3} parent=0 // pred_check
    _
  $region23: #{my_new_gcn_forward.3} parent=0 // pred_check_branch
    %24 = sbr.rel (0) target = $region25
  $region24: #{my_new_gcn_forward.3} parent=0 // pred_region
    _
  $region25: #{my_new_gcn_forward.3} parent=0 // pred_fallthru
    _
  // Predicated region
  $region26: #{my_new_gcn_forward.3} parent=0 // pred_check
    _
  $region27: #{my_new_gcn_forward.3} parent=0 // pred_check_branch
    %26 = sbr.rel (0) target = $region29
  $region28: #{my_new_gcn_forward.3} parent=0 // pred_region
    _
  $region29: #{my_new_gcn_forward.3} parent=0 // pred_fallthru
    _
  // Predicated region
  $region30: #{my_new_gcn_forward.3} parent=0 // pred_check
    _
  $region31: #{my_new_gcn_forward.3} parent=0 // pred_check_branch
    %28 = sbr.rel (0) target = $region33
  $region32: #{my_new_gcn_forward.3} parent=0 // pred_region
    _
  $region33: #{my_new_gcn_forward.3} parent=0 // pred_fallthru
    _
  %v29 = vld [vmem:[%s0] sm:$0xff]
  %v30 = vld [vmem:[%s0 + $0x8] sm:$0xff]
  %v31 = vld [vmem:[%s0 + $0x10] sm:$0xff]
  %v32 = vld [vmem:[%s0 + $0x18] sm:$0xff]
  %v33 = vld [vmem:[%s0 + $0x20] sm:$0xff]
  %v34 = vld [vmem:[%s0 + $0x28] sm:$0xff]
  %v35 = vld [vmem:[%s0 + $0x30] sm:$0xff]
  %v36 = vld [vmem:[%s0 + $0x38] sm:$0xff]
  %v37 = vld [vmem:[%s1] sm:$0xff]
  %v38 = vld [vmem:[%s1 + $0x8] sm:$0xff]
  %v39 = vld [vmem:[%s1 + $0x10] sm:$0xff]
  %v40 = vld [vmem:[%s1 + $0x18] sm:$0xff]
  %v41 = vld [vmem:[%s1 + $0x20] sm:$0xff]
  %v42 = vld [vmem:[%s1 + $0x28] sm:$0xff]
  %v43 = vld [vmem:[%s1 + $0x30] sm:$0xff]
  %v44 = vld [vmem:[%s1 + $0x38] sm:$0xff]
  %v45 = vld [vmem:[%s6] sm:$0xff]
  %v46 = vld [vmem:[%s6 + $0x8] sm:$0xff]
  %v47 = vld [vmem:[%s6 + $0x10] sm:$0xff]
  %v48 = vld [vmem:[%s6 + $0x18] sm:$0xff]
  %v49 = vld [vmem:[%s7] sm:$0x1]
  %v51 = vperm.slane %v49, 0
  %vm53 = vcmask 261120
  %v55 = vsel %vm53, %v29, 0
  %v58 = vsel %vm53, %v30, 0
  %v61 = vsel %vm53, %v31, 0
  %v64 = vsel %vm53, %v32, 0
  %v67 = vsel %vm53, %v33, 0
  %v70 = vsel %vm53, %v34, 0
  %v73 = vsel %vm53, %v35, 0
  %v76 = vsel %vm53, %v36, 0
  %78 = vmatpush.msra.mxu0 0.0
  %79 = vmatpush.msra.mxu0 0.0
  %80 = vmatpush.msra.mxu0 0.0
  %81 = vmatpush.msra.mxu0 0.0
  %82 = vmatpush.msra.mxu0 0.0
  %83 = vmatpush.msra.mxu0 0.0
  %84 = vmatpush.msra.mxu0 0.0
  %85 = vmatpush.msra.mxu0 0.0
  %86 = vmatpush.msra.mxu0 0.0
  %87 = vmatpush.msra.mxu0 0.0
  %88 = vmatpush.msra.mxu0 0.0
  %89 = vmatpush.msra.mxu0 0.0
  %90 = vmatpush.msra.mxu0 %v48
  %91 = vmatpush.msra.mxu0 %v47
  %92 = vmatpush.msra.mxu0 %v46
  %93 = vmatpush.msra.mxu0 %v45
  %94 = vmatmul.f32.gmra.mxu0 %v55
  %v95 = vpop.f32.mrf.mxu0
  %v96 = vadd.f32 %v51, %v95
  %97 = vmatmul.f32.gmra.mxu0 %v58
  %v98 = vpop.f32.mrf.mxu0
  %v99 = vadd.f32 %v51, %v98
  %100 = vmatmul.f32.gmra.mxu0 %v61
  %v101 = vpop.f32.mrf.mxu0
  %v102 = vadd.f32 %v51, %v101
  %103 = vmatmul.f32.gmra.mxu0 %v64
  %v104 = vpop.f32.mrf.mxu0
  %v105 = vadd.f32 %v51, %v104
  %106 = vmatmul.f32.gmra.mxu0 %v67
  %v107 = vpop.f32.mrf.mxu0
  %v108 = vadd.f32 %v51, %v107
  %109 = vmatmul.f32.gmra.mxu0 %v70
  %v110 = vpop.f32.mrf.mxu0
  %v111 = vadd.f32 %v51, %v110
  %112 = vmatmul.f32.gmra.mxu0 %v73
  %v113 = vpop.f32.mrf.mxu0
  %v114 = vadd.f32 %v51, %v113
  %115 = vmatmul.f32.gmra.mxu0 %v76
  %v116 = vpop.f32.mrf.mxu0
  %v117 = vadd.f32 %v51, %v116
  %118 = vdwg.mxu0
  %v119 = vld [vmem:[%s2] sm:$0xff]
  %v120 = vld [vmem:[%s2 + $0x8] sm:$0xff]
  %v121 = vld [vmem:[%s2 + $0x10] sm:$0xff]
  %v122 = vld [vmem:[%s2 + $0x18] sm:$0xff]
  %123 = vmatpush.msra.mxu0 0.0
  %124 = vmatpush.msra.mxu0 0.0
  %125 = vmatpush.msra.mxu0 0.0
  %126 = vmatpush.msra.mxu0 0.0
  %127 = vmatpush.msra.mxu0 0.0
  %128 = vmatpush.msra.mxu0 0.0
  %129 = vmatpush.msra.mxu0 0.0
  %130 = vmatpush.msra.mxu0 0.0
  %131 = vmatpush.msra.mxu0 0.0
  %132 = vmatpush.msra.mxu0 0.0
  %133 = vmatpush.msra.mxu0 0.0
  %134 = vmatpush.msra.mxu0 0.0
  %135 = vmatpush.msra.mxu0 %v122
  %136 = vmatpush.msra.mxu0 %v121
  %137 = vmatpush.msra.mxu0 %v120
  %138 = vmatpush.msra.mxu0 %v119
  %139 = vmatmul.f32.gmra.mxu0 %v55
  %v140 = vpop.f32.mrf.mxu0
  %v141 = vadd.f32 0.0, %v140
  %142 = vmatmul.f32.gmra.mxu0 %v58
  %v143 = vpop.f32.mrf.mxu0
  %v144 = vadd.f32 0.0, %v143
  %145 = vmatmul.f32.gmra.mxu0 %v61
  %v146 = vpop.f32.mrf.mxu0
  %v147 = vadd.f32 0.0, %v146
  %148 = vmatmul.f32.gmra.mxu0 %v64
  %v149 = vpop.f32.mrf.mxu0
  %v150 = vadd.f32 0.0, %v149
  %151 = vmatmul.f32.gmra.mxu0 %v67
  %v152 = vpop.f32.mrf.mxu0
  %v153 = vadd.f32 0.0, %v152
  %154 = vmatmul.f32.gmra.mxu0 %v70
  %v155 = vpop.f32.mrf.mxu0
  %v156 = vadd.f32 0.0, %v155
  %157 = vmatmul.f32.gmra.mxu0 %v73
  %v158 = vpop.f32.mrf.mxu0
  %v159 = vadd.f32 0.0, %v158
  %160 = vmatmul.f32.gmra.mxu0 %v76
  %v161 = vpop.f32.mrf.mxu0
  %v162 = vadd.f32 0.0, %v161
  %163 = vdwg.mxu0
  %v164 = vld [vmem:[%s3] sm:$0x1]
  %v166 = vperm.slane %v164, 0
  %vm168 = vcmask 523264
  %v170 = vsel %vm168, %v37, 0
  %v173 = vsel %vm168, %v38, 0
  %v176 = vsel %vm168, %v39, 0
  %v179 = vsel %vm168, %v40, 0
  %v182 = vsel %vm168, %v41, 0
  %v185 = vsel %vm168, %v42, 0
  %v188 = vsel %vm168, %v43, 0
  %v191 = vsel %vm168, %v44, 0
  %193 = vmatpush.msra.mxu0 0.0
  %194 = vmatpush.msra.mxu0 0.0
  %195 = vmatpush.msra.mxu0 0.0
  %196 = vmatpush.msra.mxu0 0.0
  %197 = vmatpush.msra.mxu0 0.0
  %198 = vmatpush.msra.mxu0 0.0
  %199 = vmatpush.msra.mxu0 0.0
  %200 = vmatpush.msra.mxu0 0.0
  %201 = vmatpush.msra.mxu0 %v162
  %202 = vmatpush.msra.mxu0 %v159
  %203 = vmatpush.msra.mxu0 %v156
  %204 = vmatpush.msra.mxu0 %v153
  %205 = vmatpush.msra.mxu0 %v150
  %206 = vmatpush.msra.mxu0 %v147
  %207 = vmatpush.msra.mxu0 %v144
  %208 = vmatpush.msra.mxu0 %v141
  %209 = vmatmul.f32.gmra.mxu0 %v170
  %v210 = vpop.f32.mrf.mxu0
  %v211 = vadd.f32 %v166, %v210
  %212 = vmatmul.f32.gmra.mxu0 %v173
  %v213 = vpop.f32.mrf.mxu0
  %v214 = vadd.f32 %v166, %v213
  %215 = vmatmul.f32.gmra.mxu0 %v176
  %v216 = vpop.f32.mrf.mxu0
  %v217 = vadd.f32 %v166, %v216
  %218 = vmatmul.f32.gmra.mxu0 %v179
  %v219 = vpop.f32.mrf.mxu0
  %v220 = vadd.f32 %v166, %v219
  %221 = vmatmul.f32.gmra.mxu0 %v182
  %v222 = vpop.f32.mrf.mxu0
  %v223 = vadd.f32 %v166, %v222
  %224 = vmatmul.f32.gmra.mxu0 %v185
  %v225 = vpop.f32.mrf.mxu0
  %v226 = vadd.f32 %v166, %v225
  %227 = vmatmul.f32.gmra.mxu0 %v188
  %v228 = vpop.f32.mrf.mxu0
  %v229 = vadd.f32 %v166, %v228
  %230 = vmatmul.f32.gmra.mxu0 %v191
  %v231 = vpop.f32.mrf.mxu0
  %v232 = vadd.f32 %v166, %v231
  %233 = vdwg.mxu0
  %v234 = vmax.f32 %v211, 0.0
  %v235 = vmax.f32 %v214, 0.0
  %v236 = vmax.f32 %v217, 0.0
  %v237 = vmax.f32 %v220, 0.0
  %v238 = vmax.f32 %v223, 0.0
  %v239 = vmax.f32 %v226, 0.0
  %v240 = vmax.f32 %v229, 0.0
  %v241 = vmax.f32 %v232, 0.0
  %v242 = vld [vmem:[%s4] sm:$0xff]
  %v243 = vld [vmem:[%s4 + $0x8] sm:$0xff]
  %v244 = vld [vmem:[%s4 + $0x10] sm:$0xff]
  %v245 = vld [vmem:[%s4 + $0x18] sm:$0xff]
  %v247 = vsel %vm53, %v234, 0
  %v250 = vsel %vm53, %v235, 0
  %v253 = vsel %vm53, %v236, 0
  %v256 = vsel %vm53, %v237, 0
  %v259 = vsel %vm53, %v238, 0
  %v262 = vsel %vm53, %v239, 0
  %v265 = vsel %vm53, %v240, 0
  %v268 = vsel %vm53, %v241, 0
  %270 = vmatpush.msra.mxu0 0.0
  %271 = vmatpush.msra.mxu0 0.0
  %272 = vmatpush.msra.mxu0 0.0
  %273 = vmatpush.msra.mxu0 0.0
  %274 = vmatpush.msra.mxu0 0.0
  %275 = vmatpush.msra.mxu0 0.0
  %276 = vmatpush.msra.mxu0 0.0
  %277 = vmatpush.msra.mxu0 0.0
  %278 = vmatpush.msra.mxu0 0.0
  %279 = vmatpush.msra.mxu0 0.0
  %280 = vmatpush.msra.mxu0 0.0
  %281 = vmatpush.msra.mxu0 0.0
  %282 = vmatpush.msra.mxu0 %v245
  %283 = vmatpush.msra.mxu0 %v244
  %284 = vmatpush.msra.mxu0 %v243
  %285 = vmatpush.msra.mxu0 %v242
  %286 = vmatmul.f32.gmra.mxu0 %v247
  %v287 = vpop.f32.mrf.mxu0
  %v288 = vadd.f32 0.0, %v287
  %289 = vmatmul.f32.gmra.mxu0 %v250
  %v290 = vpop.f32.mrf.mxu0
  %v291 = vadd.f32 0.0, %v290
  %292 = vmatmul.f32.gmra.mxu0 %v253
  %v293 = vpop.f32.mrf.mxu0
  %v294 = vadd.f32 0.0, %v293
  %295 = vmatmul.f32.gmra.mxu0 %v256
  %v296 = vpop.f32.mrf.mxu0
  %v297 = vadd.f32 0.0, %v296
  %298 = vmatmul.f32.gmra.mxu0 %v259
  %v299 = vpop.f32.mrf.mxu0
  %v300 = vadd.f32 0.0, %v299
  %301 = vmatmul.f32.gmra.mxu0 %v262
  %v302 = vpop.f32.mrf.mxu0
  %v303 = vadd.f32 0.0, %v302
  %304 = vmatmul.f32.gmra.mxu0 %v265
  %v305 = vpop.f32.mrf.mxu0
  %v306 = vadd.f32 0.0, %v305
  %307 = vmatmul.f32.gmra.mxu0 %v268
  %v308 = vpop.f32.mrf.mxu0
  %v309 = vadd.f32 0.0, %v308
  %310 = vdwg.mxu0
  %v311 = vld [vmem:[%s5] sm:$0x1]
  %v313 = vperm.slane %v311, 0
  %315 = vmatpush.msra.mxu0 0.0
  %316 = vmatpush.msra.mxu0 0.0
  %317 = vmatpush.msra.mxu0 0.0
  %318 = vmatpush.msra.mxu0 0.0
  %319 = vmatpush.msra.mxu0 0.0
  %320 = vmatpush.msra.mxu0 0.0
  %321 = vmatpush.msra.mxu0 0.0
  %322 = vmatpush.msra.mxu0 0.0
  %323 = vmatpush.msra.mxu0 %v309
  %324 = vmatpush.msra.mxu0 %v306
  %325 = vmatpush.msra.mxu0 %v303
  %326 = vmatpush.msra.mxu0 %v300
  %327 = vmatpush.msra.mxu0 %v297
  %328 = vmatpush.msra.mxu0 %v294
  %329 = vmatpush.msra.mxu0 %v291
  %330 = vmatpush.msra.mxu0 %v288
  %331 = vmatmul.f32.gmra.mxu0 %v170
  %v332 = vpop.f32.mrf.mxu0
  %v333 = vadd.f32 %v313, %v332
  %334 = vmatmul.f32.gmra.mxu0 %v173
  %v335 = vpop.f32.mrf.mxu0
  %v336 = vadd.f32 %v313, %v335
  %337 = vmatmul.f32.gmra.mxu0 %v176
  %v338 = vpop.f32.mrf.mxu0
  %v339 = vadd.f32 %v313, %v338
  %340 = vmatmul.f32.gmra.mxu0 %v179
  %v341 = vpop.f32.mrf.mxu0
  %v342 = vadd.f32 %v313, %v341
  %343 = vmatmul.f32.gmra.mxu0 %v182
  %v344 = vpop.f32.mrf.mxu0
  %v345 = vadd.f32 %v313, %v344
  %346 = vmatmul.f32.gmra.mxu0 %v185
  %v347 = vpop.f32.mrf.mxu0
  %v348 = vadd.f32 %v313, %v347
  %349 = vmatmul.f32.gmra.mxu0 %v188
  %v350 = vpop.f32.mrf.mxu0
  %v351 = vadd.f32 %v313, %v350
  %352 = vmatmul.f32.gmra.mxu0 %v191
  %v353 = vpop.f32.mrf.mxu0
  %v354 = vadd.f32 %v313, %v353
  %355 = vdwg.mxu0
  %v356 = vadd.f32 %v333, %v96
  %v357 = vadd.f32 %v336, %v99
  %v358 = vadd.f32 %v339, %v102
  %v359 = vadd.f32 %v342, %v105
  %v360 = vadd.f32 %v345, %v108
  %v361 = vadd.f32 %v348, %v111
  %v362 = vadd.f32 %v351, %v114
  %v363 = vadd.f32 %v354, %v117
  %vm364 = vcmask 130048
  %365 = vst.msk [vmem:[%s8] sm:$0xff] %vm364, %v356
  %366 = vst.msk [vmem:[%s8 + $0x8] sm:$0xff] %vm364, %v357
  %367 = vst.msk [vmem:[%s8 + $0x10] sm:$0xff] %vm364, %v358
  %368 = vst.msk [vmem:[%s8 + $0x18] sm:$0xff] %vm364, %v359
  %369 = vst.msk [vmem:[%s8 + $0x20] sm:$0xff] %vm364, %v360
  %370 = vst.msk [vmem:[%s8 + $0x28] sm:$0xff] %vm364, %v361
  %371 = vst.msk [vmem:[%s8 + $0x30] sm:$0xff] %vm364, %v362
  %372 = vst.msk [vmem:[%s8 + $0x38] sm:$0xff] %vm364, %v363
  // Predicated region
  $region34: #{my_new_gcn_forward.3} parent=0 // pred_check
    _
  $region35: #{my_new_gcn_forward.3} parent=0 // pred_check_branch
    %374 = sbr.rel (0) target = $region37
  $region36: #{my_new_gcn_forward.3} parent=0 // pred_region
    _
  $region37: #{my_new_gcn_forward.3} parent=0 // pred_fallthru
    _
  // Predicated region
  $region38: #{my_new_gcn_forward.3} parent=0 // pred_check
    _
  $region39: #{my_new_gcn_forward.3} parent=0 // pred_check_branch
    %376 = sbr.rel (0) target = $region41
  $region40: #{my_new_gcn_forward.3} parent=0 // pred_region
    _
  $region41: #{my_new_gcn_forward.3} parent=0 // pred_fallthru
    _

// kernel: my_new_gcn_forward.5
$region0: #{my_new_gcn_forward.5}
  #allocation0 [shape = 'u32[]', space=smem, size = 0x4, offset = 0x4, fixed_abs, tag = 'smem constant byte address 0x4 - core index']
  #allocation1 [shape = 'u32[72,128]{1,0:T(1,128)}', space=vmem, size = 0x9000, scoped, tag = 'internal scratch']
  #allocation2 [shape = 'f32[1,1]{1,0:T(1,128)S(1)}', space=vmem, size = 0x200, scoped, tag = 'scoped memory for my_new_gcn_forward.5']
  %s0 = inlined_call_operand.vmem [shape: f32[8,8,16], index: 0, kind: input, shape index: {}]
  %s1 = inlined_call_operand.vmem [shape: f32[8,8,16], index: 1, kind: input, shape index: {}]
  %s2 = inlined_call_operand.vmem [shape: f32[8,32], index: 2, kind: input, shape index: {}]
  %s3 = inlined_call_operand.vmem [shape: f32[8,32], index: 3, kind: input, shape index: {}]
  %s4 = inlined_call_operand.vmem [shape: f32[32,64], index: 4, kind: input, shape index: {}]
  %s5 = inlined_call_operand.vmem [shape: f32[16,64], index: 5, kind: input, shape index: {}]
  %s6 = inlined_call_operand.vmem [shape: f32[1,64], index: 6, kind: input, shape index: {}]
  %s7 = inlined_call_operand.vmem [shape: f32[128,16], index: 7, kind: input, shape index: {}]
  %s8 = inlined_call_operand.vmem [shape: f32[1,16], index: 8, kind: input, shape index: {}]
  %s9 = inlined_call_operand.vmem [shape: f32[16,64], index: 9, kind: input, shape index: {}]
  %s10 = inlined_call_operand.vmem [shape: f32[1,64], index: 10, kind: input, shape index: {}]
  %s11 = inlined_call_operand.vmem [shape: f32[64,32], index: 11, kind: input, shape index: {}]
  %s12 = inlined_call_operand.vmem [shape: f32[1,32], index: 12, kind: input, shape index: {}]
  %s13 = inlined_call_operand.vmem [shape: f32[32,1], index: 13, kind: input, shape index: {}]
  %s14 = inlined_call_operand.<no memory space> [shape: f32[1,1], index: 14, kind: input, shape index: {}]
  %s15 = inlined_call_operand.vmem [shape: f32[8,1], index: 15, kind: output, shape index: {}]
  %s16 = sld [smem:[#allocation0]]
  $region70: #{my_new_gcn_forward.5} parent=0
    _
  %s18 = ssub.s32 1, %s16
  %s19 = scalar_select 0, %s18, %s16
  %v20 = vstv %s14
  %21 = vst [vmem:[#allocation2] sm:$0x1] %v20
  // Predicated region
  $region2: #{my_new_gcn_forward.5} parent=0 // pred_check
    _
  $region3: #{my_new_gcn_forward.5} parent=0 // pred_check_branch
    %23 = sbr.rel (0) target = $region5
  $region4: #{my_new_gcn_forward.5} parent=0 // pred_region
    _
  $region5: #{my_new_gcn_forward.5} parent=0 // pred_fallthru
    _
  // Predicated region
  $region6: #{my_new_gcn_forward.5} parent=0 // pred_check
    _
  $region7: #{my_new_gcn_forward.5} parent=0 // pred_check_branch
    %25 = sbr.rel (0) target = $region9
  $region8: #{my_new_gcn_forward.5} parent=0 // pred_region
    _
  $region9: #{my_new_gcn_forward.5} parent=0 // pred_fallthru
    _
  // Predicated region
  $region10: #{my_new_gcn_forward.5} parent=0 // pred_check
    _
  $region11: #{my_new_gcn_forward.5} parent=0 // pred_check_branch
    %27 = sbr.rel (0) target = $region13
  $region12: #{my_new_gcn_forward.5} parent=0 // pred_region
    _
  $region13: #{my_new_gcn_forward.5} parent=0 // pred_fallthru
    _
  // Predicated region
  $region14: #{my_new_gcn_forward.5} parent=0 // pred_check
    _
  $region15: #{my_new_gcn_forward.5} parent=0 // pred_check_branch
    %29 = sbr.rel (0) target = $region17
  $region16: #{my_new_gcn_forward.5} parent=0 // pred_region
    _
  $region17: #{my_new_gcn_forward.5} parent=0 // pred_fallthru
    _
  // Predicated region
  $region18: #{my_new_gcn_forward.5} parent=0 // pred_check
    _
  $region19: #{my_new_gcn_forward.5} parent=0 // pred_check_branch
    %31 = sbr.rel (0) target = $region21
  $region20: #{my_new_gcn_forward.5} parent=0 // pred_region
    _
  $region21: #{my_new_gcn_forward.5} parent=0 // pred_fallthru
    _
  // Predicated region
  $region22: #{my_new_gcn_forward.5} parent=0 // pred_check
    _
  $region23: #{my_new_gcn_forward.5} parent=0 // pred_check_branch
    %33 = sbr.rel (0) target = $region25
  $region24: #{my_new_gcn_forward.5} parent=0 // pred_region
    _
  $region25: #{my_new_gcn_forward.5} parent=0 // pred_fallthru
    _
  // Predicated region
  $region26: #{my_new_gcn_forward.5} parent=0 // pred_check
    _
  $region27: #{my_new_gcn_forward.5} parent=0 // pred_check_branch
    %35 = sbr.rel (0) target = $region29
  $region28: #{my_new_gcn_forward.5} parent=0 // pred_region
    _
  $region29: #{my_new_gcn_forward.5} parent=0 // pred_fallthru
    _
  // Predicated region
  $region30: #{my_new_gcn_forward.5} parent=0 // pred_check
    _
  $region31: #{my_new_gcn_forward.5} parent=0 // pred_check_branch
    %37 = sbr.rel (0) target = $region33
  $region32: #{my_new_gcn_forward.5} parent=0 // pred_region
    _
  $region33: #{my_new_gcn_forward.5} parent=0 // pred_fallthru
    _
  // Predicated region
  $region34: #{my_new_gcn_forward.5} parent=0 // pred_check
    _
  $region35: #{my_new_gcn_forward.5} parent=0 // pred_check_branch
    %39 = sbr.rel (0) target = $region37
  $region36: #{my_new_gcn_forward.5} parent=0 // pred_region
    _
  $region37: #{my_new_gcn_forward.5} parent=0 // pred_fallthru
    _
  // Predicated region
  $region38: #{my_new_gcn_forward.5} parent=0 // pred_check
    _
  $region39: #{my_new_gcn_forward.5} parent=0 // pred_check_branch
    %41 = sbr.rel (0) target = $region41
  $region40: #{my_new_gcn_forward.5} parent=0 // pred_region
    _
  $region41: #{my_new_gcn_forward.5} parent=0 // pred_fallthru
    _
  // Predicated region
  $region42: #{my_new_gcn_forward.5} parent=0 // pred_check
    _
  $region43: #{my_new_gcn_forward.5} parent=0 // pred_check_branch
    %43 = sbr.rel (0) target = $region45
  $region44: #{my_new_gcn_forward.5} parent=0 // pred_region
    _
  $region45: #{my_new_gcn_forward.5} parent=0 // pred_fallthru
    _
  // Predicated region
  $region46: #{my_new_gcn_forward.5} parent=0 // pred_check
    _
  $region47: #{my_new_gcn_forward.5} parent=0 // pred_check_branch
    %45 = sbr.rel (0) target = $region49
  $region48: #{my_new_gcn_forward.5} parent=0 // pred_region
    _
  $region49: #{my_new_gcn_forward.5} parent=0 // pred_fallthru
    _
  // Predicated region
  $region50: #{my_new_gcn_forward.5} parent=0 // pred_check
    _
  $region51: #{my_new_gcn_forward.5} parent=0 // pred_check_branch
    %47 = sbr.rel (0) target = $region53
  $region52: #{my_new_gcn_forward.5} parent=0 // pred_region
    _
  $region53: #{my_new_gcn_forward.5} parent=0 // pred_fallthru
    _
  // Predicated region
  $region54: #{my_new_gcn_forward.5} parent=0 // pred_check
    _
  $region55: #{my_new_gcn_forward.5} parent=0 // pred_check_branch
    %49 = sbr.rel (0) target = $region57
  $region56: #{my_new_gcn_forward.5} parent=0 // pred_region
    _
  $region57: #{my_new_gcn_forward.5} parent=0 // pred_fallthru
    _
  // Predicated region
  $region58: #{my_new_gcn_forward.5} parent=0 // pred_check
    _
  $region59: #{my_new_gcn_forward.5} parent=0 // pred_check_branch
    %51 = sbr.rel (0) target = $region61
  $region60: #{my_new_gcn_forward.5} parent=0 // pred_region
    _
  $region61: #{my_new_gcn_forward.5} parent=0 // pred_fallthru
    _
  %v52 = vld [vmem:[%s4] sm:$0xff]
  %v53 = vld [vmem:[%s4 + $0x8] sm:$0xff]
  %v54 = vld [vmem:[%s4 + $0x10] sm:$0xff]
  %v55 = vld [vmem:[%s4 + $0x18] sm:$0xff]
  %v56 = vld [vmem:[%s5] sm:$0xff]
  %v57 = vld [vmem:[%s5 + $0x8] sm:$0xff]
  %v58 = vld [vmem:[%s6] sm:$0x1]
  %v59 = vld [vmem:[%s0] sm:$0xff]
  %v60 = vld [vmem:[%s0 + $0x8] sm:$0xff]
  %v61 = vld [vmem:[%s0 + $0x10] sm:$0xff]
  %v62 = vld [vmem:[%s0 + $0x18] sm:$0xff]
  %v63 = vld [vmem:[%s0 + $0x20] sm:$0xff]
  %v64 = vld [vmem:[%s0 + $0x28] sm:$0xff]
  %v65 = vld [vmem:[%s0 + $0x30] sm:$0xff]
  %v66 = vld [vmem:[%s0 + $0x38] sm:$0xff]
  %vm67 = vcmask 130048
  %v69 = vsel %vm67, 0.0, 0
  %71 = vmatpush.msra.mxu0 0.0
  %72 = vmatpush.msra.mxu0 0.0
  %73 = vmatpush.msra.mxu0 0.0
  %74 = vmatpush.msra.mxu0 0.0
  %75 = vmatpush.msra.mxu0 0.0
  %76 = vmatpush.msra.mxu0 0.0
  %77 = vmatpush.msra.mxu0 0.0
  %78 = vmatpush.msra.mxu0 0.0
  %79 = vmatpush.msra.mxu0 0.0
  %80 = vmatpush.msra.mxu0 0.0
  %81 = vmatpush.msra.mxu0 0.0
  %82 = vmatpush.msra.mxu0 0.0
  %83 = vmatpush.msra.mxu0 0.0
  %84 = vmatpush.msra.mxu0 0.0
  %85 = vmatpush.msra.mxu0 %v57
  %86 = vmatpush.msra.mxu0 %v56
  %87 = vmatmul.f32.gmra.mxu0 %v69
  %v88 = vpop.f32.mrf.mxu0
  %v89 = vadd.f32 0.0, %v88
  %90 = vdwg.mxu0
  %vm91 = vcmask 261120
  %v92 = vsel %vm91, 0.0, 0
  %94 = vmatpush.msra.mxu0 0.0
  %95 = vmatpush.msra.mxu0 0.0
  %96 = vmatpush.msra.mxu0 0.0
  %97 = vmatpush.msra.mxu0 0.0
  %98 = vmatpush.msra.mxu0 0.0
  %99 = vmatpush.msra.mxu0 0.0
  %100 = vmatpush.msra.mxu0 0.0
  %101 = vmatpush.msra.mxu0 0.0
  %102 = vmatpush.msra.mxu0 0.0
  %103 = vmatpush.msra.mxu0 0.0
  %104 = vmatpush.msra.mxu0 0.0
  %105 = vmatpush.msra.mxu0 0.0
  %106 = vmatpush.msra.mxu0 %v55
  %107 = vmatpush.msra.mxu0 %v54
  %108 = vmatpush.msra.mxu0 %v53
  %109 = vmatpush.msra.mxu0 %v52
  %110 = vmatmul.f32.gmra.mxu0 %v92
  %v111 = vpop.f32.mrf.mxu0
  %v112 = vadd.f32 %v89, %v111
  %113 = vdwg.mxu0
  %v115 = vperm.slane %v58, 0
  %v117 = vadd.f32 %v112, %v115
  %v118 = vxor.u32 %v117, 2147483648
  %v119 = vmul.f32 %v118, 1.442695
  %v120 = vpow.pop %v119
  %v121 = vadd.f32 %v120, 1.0
  %v122 = vrcp.pop %v121
  %v123 = vmul.f32 %v121, %v122
  %v124 = vsub.f32 1.0, %v123
  %v125 = vmul.f32 %v122, %v124
  %v126 = vadd.f32 %v122, %v125
  %vm127 = vweird.f32 %v121
  %vm128 = vweird.f32 %v122
  %vm129 = vmor %vm127, %vm128
  %v130 = vsel %vm129, %v122, %v126
  %v131 = vand.u32 2147483647, %v121
  %vm132 = vcmp.eq.f32.partialorder %v131, 8.507059e+37
  %v133 = vand.u32 %v121, 2147483648
  %v134 = vor.u32 1.1754944e-38, %v133
  %v135 = vsel %vm132, %v134, %v130
  %v136 = vmul.f32 1.0, %v135
  %v137 = vtanh.pop %v117
  %v138 = vmul.f32 %v136, 0.0
  %140 = vrot.lane.b32.xlu0 %v137, 96
  %v141 = vpop.permute.xlu0 %140
  %v143 = vmul.f32 %v136, %v141
  %145 = vrot.lane.b32.xlu0 %v143, 16
  %v146 = vpop.permute.xlu0 %145
  %v148 = vadd.f32 %v138, %v146
  %v149 = vtanh.pop %v148
  %151 = vrot.lane.b32.xlu0 %v149, 32
  %v152 = vpop.permute.xlu0 %151
  %v154 = vmul.f32 %v136, %v152
  %v156 = vrot.slane %v154, 1
  %v157 = vrot.slane %v154, 2
  %v158 = vrot.slane %v154, 3
  %v159 = vrot.slane %v154, 4
  %v160 = vrot.slane %v154, 5
  %v161 = vrot.slane %v154, 6
  %v162 = vrot.slane %v154, 7
  %v163 = vperm.slane %v154, 0
  %164 = vrot.lane.b32.xlu0 %v163, 80
  %v165 = vpop.permute.xlu0 %164
  %v166 = vsel %vm67, %v165, 0
  %v169 = vsel %vm67, %v59, 0
  %171 = vmatpush.xpose.msra.mxu0 0.0
  %172 = vmatpush.xpose.msra.mxu0 0.0
  %173 = vmatpush.xpose.msra.mxu0 0.0
  %174 = vmatpush.xpose.msra.mxu0 0.0
  %175 = vmatpush.xpose.msra.mxu0 0.0
  %176 = vmatpush.xpose.msra.mxu0 0.0
  %177 = vmatpush.xpose.msra.mxu0 0.0
  %178 = vmatpush.xpose.msra.mxu0 0.0
  %179 = vmatpush.xpose.msra.mxu0 0.0
  %180 = vmatpush.xpose.msra.mxu0 0.0
  %181 = vmatpush.xpose.msra.mxu0 0.0
  %182 = vmatpush.xpose.msra.mxu0 0.0
  %183 = vmatpush.xpose.msra.mxu0 0.0
  %184 = vmatpush.xpose.msra.mxu0 0.0
  %185 = vmatpush.xpose.msra.mxu0 0.0
  %186 = vmatpush.xpose.msra.mxu0 %v169
  %187 = vmatmul.f32.gmra.mxu0 %v166
  %v188 = vpop.f32.mrf.mxu0
  %v189 = vadd.f32 0.0, %v188
  %190 = vdwg.mxu0
  %v191 = vperm.slane %v156, 0
  %192 = vrot.lane.b32.xlu0 %v191, 80
  %v193 = vpop.permute.xlu0 %192
  %v194 = vsel %vm67, %v193, 0
  %v197 = vsel %vm67, %v60, 0
  %199 = vmatpush.xpose.msra.mxu0 0.0
  %200 = vmatpush.xpose.msra.mxu0 0.0
  %201 = vmatpush.xpose.msra.mxu0 0.0
  %202 = vmatpush.xpose.msra.mxu0 0.0
  %203 = vmatpush.xpose.msra.mxu0 0.0
  %204 = vmatpush.xpose.msra.mxu0 0.0
  %205 = vmatpush.xpose.msra.mxu0 0.0
  %206 = vmatpush.xpose.msra.mxu0 0.0
  %207 = vmatpush.xpose.msra.mxu0 0.0
  %208 = vmatpush.xpose.msra.mxu0 0.0
  %209 = vmatpush.xpose.msra.mxu0 0.0
  %210 = vmatpush.xpose.msra.mxu0 0.0
  %211 = vmatpush.xpose.msra.mxu0 0.0
  %212 = vmatpush.xpose.msra.mxu0 0.0
  %213 = vmatpush.xpose.msra.mxu0 0.0
  %214 = vmatpush.xpose.msra.mxu0 %v197
  %215 = vmatmul.f32.gmra.mxu0 %v194
  %v216 = vpop.f32.mrf.mxu0
  %v217 = vadd.f32 0.0, %v216
  %218 = vdwg.mxu0
  %v219 = vperm.slane %v157, 0
  %220 = vrot.lane.b32.xlu0 %v219, 80
  %v221 = vpop.permute.xlu0 %220
  %v222 = vsel %vm67, %v221, 0
  %v225 = vsel %vm67, %v61, 0
  %227 = vmatpush.xpose.msra.mxu0 0.0
  %228 = vmatpush.xpose.msra.mxu0 0.0
  %229 = vmatpush.xpose.msra.mxu0 0.0
  %230 = vmatpush.xpose.msra.mxu0 0.0
  %231 = vmatpush.xpose.msra.mxu0 0.0
  %232 = vmatpush.xpose.msra.mxu0 0.0
  %233 = vmatpush.xpose.msra.mxu0 0.0
  %234 = vmatpush.xpose.msra.mxu0 0.0
  %235 = vmatpush.xpose.msra.mxu0 0.0
  %236 = vmatpush.xpose.msra.mxu0 0.0
  %237 = vmatpush.xpose.msra.mxu0 0.0
  %238 = vmatpush.xpose.msra.mxu0 0.0
  %239 = vmatpush.xpose.msra.mxu0 0.0
  %240 = vmatpush.xpose.msra.mxu0 0.0
  %241 = vmatpush.xpose.msra.mxu0 0.0
  %242 = vmatpush.xpose.msra.mxu0 %v225
  %243 = vmatmul.f32.gmra.mxu0 %v222
  %v244 = vpop.f32.mrf.mxu0
  %v245 = vadd.f32 0.0, %v244
  %246 = vdwg.mxu0
  %v247 = vperm.slane %v158, 0
  %248 = vrot.lane.b32.xlu0 %v247, 80
  %v249 = vpop.permute.xlu0 %248
  %v250 = vsel %vm67, %v249, 0
  %v253 = vsel %vm67, %v62, 0
  %255 = vmatpush.xpose.msra.mxu0 0.0
  %256 = vmatpush.xpose.msra.mxu0 0.0
  %257 = vmatpush.xpose.msra.mxu0 0.0
  %258 = vmatpush.xpose.msra.mxu0 0.0
  %259 = vmatpush.xpose.msra.mxu0 0.0
  %260 = vmatpush.xpose.msra.mxu0 0.0
  %261 = vmatpush.xpose.msra.mxu0 0.0
  %262 = vmatpush.xpose.msra.mxu0 0.0
  %263 = vmatpush.xpose.msra.mxu0 0.0
  %264 = vmatpush.xpose.msra.mxu0 0.0
  %265 = vmatpush.xpose.msra.mxu0 0.0
  %266 = vmatpush.xpose.msra.mxu0 0.0
  %267 = vmatpush.xpose.msra.mxu0 0.0
  %268 = vmatpush.xpose.msra.mxu0 0.0
  %269 = vmatpush.xpose.msra.mxu0 0.0
  %270 = vmatpush.xpose.msra.mxu0 %v253
  %271 = vmatmul.f32.gmra.mxu0 %v250
  %v272 = vpop.f32.mrf.mxu0
  %v273 = vadd.f32 0.0, %v272
  %274 = vdwg.mxu0
  %v275 = vperm.slane %v159, 0
  %276 = vrot.lane.b32.xlu0 %v275, 80
  %v277 = vpop.permute.xlu0 %276
  %v278 = vsel %vm67, %v277, 0
  %v281 = vsel %vm67, %v63, 0
  %283 = vmatpush.xpose.msra.mxu0 0.0
  %284 = vmatpush.xpose.msra.mxu0 0.0
  %285 = vmatpush.xpose.msra.mxu0 0.0
  %286 = vmatpush.xpose.msra.mxu0 0.0
  %287 = vmatpush.xpose.msra.mxu0 0.0
  %288 = vmatpush.xpose.msra.mxu0 0.0
  %289 = vmatpush.xpose.msra.mxu0 0.0
  %290 = vmatpush.xpose.msra.mxu0 0.0
  %291 = vmatpush.xpose.msra.mxu0 0.0
  %292 = vmatpush.xpose.msra.mxu0 0.0
  %293 = vmatpush.xpose.msra.mxu0 0.0
  %294 = vmatpush.xpose.msra.mxu0 0.0
  %295 = vmatpush.xpose.msra.mxu0 0.0
  %296 = vmatpush.xpose.msra.mxu0 0.0
  %297 = vmatpush.xpose.msra.mxu0 0.0
  %298 = vmatpush.xpose.msra.mxu0 %v281
  %299 = vmatmul.f32.gmra.mxu0 %v278
  %v300 = vpop.f32.mrf.mxu0
  %v301 = vadd.f32 0.0, %v300
  %302 = vdwg.mxu0
  %v303 = vperm.slane %v160, 0
  %304 = vrot.lane.b32.xlu0 %v303, 80
  %v305 = vpop.permute.xlu0 %304
  %v306 = vsel %vm67, %v305, 0
  %v309 = vsel %vm67, %v64, 0
  %311 = vmatpush.xpose.msra.mxu0 0.0
  %312 = vmatpush.xpose.msra.mxu0 0.0
  %313 = vmatpush.xpose.msra.mxu0 0.0
  %314 = vmatpush.xpose.msra.mxu0 0.0
  %315 = vmatpush.xpose.msra.mxu0 0.0
  %316 = vmatpush.xpose.msra.mxu0 0.0
  %317 = vmatpush.xpose.msra.mxu0 0.0
  %318 = vmatpush.xpose.msra.mxu0 0.0
  %319 = vmatpush.xpose.msra.mxu0 0.0
  %320 = vmatpush.xpose.msra.mxu0 0.0
  %321 = vmatpush.xpose.msra.mxu0 0.0
  %322 = vmatpush.xpose.msra.mxu0 0.0
  %323 = vmatpush.xpose.msra.mxu0 0.0
  %324 = vmatpush.xpose.msra.mxu0 0.0
  %325 = vmatpush.xpose.msra.mxu0 0.0
  %326 = vmatpush.xpose.msra.mxu0 %v309
  %327 = vmatmul.f32.gmra.mxu0 %v306
  %v328 = vpop.f32.mrf.mxu0
  %v329 = vadd.f32 0.0, %v328
  %330 = vdwg.mxu0
  %v331 = vperm.slane %v161, 0
  %332 = vrot.lane.b32.xlu0 %v331, 80
  %v333 = vpop.permute.xlu0 %332
  %v334 = vsel %vm67, %v333, 0
  %v337 = vsel %vm67, %v65, 0
  %339 = vmatpush.xpose.msra.mxu0 0.0
  %340 = vmatpush.xpose.msra.mxu0 0.0
  %341 = vmatpush.xpose.msra.mxu0 0.0
  %342 = vmatpush.xpose.msra.mxu0 0.0
  %343 = vmatpush.xpose.msra.mxu0 0.0
  %344 = vmatpush.xpose.msra.mxu0 0.0
  %345 = vmatpush.xpose.msra.mxu0 0.0
  %346 = vmatpush.xpose.msra.mxu0 0.0
  %347 = vmatpush.xpose.msra.mxu0 0.0
  %348 = vmatpush.xpose.msra.mxu0 0.0
  %349 = vmatpush.xpose.msra.mxu0 0.0
  %350 = vmatpush.xpose.msra.mxu0 0.0
  %351 = vmatpush.xpose.msra.mxu0 0.0
  %352 = vmatpush.xpose.msra.mxu0 0.0
  %353 = vmatpush.xpose.msra.mxu0 0.0
  %354 = vmatpush.xpose.msra.mxu0 %v337
  %355 = vmatmul.f32.gmra.mxu0 %v334
  %v356 = vpop.f32.mrf.mxu0
  %v357 = vadd.f32 0.0, %v356
  %358 = vdwg.mxu0
  %v359 = vperm.slane %v162, 0
  %360 = vrot.lane.b32.xlu0 %v359, 80
  %v361 = vpop.permute.xlu0 %360
  %v362 = vsel %vm67, %v361, 0
  %v365 = vsel %vm67, %v66, 0
  %367 = vmatpush.xpose.msra.mxu0 0.0
  %368 = vmatpush.xpose.msra.mxu0 0.0
  %369 = vmatpush.xpose.msra.mxu0 0.0
  %370 = vmatpush.xpose.msra.mxu0 0.0
  %371 = vmatpush.xpose.msra.mxu0 0.0
  %372 = vmatpush.xpose.msra.mxu0 0.0
  %373 = vmatpush.xpose.msra.mxu0 0.0
  %374 = vmatpush.xpose.msra.mxu0 0.0
  %375 = vmatpush.xpose.msra.mxu0 0.0
  %376 = vmatpush.xpose.msra.mxu0 0.0
  %377 = vmatpush.xpose.msra.mxu0 0.0
  %378 = vmatpush.xpose.msra.mxu0 0.0
  %379 = vmatpush.xpose.msra.mxu0 0.0
  %380 = vmatpush.xpose.msra.mxu0 0.0
  %381 = vmatpush.xpose.msra.mxu0 0.0
  %382 = vmatpush.xpose.msra.mxu0 %v365
  %383 = vmatmul.f32.gmra.mxu0 %v362
  %v384 = vpop.f32.mrf.mxu0
  %v385 = vadd.f32 0.0, %v384
  %386 = vdwg.mxu0
  %vm387 = vcmask 57344
  %v388 = vsel %vm387, %v189, -inf
  %389 = vmax.xlane.f32.xlu0 %v388
  %v390 = vpop.xlane.xlu0 %389
  %v391 = vsel %vm387, %v217, -inf
  %392 = vmax.xlane.f32.xlu0 %v391
  %v393 = vpop.xlane.xlu0 %392
  %v394 = vsel %vm387, %v245, -inf
  %395 = vmax.xlane.f32.xlu0 %v394
  %v396 = vpop.xlane.xlu0 %395
  %v397 = vsel %vm387, %v273, -inf
  %398 = vmax.xlane.f32.xlu0 %v397
  %v399 = vpop.xlane.xlu0 %398
  %v400 = vsel %vm387, %v301, -inf
  %401 = vmax.xlane.f32.xlu0 %v400
  %v402 = vpop.xlane.xlu0 %401
  %v403 = vsel %vm387, %v329, -inf
  %404 = vmax.xlane.f32.xlu0 %v403
  %v405 = vpop.xlane.xlu0 %404
  %v406 = vsel %vm387, %v357, -inf
  %407 = vmax.xlane.f32.xlu0 %v406
  %v408 = vpop.xlane.xlu0 %407
  %v409 = vsel %vm387, %v385, -inf
  %410 = vmax.xlane.f32.xlu0 %v409
  %v411 = vpop.xlane.xlu0 %410
  %v412 = vsub.f32 %v189, %v390
  %v413 = vsub.f32 %v217, %v393
  %v414 = vsub.f32 %v245, %v396
  %v415 = vsub.f32 %v273, %v399
  %v416 = vsub.f32 %v301, %v402
  %v417 = vsub.f32 %v329, %v405
  %v418 = vsub.f32 %v357, %v408
  %v419 = vsub.f32 %v385, %v411
  %v420 = vmul.f32 %v412, 1.442695
  %v421 = vpow.pop %v420
  %v422 = vmul.f32 %v413, 1.442695
  %v423 = vpow.pop %v422
  %v424 = vmul.f32 %v414, 1.442695
  %v425 = vpow.pop %v424
  %v426 = vmul.f32 %v415, 1.442695
  %v427 = vpow.pop %v426
  %v428 = vmul.f32 %v416, 1.442695
  %v429 = vpow.pop %v428
  %v430 = vmul.f32 %v417, 1.442695
  %v431 = vpow.pop %v430
  %v432 = vmul.f32 %v418, 1.442695
  %v433 = vpow.pop %v432
  %v434 = vmul.f32 %v419, 1.442695
  %v435 = vpow.pop %v434
  %v436 = vsel %vm387, %v421, 0.0
  %437 = vadd.xlane.f32.xlu0 %v436
  %v438 = vpop.xlane.xlu0 %437
  %v439 = vsel %vm387, %v423, 0.0
  %440 = vadd.xlane.f32.xlu0 %v439
  %v441 = vpop.xlane.xlu0 %440
  %v442 = vsel %vm387, %v425, 0.0
  %443 = vadd.xlane.f32.xlu0 %v442
  %v444 = vpop.xlane.xlu0 %443
  %v445 = vsel %vm387, %v427, 0.0
  %446 = vadd.xlane.f32.xlu0 %v445
  %v447 = vpop.xlane.xlu0 %446
  %v448 = vsel %vm387, %v429, 0.0
  %449 = vadd.xlane.f32.xlu0 %v448
  %v450 = vpop.xlane.xlu0 %449
  %v451 = vsel %vm387, %v431, 0.0
  %452 = vadd.xlane.f32.xlu0 %v451
  %v453 = vpop.xlane.xlu0 %452
  %v454 = vsel %vm387, %v433, 0.0
  %455 = vadd.xlane.f32.xlu0 %v454
  %v456 = vpop.xlane.xlu0 %455
  %v457 = vsel %vm387, %v435, 0.0
  %458 = vadd.xlane.f32.xlu0 %v457
  %v459 = vpop.xlane.xlu0 %458
  %v460 = vrcp.pop %v438
  %v461 = vmul.f32 %v438, %v460
  %v462 = vsub.f32 1.0, %v461
  %v463 = vmul.f32 %v460, %v462
  %v464 = vadd.f32 %v460, %v463
  %vm465 = vweird.f32 %v438
  %vm466 = vweird.f32 %v460
  %vm467 = vmor %vm465, %vm466
  %v468 = vsel %vm467, %v460, %v464
  %v469 = vand.u32 2147483647, %v438
  %vm470 = vcmp.eq.f32.partialorder %v469, 8.507059e+37
  %v471 = vand.u32 %v438, 2147483648
  %v472 = vor.u32 1.1754944e-38, %v471
  %v473 = vsel %vm470, %v472, %v468
  %v474 = vmul.f32 %v421, %v473
  %v475 = vrcp.pop %v441
  %v476 = vmul.f32 %v441, %v475
  %v477 = vsub.f32 1.0, %v476
  %v478 = vmul.f32 %v475, %v477
  %v479 = vadd.f32 %v475, %v478
  %vm480 = vweird.f32 %v441
  %vm481 = vweird.f32 %v475
  %vm482 = vmor %vm480, %vm481
  %v483 = vsel %vm482, %v475, %v479
  %v484 = vand.u32 2147483647, %v441
  %vm485 = vcmp.eq.f32.partialorder %v484, 8.507059e+37
  %v486 = vand.u32 %v441, 2147483648
  %v487 = vor.u32 1.1754944e-38, %v486
  %v488 = vsel %vm485, %v487, %v483
  %v489 = vmul.f32 %v423, %v488
  %v490 = vrcp.pop %v444
  %v491 = vmul.f32 %v444, %v490
  %v492 = vsub.f32 1.0, %v491
  %v493 = vmul.f32 %v490, %v492
  %v494 = vadd.f32 %v490, %v493
  %vm495 = vweird.f32 %v444
  %vm496 = vweird.f32 %v490
  %vm497 = vmor %vm495, %vm496
  %v498 = vsel %vm497, %v490, %v494
  %v499 = vand.u32 2147483647, %v444
  %vm500 = vcmp.eq.f32.partialorder %v499, 8.507059e+37
  %v501 = vand.u32 %v444, 2147483648
  %v502 = vor.u32 1.1754944e-38, %v501
  %v503 = vsel %vm500, %v502, %v498
  %v504 = vmul.f32 %v425, %v503
  %v505 = vrcp.pop %v447
  %v506 = vmul.f32 %v447, %v505
  %v507 = vsub.f32 1.0, %v506
  %v508 = vmul.f32 %v505, %v507
  %v509 = vadd.f32 %v505, %v508
  %vm510 = vweird.f32 %v447
  %vm511 = vweird.f32 %v505
  %vm512 = vmor %vm510, %vm511
  %v513 = vsel %vm512, %v505, %v509
  %v514 = vand.u32 2147483647, %v447
  %vm515 = vcmp.eq.f32.partialorder %v514, 8.507059e+37
  %v516 = vand.u32 %v447, 2147483648
  %v517 = vor.u32 1.1754944e-38, %v516
  %v518 = vsel %vm515, %v517, %v513
  %v519 = vmul.f32 %v427, %v518
  %v520 = vrcp.pop %v450
  %v521 = vmul.f32 %v450, %v520
  %v522 = vsub.f32 1.0, %v521
  %v523 = vmul.f32 %v520, %v522
  %v524 = vadd.f32 %v520, %v523
  %vm525 = vweird.f32 %v450
  %vm526 = vweird.f32 %v520
  %vm527 = vmor %vm525, %vm526
  %v528 = vsel %vm527, %v520, %v524
  %v529 = vand.u32 2147483647, %v450
  %vm530 = vcmp.eq.f32.partialorder %v529, 8.507059e+37
  %v531 = vand.u32 %v450, 2147483648
  %v532 = vor.u32 1.1754944e-38, %v531
  %v533 = vsel %vm530, %v532, %v528
  %v534 = vmul.f32 %v429, %v533
  %v535 = vrcp.pop %v453
  %v536 = vmul.f32 %v453, %v535
  %v537 = vsub.f32 1.0, %v536
  %v538 = vmul.f32 %v535, %v537
  %v539 = vadd.f32 %v535, %v538
  %vm540 = vweird.f32 %v453
  %vm541 = vweird.f32 %v535
  %vm542 = vmor %vm540, %vm541
  %v543 = vsel %vm542, %v535, %v539
  %v544 = vand.u32 2147483647, %v453
  %vm545 = vcmp.eq.f32.partialorder %v544, 8.507059e+37
  %v546 = vand.u32 %v453, 2147483648
  %v547 = vor.u32 1.1754944e-38, %v546
  %v548 = vsel %vm545, %v547, %v543
  %v549 = vmul.f32 %v431, %v548
  %v550 = vrcp.pop %v456
  %v551 = vmul.f32 %v456, %v550
  %v552 = vsub.f32 1.0, %v551
  %v553 = vmul.f32 %v550, %v552
  %v554 = vadd.f32 %v550, %v553
  %vm555 = vweird.f32 %v456
  %vm556 = vweird.f32 %v550
  %vm557 = vmor %vm555, %vm556
  %v558 = vsel %vm557, %v550, %v554
  %v559 = vand.u32 2147483647, %v456
  %vm560 = vcmp.eq.f32.partialorder %v559, 8.507059e+37
  %v561 = vand.u32 %v456, 2147483648
  %v562 = vor.u32 1.1754944e-38, %v561
  %v563 = vsel %vm560, %v562, %v558
  %v564 = vmul.f32 %v433, %v563
  %v565 = vrcp.pop %v459
  %v566 = vmul.f32 %v459, %v565
  %v567 = vsub.f32 1.0, %v566
  %v568 = vmul.f32 %v565, %v567
  %v569 = vadd.f32 %v565, %v568
  %vm570 = vweird.f32 %v459
  %vm571 = vweird.f32 %v565
  %vm572 = vmor %vm570, %vm571
  %v573 = vsel %vm572, %v565, %v569
  %v574 = vand.u32 2147483647, %v459
  %vm575 = vcmp.eq.f32.partialorder %v574, 8.507059e+37
  %v576 = vand.u32 %v459, 2147483648
  %v577 = vor.u32 1.1754944e-38, %v576
  %v578 = vsel %vm575, %v577, %v573
  %v579 = vmul.f32 %v435, %v578
  %vm580 = vcmask 64512
  %v582 = vsel %vm580, %v474, 0
  %584 = vmatpush.msra.mxu0 0.0
  %585 = vmatpush.msra.mxu0 0.0
  %586 = vmatpush.msra.mxu0 0.0
  %587 = vmatpush.msra.mxu0 0.0
  %588 = vmatpush.msra.mxu0 0.0
  %589 = vmatpush.msra.mxu0 0.0
  %590 = vmatpush.msra.mxu0 0.0
  %591 = vmatpush.msra.mxu0 0.0
  %592 = vmatpush.msra.mxu0 0.0
  %593 = vmatpush.msra.mxu0 0.0
  %594 = vmatpush.msra.mxu0 0.0
  %595 = vmatpush.msra.mxu0 0.0
  %596 = vmatpush.msra.mxu0 0.0
  %597 = vmatpush.msra.mxu0 0.0
  %598 = vmatpush.msra.mxu0 0.0
  %599 = vmatpush.msra.mxu0 %v59
  %600 = vmatmul.f32.gmra.mxu0 %v582
  %v601 = vpop.f32.mrf.mxu0
  %v602 = vadd.f32 0.0, %v601
  %603 = vdwg.mxu0
  %v605 = vsel %vm580, %v489, 0
  %607 = vmatpush.msra.mxu0 0.0
  %608 = vmatpush.msra.mxu0 0.0
  %609 = vmatpush.msra.mxu0 0.0
  %610 = vmatpush.msra.mxu0 0.0
  %611 = vmatpush.msra.mxu0 0.0
  %612 = vmatpush.msra.mxu0 0.0
  %613 = vmatpush.msra.mxu0 0.0
  %614 = vmatpush.msra.mxu0 0.0
  %615 = vmatpush.msra.mxu0 0.0
  %616 = vmatpush.msra.mxu0 0.0
  %617 = vmatpush.msra.mxu0 0.0
  %618 = vmatpush.msra.mxu0 0.0
  %619 = vmatpush.msra.mxu0 0.0
  %620 = vmatpush.msra.mxu0 0.0
  %621 = vmatpush.msra.mxu0 0.0
  %622 = vmatpush.msra.mxu0 %v60
  %623 = vmatmul.f32.gmra.mxu0 %v605
  %v624 = vpop.f32.mrf.mxu0
  %v625 = vadd.f32 0.0, %v624
  %626 = vdwg.mxu0
  %v628 = vsel %vm580, %v504, 0
  %630 = vmatpush.msra.mxu0 0.0
  %631 = vmatpush.msra.mxu0 0.0
  %632 = vmatpush.msra.mxu0 0.0
  %633 = vmatpush.msra.mxu0 0.0
  %634 = vmatpush.msra.mxu0 0.0
  %635 = vmatpush.msra.mxu0 0.0
  %636 = vmatpush.msra.mxu0 0.0
  %637 = vmatpush.msra.mxu0 0.0
  %638 = vmatpush.msra.mxu0 0.0
  %639 = vmatpush.msra.mxu0 0.0
  %640 = vmatpush.msra.mxu0 0.0
  %641 = vmatpush.msra.mxu0 0.0
  %642 = vmatpush.msra.mxu0 0.0
  %643 = vmatpush.msra.mxu0 0.0
  %644 = vmatpush.msra.mxu0 0.0
  %645 = vmatpush.msra.mxu0 %v61
  %646 = vmatmul.f32.gmra.mxu0 %v628
  %v647 = vpop.f32.mrf.mxu0
  %v648 = vadd.f32 0.0, %v647
  %649 = vdwg.mxu0
  %v651 = vsel %vm580, %v519, 0
  %653 = vmatpush.msra.mxu0 0.0
  %654 = vmatpush.msra.mxu0 0.0
  %655 = vmatpush.msra.mxu0 0.0
  %656 = vmatpush.msra.mxu0 0.0
  %657 = vmatpush.msra.mxu0 0.0
  %658 = vmatpush.msra.mxu0 0.0
  %659 = vmatpush.msra.mxu0 0.0
  %660 = vmatpush.msra.mxu0 0.0
  %661 = vmatpush.msra.mxu0 0.0
  %662 = vmatpush.msra.mxu0 0.0
  %663 = vmatpush.msra.mxu0 0.0
  %664 = vmatpush.msra.mxu0 0.0
  %665 = vmatpush.msra.mxu0 0.0
  %666 = vmatpush.msra.mxu0 0.0
  %667 = vmatpush.msra.mxu0 0.0
  %668 = vmatpush.msra.mxu0 %v62
  %669 = vmatmul.f32.gmra.mxu0 %v651
  %v670 = vpop.f32.mrf.mxu0
  %v671 = vadd.f32 0.0, %v670
  %672 = vdwg.mxu0
  %v674 = vsel %vm580, %v534, 0
  %676 = vmatpush.msra.mxu0 0.0
  %677 = vmatpush.msra.mxu0 0.0
  %678 = vmatpush.msra.mxu0 0.0
  %679 = vmatpush.msra.mxu0 0.0
  %680 = vmatpush.msra.mxu0 0.0
  %681 = vmatpush.msra.mxu0 0.0
  %682 = vmatpush.msra.mxu0 0.0
  %683 = vmatpush.msra.mxu0 0.0
  %684 = vmatpush.msra.mxu0 0.0
  %685 = vmatpush.msra.mxu0 0.0
  %686 = vmatpush.msra.mxu0 0.0
  %687 = vmatpush.msra.mxu0 0.0
  %688 = vmatpush.msra.mxu0 0.0
  %689 = vmatpush.msra.mxu0 0.0
  %690 = vmatpush.msra.mxu0 0.0
  %691 = vmatpush.msra.mxu0 %v63
  %692 = vmatmul.f32.gmra.mxu0 %v674
  %v693 = vpop.f32.mrf.mxu0
  %v694 = vadd.f32 0.0, %v693
  %695 = vdwg.mxu0
  %v697 = vsel %vm580, %v549, 0
  %699 = vmatpush.msra.mxu0 0.0
  %700 = vmatpush.msra.mxu0 0.0
  %701 = vmatpush.msra.mxu0 0.0
  %702 = vmatpush.msra.mxu0 0.0
  %703 = vmatpush.msra.mxu0 0.0
  %704 = vmatpush.msra.mxu0 0.0
  %705 = vmatpush.msra.mxu0 0.0
  %706 = vmatpush.msra.mxu0 0.0
  %707 = vmatpush.msra.mxu0 0.0
  %708 = vmatpush.msra.mxu0 0.0
  %709 = vmatpush.msra.mxu0 0.0
  %710 = vmatpush.msra.mxu0 0.0
  %711 = vmatpush.msra.mxu0 0.0
  %712 = vmatpush.msra.mxu0 0.0
  %713 = vmatpush.msra.mxu0 0.0
  %714 = vmatpush.msra.mxu0 %v64
  %715 = vmatmul.f32.gmra.mxu0 %v697
  %v716 = vpop.f32.mrf.mxu0
  %v717 = vadd.f32 0.0, %v716
  %718 = vdwg.mxu0
  %v720 = vsel %vm580, %v564, 0
  %722 = vmatpush.msra.mxu0 0.0
  %723 = vmatpush.msra.mxu0 0.0
  %724 = vmatpush.msra.mxu0 0.0
  %725 = vmatpush.msra.mxu0 0.0
  %726 = vmatpush.msra.mxu0 0.0
  %727 = vmatpush.msra.mxu0 0.0
  %728 = vmatpush.msra.mxu0 0.0
  %729 = vmatpush.msra.mxu0 0.0
  %730 = vmatpush.msra.mxu0 0.0
  %731 = vmatpush.msra.mxu0 0.0
  %732 = vmatpush.msra.mxu0 0.0
  %733 = vmatpush.msra.mxu0 0.0
  %734 = vmatpush.msra.mxu0 0.0
  %735 = vmatpush.msra.mxu0 0.0
  %736 = vmatpush.msra.mxu0 0.0
  %737 = vmatpush.msra.mxu0 %v65
  %738 = vmatmul.f32.gmra.mxu0 %v720
  %v739 = vpop.f32.mrf.mxu0
  %v740 = vadd.f32 0.0, %v739
  %741 = vdwg.mxu0
  %v743 = vsel %vm580, %v579, 0
  %745 = vmatpush.msra.mxu0 0.0
  %746 = vmatpush.msra.mxu0 0.0
  %747 = vmatpush.msra.mxu0 0.0
  %748 = vmatpush.msra.mxu0 0.0
  %749 = vmatpush.msra.mxu0 0.0
  %750 = vmatpush.msra.mxu0 0.0
  %751 = vmatpush.msra.mxu0 0.0
  %752 = vmatpush.msra.mxu0 0.0
  %753 = vmatpush.msra.mxu0 0.0
  %754 = vmatpush.msra.mxu0 0.0
  %755 = vmatpush.msra.mxu0 0.0
  %756 = vmatpush.msra.mxu0 0.0
  %757 = vmatpush.msra.mxu0 0.0
  %758 = vmatpush.msra.mxu0 0.0
  %759 = vmatpush.msra.mxu0 0.0
  %760 = vmatpush.msra.mxu0 %v66
  %761 = vmatmul.f32.gmra.mxu0 %v743
  %v762 = vpop.f32.mrf.mxu0
  %v763 = vadd.f32 0.0, %v762
  %764 = vdwg.mxu0
  %765 = vrot.lane.b32.xlu0 %v154, 80
  %v766 = vpop.permute.xlu0 %765
  %v776 = vrot.slane %v625, 7
  %vm777 = vcmask 1041409
  %v778 = vsel %vm777, %v776, %v602
  %v779 = vrot.slane %v648, 6
  %vm780 = vcmask 1042434
  %v781 = vsel %vm780, %v779, %v778
  %v782 = vrot.slane %v671, 5
  %vm783 = vcmask 1043459
  %v784 = vsel %vm783, %v782, %v781
  %v785 = vrot.slane %v694, 4
  %vm786 = vcmask 1044484
  %v787 = vsel %vm786, %v785, %v784
  %v788 = vrot.slane %v717, 3
  %vm789 = vcmask 1045509
  %v790 = vsel %vm789, %v788, %v787
  %v791 = vrot.slane %v740, 2
  %vm792 = vcmask 1046534
  %v793 = vsel %vm792, %v791, %v790
  %v794 = vrot.slane %v763, 1
  %vm795 = vcmask 1047559
  %v796 = vsel %vm795, %v794, %v793
  %797 = vrot.lane.b32.xlu0 %v796, 16
  %v798 = vpop.permute.xlu0 %797
  %v800 = vsel %vm67, %v766, %v798
  %v801 = vsel %vm67, %v766, 0
  %803 = vmatpush.msra.mxu0 0.0
  %804 = vmatpush.msra.mxu0 0.0
  %805 = vmatpush.msra.mxu0 0.0
  %806 = vmatpush.msra.mxu0 0.0
  %807 = vmatpush.msra.mxu0 0.0
  %808 = vmatpush.msra.mxu0 0.0
  %809 = vmatpush.msra.mxu0 0.0
  %810 = vmatpush.msra.mxu0 0.0
  %811 = vmatpush.msra.mxu0 0.0
  %812 = vmatpush.msra.mxu0 0.0
  %813 = vmatpush.msra.mxu0 0.0
  %814 = vmatpush.msra.mxu0 0.0
  %815 = vmatpush.msra.mxu0 0.0
  %816 = vmatpush.msra.mxu0 0.0
  %817 = vmatpush.msra.mxu0 %v57
  %818 = vmatpush.msra.mxu0 %v56
  %819 = vmatmul.f32.gmra.mxu0 %v801
  %v820 = vpop.f32.mrf.mxu0
  %v821 = vadd.f32 0.0, %v820
  %822 = vdwg.mxu0
  %v824 = vsel %vm91, %v800, 0
  %826 = vmatpush.msra.mxu0 0.0
  %827 = vmatpush.msra.mxu0 0.0
  %828 = vmatpush.msra.mxu0 0.0
  %829 = vmatpush.msra.mxu0 0.0
  %830 = vmatpush.msra.mxu0 0.0
  %831 = vmatpush.msra.mxu0 0.0
  %832 = vmatpush.msra.mxu0 0.0
  %833 = vmatpush.msra.mxu0 0.0
  %834 = vmatpush.msra.mxu0 0.0
  %835 = vmatpush.msra.mxu0 0.0
  %836 = vmatpush.msra.mxu0 0.0
  %837 = vmatpush.msra.mxu0 0.0
  %838 = vmatpush.msra.mxu0 %v55
  %839 = vmatpush.msra.mxu0 %v54
  %840 = vmatpush.msra.mxu0 %v53
  %841 = vmatpush.msra.mxu0 %v52
  %842 = vmatmul.f32.gmra.mxu0 %v824
  %v843 = vpop.f32.mrf.mxu0
  %v844 = vadd.f32 %v821, %v843
  %845 = vdwg.mxu0
  %v846 = vadd.f32 %v844, %v115
  %v847 = vxor.u32 %v846, 2147483648
  %v848 = vmul.f32 %v847, 1.442695
  %v849 = vpow.pop %v848
  %v850 = vadd.f32 %v849, 1.0
  %v851 = vrcp.pop %v850
  %v852 = vmul.f32 %v850, %v851
  %v853 = vsub.f32 1.0, %v852
  %v854 = vmul.f32 %v851, %v853
  %v855 = vadd.f32 %v851, %v854
  %vm856 = vweird.f32 %v850
  %vm857 = vweird.f32 %v851
  %vm858 = vmor %vm856, %vm857
  %v859 = vsel %vm858, %v851, %v855
  %v860 = vand.u32 2147483647, %v850
  %vm861 = vcmp.eq.f32.partialorder %v860, 8.507059e+37
  %v862 = vand.u32 %v850, 2147483648
  %v863 = vor.u32 1.1754944e-38, %v862
  %v864 = vsel %vm861, %v863, %v859
  %v865 = vmul.f32 1.0, %v864
  %v866 = vtanh.pop %v846
  %v867 = vmul.f32 %v865, %v148
  %869 = vrot.lane.b32.xlu0 %v866, 96
  %v870 = vpop.permute.xlu0 %869
  %v872 = vmul.f32 %v865, %v870
  %874 = vrot.lane.b32.xlu0 %v872, 16
  %v875 = vpop.permute.xlu0 %874
  %v877 = vadd.f32 %v867, %v875
  %v878 = vtanh.pop %v877
  %880 = vrot.lane.b32.xlu0 %v878, 32
  %v881 = vpop.permute.xlu0 %880
  %v883 = vmul.f32 %v865, %v881
  %v885 = vrot.slane %v883, 1
  %v886 = vrot.slane %v883, 2
  %v887 = vrot.slane %v883, 3
  %v888 = vrot.slane %v883, 4
  %v889 = vrot.slane %v883, 5
  %v890 = vrot.slane %v883, 6
  %v891 = vrot.slane %v883, 7
  %v892 = vperm.slane %v883, 0
  %893 = vrot.lane.b32.xlu0 %v892, 80
  %v894 = vpop.permute.xlu0 %893
  %v895 = vsel %vm67, %v894, 0
  %897 = vmatpush.xpose.msra.mxu0 0.0
  %898 = vmatpush.xpose.msra.mxu0 0.0
  %899 = vmatpush.xpose.msra.mxu0 0.0
  %900 = vmatpush.xpose.msra.mxu0 0.0
  %901 = vmatpush.xpose.msra.mxu0 0.0
  %902 = vmatpush.xpose.msra.mxu0 0.0
  %903 = vmatpush.xpose.msra.mxu0 0.0
  %904 = vmatpush.xpose.msra.mxu0 0.0
  %905 = vmatpush.xpose.msra.mxu0 0.0
  %906 = vmatpush.xpose.msra.mxu0 0.0
  %907 = vmatpush.xpose.msra.mxu0 0.0
  %908 = vmatpush.xpose.msra.mxu0 0.0
  %909 = vmatpush.xpose.msra.mxu0 0.0
  %910 = vmatpush.xpose.msra.mxu0 0.0
  %911 = vmatpush.xpose.msra.mxu0 0.0
  %912 = vmatpush.xpose.msra.mxu0 %v169
  %913 = vmatmul.f32.gmra.mxu0 %v895
  %v914 = vpop.f32.mrf.mxu0
  %v915 = vadd.f32 0.0, %v914
  %916 = vdwg.mxu0
  %v917 = vperm.slane %v885, 0
  %918 = vrot.lane.b32.xlu0 %v917, 80
  %v919 = vpop.permute.xlu0 %918
  %v920 = vsel %vm67, %v919, 0
  %922 = vmatpush.xpose.msra.mxu0 0.0
  %923 = vmatpush.xpose.msra.mxu0 0.0
  %924 = vmatpush.xpose.msra.mxu0 0.0
  %925 = vmatpush.xpose.msra.mxu0 0.0
  %926 = vmatpush.xpose.msra.mxu0 0.0
  %927 = vmatpush.xpose.msra.mxu0 0.0
  %928 = vmatpush.xpose.msra.mxu0 0.0
  %929 = vmatpush.xpose.msra.mxu0 0.0
  %930 = vmatpush.xpose.msra.mxu0 0.0
  %931 = vmatpush.xpose.msra.mxu0 0.0
  %932 = vmatpush.xpose.msra.mxu0 0.0
  %933 = vmatpush.xpose.msra.mxu0 0.0
  %934 = vmatpush.xpose.msra.mxu0 0.0
  %935 = vmatpush.xpose.msra.mxu0 0.0
  %936 = vmatpush.xpose.msra.mxu0 0.0
  %937 = vmatpush.xpose.msra.mxu0 %v197
  %938 = vmatmul.f32.gmra.mxu0 %v920
  %v939 = vpop.f32.mrf.mxu0
  %v940 = vadd.f32 0.0, %v939
  %941 = vdwg.mxu0
  %v942 = vperm.slane %v886, 0
  %943 = vrot.lane.b32.xlu0 %v942, 80
  %v944 = vpop.permute.xlu0 %943
  %v945 = vsel %vm67, %v944, 0
  %947 = vmatpush.xpose.msra.mxu0 0.0
  %948 = vmatpush.xpose.msra.mxu0 0.0
  %949 = vmatpush.xpose.msra.mxu0 0.0
  %950 = vmatpush.xpose.msra.mxu0 0.0
  %951 = vmatpush.xpose.msra.mxu0 0.0
  %952 = vmatpush.xpose.msra.mxu0 0.0
  %953 = vmatpush.xpose.msra.mxu0 0.0
  %954 = vmatpush.xpose.msra.mxu0 0.0
  %955 = vmatpush.xpose.msra.mxu0 0.0
  %956 = vmatpush.xpose.msra.mxu0 0.0
  %957 = vmatpush.xpose.msra.mxu0 0.0
  %958 = vmatpush.xpose.msra.mxu0 0.0
  %959 = vmatpush.xpose.msra.mxu0 0.0
  %960 = vmatpush.xpose.msra.mxu0 0.0
  %961 = vmatpush.xpose.msra.mxu0 0.0
  %962 = vmatpush.xpose.msra.mxu0 %v225
  %963 = vmatmul.f32.gmra.mxu0 %v945
  %v964 = vpop.f32.mrf.mxu0
  %v965 = vadd.f32 0.0, %v964
  %966 = vdwg.mxu0
  %v967 = vperm.slane %v887, 0
  %968 = vrot.lane.b32.xlu0 %v967, 80
  %v969 = vpop.permute.xlu0 %968
  %v970 = vsel %vm67, %v969, 0
  %972 = vmatpush.xpose.msra.mxu0 0.0
  %973 = vmatpush.xpose.msra.mxu0 0.0
  %974 = vmatpush.xpose.msra.mxu0 0.0
  %975 = vmatpush.xpose.msra.mxu0 0.0
  %976 = vmatpush.xpose.msra.mxu0 0.0
  %977 = vmatpush.xpose.msra.mxu0 0.0
  %978 = vmatpush.xpose.msra.mxu0 0.0
  %979 = vmatpush.xpose.msra.mxu0 0.0
  %980 = vmatpush.xpose.msra.mxu0 0.0
  %981 = vmatpush.xpose.msra.mxu0 0.0
  %982 = vmatpush.xpose.msra.mxu0 0.0
  %983 = vmatpush.xpose.msra.mxu0 0.0
  %984 = vmatpush.xpose.msra.mxu0 0.0
  %985 = vmatpush.xpose.msra.mxu0 0.0
  %986 = vmatpush.xpose.msra.mxu0 0.0
  %987 = vmatpush.xpose.msra.mxu0 %v253
  %988 = vmatmul.f32.gmra.mxu0 %v970
  %v989 = vpop.f32.mrf.mxu0
  %v990 = vadd.f32 0.0, %v989
  %991 = vdwg.mxu0
  %v992 = vperm.slane %v888, 0
  %993 = vrot.lane.b32.xlu0 %v992, 80
  %v994 = vpop.permute.xlu0 %993
  %v995 = vsel %vm67, %v994, 0
  %997 = vmatpush.xpose.msra.mxu0 0.0
  %998 = vmatpush.xpose.msra.mxu0 0.0
  %999 = vmatpush.xpose.msra.mxu0 0.0
  %1000 = vmatpush.xpose.msra.mxu0 0.0
  %1001 = vmatpush.xpose.msra.mxu0 0.0
  %1002 = vmatpush.xpose.msra.mxu0 0.0
  %1003 = vmatpush.xpose.msra.mxu0 0.0
  %1004 = vmatpush.xpose.msra.mxu0 0.0
  %1005 = vmatpush.xpose.msra.mxu0 0.0
  %1006 = vmatpush.xpose.msra.mxu0 0.0
  %1007 = vmatpush.xpose.msra.mxu0 0.0
  %1008 = vmatpush.xpose.msra.mxu0 0.0
  %1009 = vmatpush.xpose.msra.mxu0 0.0
  %1010 = vmatpush.xpose.msra.mxu0 0.0
  %1011 = vmatpush.xpose.msra.mxu0 0.0
  %1012 = vmatpush.xpose.msra.mxu0 %v281
  %1013 = vmatmul.f32.gmra.mxu0 %v995
  %v1014 = vpop.f32.mrf.mxu0
  %v1015 = vadd.f32 0.0, %v1014
  %1016 = vdwg.mxu0
  %v1017 = vperm.slane %v889, 0
  %1018 = vrot.lane.b32.xlu0 %v1017, 80
  %v1019 = vpop.permute.xlu0 %1018
  %v1020 = vsel %vm67, %v1019, 0
  %1022 = vmatpush.xpose.msra.mxu0 0.0
  %1023 = vmatpush.xpose.msra.mxu0 0.0
  %1024 = vmatpush.xpose.msra.mxu0 0.0
  %1025 = vmatpush.xpose.msra.mxu0 0.0
  %1026 = vmatpush.xpose.msra.mxu0 0.0
  %1027 = vmatpush.xpose.msra.mxu0 0.0
  %1028 = vmatpush.xpose.msra.mxu0 0.0
  %1029 = vmatpush.xpose.msra.mxu0 0.0
  %1030 = vmatpush.xpose.msra.mxu0 0.0
  %1031 = vmatpush.xpose.msra.mxu0 0.0
  %1032 = vmatpush.xpose.msra.mxu0 0.0
  %1033 = vmatpush.xpose.msra.mxu0 0.0
  %1034 = vmatpush.xpose.msra.mxu0 0.0
  %1035 = vmatpush.xpose.msra.mxu0 0.0
  %1036 = vmatpush.xpose.msra.mxu0 0.0
  %1037 = vmatpush.xpose.msra.mxu0 %v309
  %1038 = vmatmul.f32.gmra.mxu0 %v1020
  %v1039 = vpop.f32.mrf.mxu0
  %v1040 = vadd.f32 0.0, %v1039
  %1041 = vdwg.mxu0
  %v1042 = vperm.slane %v890, 0
  %1043 = vrot.lane.b32.xlu0 %v1042, 80
  %v1044 = vpop.permute.xlu0 %1043
  %v1045 = vsel %vm67, %v1044, 0
  %1047 = vmatpush.xpose.msra.mxu0 0.0
  %1048 = vmatpush.xpose.msra.mxu0 0.0
  %1049 = vmatpush.xpose.msra.mxu0 0.0
  %1050 = vmatpush.xpose.msra.mxu0 0.0
  %1051 = vmatpush.xpose.msra.mxu0 0.0
  %1052 = vmatpush.xpose.msra.mxu0 0.0
  %1053 = vmatpush.xpose.msra.mxu0 0.0
  %1054 = vmatpush.xpose.msra.mxu0 0.0
  %1055 = vmatpush.xpose.msra.mxu0 0.0
  %1056 = vmatpush.xpose.msra.mxu0 0.0
  %1057 = vmatpush.xpose.msra.mxu0 0.0
  %1058 = vmatpush.xpose.msra.mxu0 0.0
  %1059 = vmatpush.xpose.msra.mxu0 0.0
  %1060 = vmatpush.xpose.msra.mxu0 0.0
  %1061 = vmatpush.xpose.msra.mxu0 0.0
  %1062 = vmatpush.xpose.msra.mxu0 %v337
  %1063 = vmatmul.f32.gmra.mxu0 %v1045
  %v1064 = vpop.f32.mrf.mxu0
  %v1065 = vadd.f32 0.0, %v1064
  %1066 = vdwg.mxu0
  %v1067 = vperm.slane %v891, 0
  %1068 = vrot.lane.b32.xlu0 %v1067, 80
  %v1069 = vpop.permute.xlu0 %1068
  %v1070 = vsel %vm67, %v1069, 0
  %1072 = vmatpush.xpose.msra.mxu0 0.0
  %1073 = vmatpush.xpose.msra.mxu0 0.0
  %1074 = vmatpush.xpose.msra.mxu0 0.0
  %1075 = vmatpush.xpose.msra.mxu0 0.0
  %1076 = vmatpush.xpose.msra.mxu0 0.0
  %1077 = vmatpush.xpose.msra.mxu0 0.0
  %1078 = vmatpush.xpose.msra.mxu0 0.0
  %1079 = vmatpush.xpose.msra.mxu0 0.0
  %1080 = vmatpush.xpose.msra.mxu0 0.0
  %1081 = vmatpush.xpose.msra.mxu0 0.0
  %1082 = vmatpush.xpose.msra.mxu0 0.0
  %1083 = vmatpush.xpose.msra.mxu0 0.0
  %1084 = vmatpush.xpose.msra.mxu0 0.0
  %1085 = vmatpush.xpose.msra.mxu0 0.0
  %1086 = vmatpush.xpose.msra.mxu0 0.0
  %1087 = vmatpush.xpose.msra.mxu0 %v365
  %1088 = vmatmul.f32.gmra.mxu0 %v1070
  %v1089 = vpop.f32.mrf.mxu0
  %v1090 = vadd.f32 0.0, %v1089
  %1091 = vdwg.mxu0
  %v1092 = vsel %vm387, %v915, -inf
  %1093 = vmax.xlane.f32.xlu0 %v1092
  %v1094 = vpop.xlane.xlu0 %1093
  %v1095 = vsel %vm387, %v940, -inf
  %1096 = vmax.xlane.f32.xlu0 %v1095
  %v1097 = vpop.xlane.xlu0 %1096
  %v1098 = vsel %vm387, %v965, -inf
  %1099 = vmax.xlane.f32.xlu0 %v1098
  %v1100 = vpop.xlane.xlu0 %1099
  %v1101 = vsel %vm387, %v990, -inf
  %1102 = vmax.xlane.f32.xlu0 %v1101
  %v1103 = vpop.xlane.xlu0 %1102
  %v1104 = vsel %vm387, %v1015, -inf
  %1105 = vmax.xlane.f32.xlu0 %v1104
  %v1106 = vpop.xlane.xlu0 %1105
  %v1107 = vsel %vm387, %v1040, -inf
  %1108 = vmax.xlane.f32.xlu0 %v1107
  %v1109 = vpop.xlane.xlu0 %1108
  %v1110 = vsel %vm387, %v1065, -inf
  %1111 = vmax.xlane.f32.xlu0 %v1110
  %v1112 = vpop.xlane.xlu0 %1111
  %v1113 = vsel %vm387, %v1090, -inf
  %1114 = vmax.xlane.f32.xlu0 %v1113
  %v1115 = vpop.xlane.xlu0 %1114
  %v1116 = vsub.f32 %v915, %v1094
  %v1117 = vsub.f32 %v940, %v1097
  %v1118 = vsub.f32 %v965, %v1100
  %v1119 = vsub.f32 %v990, %v1103
  %v1120 = vsub.f32 %v1015, %v1106
  %v1121 = vsub.f32 %v1040, %v1109
  %v1122 = vsub.f32 %v1065, %v1112
  %v1123 = vsub.f32 %v1090, %v1115
  %v1124 = vmul.f32 %v1116, 1.442695
  %v1125 = vpow.pop %v1124
  %v1126 = vmul.f32 %v1117, 1.442695
  %v1127 = vpow.pop %v1126
  %v1128 = vmul.f32 %v1118, 1.442695
  %v1129 = vpow.pop %v1128
  %v1130 = vmul.f32 %v1119, 1.442695
  %v1131 = vpow.pop %v1130
  %v1132 = vmul.f32 %v1120, 1.442695
  %v1133 = vpow.pop %v1132
  %v1134 = vmul.f32 %v1121, 1.442695
  %v1135 = vpow.pop %v1134
  %v1136 = vmul.f32 %v1122, 1.442695
  %v1137 = vpow.pop %v1136
  %v1138 = vmul.f32 %v1123, 1.442695
  %v1139 = vpow.pop %v1138
  %v1140 = vsel %vm387, %v1125, 0.0
  %1141 = vadd.xlane.f32.xlu0 %v1140
  %v1142 = vpop.xlane.xlu0 %1141
  %v1143 = vsel %vm387, %v1127, 0.0
  %1144 = vadd.xlane.f32.xlu0 %v1143
  %v1145 = vpop.xlane.xlu0 %1144
  %v1146 = vsel %vm387, %v1129, 0.0
  %1147 = vadd.xlane.f32.xlu0 %v1146
  %v1148 = vpop.xlane.xlu0 %1147
  %v1149 = vsel %vm387, %v1131, 0.0
  %1150 = vadd.xlane.f32.xlu0 %v1149
  %v1151 = vpop.xlane.xlu0 %1150
  %v1152 = vsel %vm387, %v1133, 0.0
  %1153 = vadd.xlane.f32.xlu0 %v1152
  %v1154 = vpop.xlane.xlu0 %1153
  %v1155 = vsel %vm387, %v1135, 0.0
  %1156 = vadd.xlane.f32.xlu0 %v1155
  %v1157 = vpop.xlane.xlu0 %1156
  %v1158 = vsel %vm387, %v1137, 0.0
  %1159 = vadd.xlane.f32.xlu0 %v1158
  %v1160 = vpop.xlane.xlu0 %1159
  %v1161 = vsel %vm387, %v1139, 0.0
  %1162 = vadd.xlane.f32.xlu0 %v1161
  %v1163 = vpop.xlane.xlu0 %1162
  %v1164 = vrcp.pop %v1142
  %v1165 = vmul.f32 %v1142, %v1164
  %v1166 = vsub.f32 1.0, %v1165
  %v1167 = vmul.f32 %v1164, %v1166
  %v1168 = vadd.f32 %v1164, %v1167
  %vm1169 = vweird.f32 %v1142
  %vm1170 = vweird.f32 %v1164
  %vm1171 = vmor %vm1169, %vm1170
  %v1172 = vsel %vm1171, %v1164, %v1168
  %v1173 = vand.u32 2147483647, %v1142
  %vm1174 = vcmp.eq.f32.partialorder %v1173, 8.507059e+37
  %v1175 = vand.u32 %v1142, 2147483648
  %v1176 = vor.u32 1.1754944e-38, %v1175
  %v1177 = vsel %vm1174, %v1176, %v1172
  %v1178 = vmul.f32 %v1125, %v1177
  %v1179 = vrcp.pop %v1145
  %v1180 = vmul.f32 %v1145, %v1179
  %v1181 = vsub.f32 1.0, %v1180
  %v1182 = vmul.f32 %v1179, %v1181
  %v1183 = vadd.f32 %v1179, %v1182
  %vm1184 = vweird.f32 %v1145
  %vm1185 = vweird.f32 %v1179
  %vm1186 = vmor %vm1184, %vm1185
  %v1187 = vsel %vm1186, %v1179, %v1183
  %v1188 = vand.u32 2147483647, %v1145
  %vm1189 = vcmp.eq.f32.partialorder %v1188, 8.507059e+37
  %v1190 = vand.u32 %v1145, 2147483648
  %v1191 = vor.u32 1.1754944e-38, %v1190
  %v1192 = vsel %vm1189, %v1191, %v1187
  %v1193 = vmul.f32 %v1127, %v1192
  %v1194 = vrcp.pop %v1148
  %v1195 = vmul.f32 %v1148, %v1194
  %v1196 = vsub.f32 1.0, %v1195
  %v1197 = vmul.f32 %v1194, %v1196
  %v1198 = vadd.f32 %v1194, %v1197
  %vm1199 = vweird.f32 %v1148
  %vm1200 = vweird.f32 %v1194
  %vm1201 = vmor %vm1199, %vm1200
  %v1202 = vsel %vm1201, %v1194, %v1198
  %v1203 = vand.u32 2147483647, %v1148
  %vm1204 = vcmp.eq.f32.partialorder %v1203, 8.507059e+37
  %v1205 = vand.u32 %v1148, 2147483648
  %v1206 = vor.u32 1.1754944e-38, %v1205
  %v1207 = vsel %vm1204, %v1206, %v1202
  %v1208 = vmul.f32 %v1129, %v1207
  %v1209 = vrcp.pop %v1151
  %v1210 = vmul.f32 %v1151, %v1209
  %v1211 = vsub.f32 1.0, %v1210
  %v1212 = vmul.f32 %v1209, %v1211
  %v1213 = vadd.f32 %v1209, %v1212
  %vm1214 = vweird.f32 %v1151
  %vm1215 = vweird.f32 %v1209
  %vm1216 = vmor %vm1214, %vm1215
  %v1217 = vsel %vm1216, %v1209, %v1213
  %v1218 = vand.u32 2147483647, %v1151
  %vm1219 = vcmp.eq.f32.partialorder %v1218, 8.507059e+37
  %v1220 = vand.u32 %v1151, 2147483648
  %v1221 = vor.u32 1.1754944e-38, %v1220
  %v1222 = vsel %vm1219, %v1221, %v1217
  %v1223 = vmul.f32 %v1131, %v1222
  %v1224 = vrcp.pop %v1154
  %v1225 = vmul.f32 %v1154, %v1224
  %v1226 = vsub.f32 1.0, %v1225
  %v1227 = vmul.f32 %v1224, %v1226
  %v1228 = vadd.f32 %v1224, %v1227
  %vm1229 = vweird.f32 %v1154
  %vm1230 = vweird.f32 %v1224
  %vm1231 = vmor %vm1229, %vm1230
  %v1232 = vsel %vm1231, %v1224, %v1228
  %v1233 = vand.u32 2147483647, %v1154
  %vm1234 = vcmp.eq.f32.partialorder %v1233, 8.507059e+37
  %v1235 = vand.u32 %v1154, 2147483648
  %v1236 = vor.u32 1.1754944e-38, %v1235
  %v1237 = vsel %vm1234, %v1236, %v1232
  %v1238 = vmul.f32 %v1133, %v1237
  %v1239 = vrcp.pop %v1157
  %v1240 = vmul.f32 %v1157, %v1239
  %v1241 = vsub.f32 1.0, %v1240
  %v1242 = vmul.f32 %v1239, %v1241
  %v1243 = vadd.f32 %v1239, %v1242
  %vm1244 = vweird.f32 %v1157
  %vm1245 = vweird.f32 %v1239
  %vm1246 = vmor %vm1244, %vm1245
  %v1247 = vsel %vm1246, %v1239, %v1243
  %v1248 = vand.u32 2147483647, %v1157
  %vm1249 = vcmp.eq.f32.partialorder %v1248, 8.507059e+37
  %v1250 = vand.u32 %v1157, 2147483648
  %v1251 = vor.u32 1.1754944e-38, %v1250
  %v1252 = vsel %vm1249, %v1251, %v1247
  %v1253 = vmul.f32 %v1135, %v1252
  %v1254 = vrcp.pop %v1160
  %v1255 = vmul.f32 %v1160, %v1254
  %v1256 = vsub.f32 1.0, %v1255
  %v1257 = vmul.f32 %v1254, %v1256
  %v1258 = vadd.f32 %v1254, %v1257
  %vm1259 = vweird.f32 %v1160
  %vm1260 = vweird.f32 %v1254
  %vm1261 = vmor %vm1259, %vm1260
  %v1262 = vsel %vm1261, %v1254, %v1258
  %v1263 = vand.u32 2147483647, %v1160
  %vm1264 = vcmp.eq.f32.partialorder %v1263, 8.507059e+37
  %v1265 = vand.u32 %v1160, 2147483648
  %v1266 = vor.u32 1.1754944e-38, %v1265
  %v1267 = vsel %vm1264, %v1266, %v1262
  %v1268 = vmul.f32 %v1137, %v1267
  %v1269 = vrcp.pop %v1163
  %v1270 = vmul.f32 %v1163, %v1269
  %v1271 = vsub.f32 1.0, %v1270
  %v1272 = vmul.f32 %v1269, %v1271
  %v1273 = vadd.f32 %v1269, %v1272
  %vm1274 = vweird.f32 %v1163
  %vm1275 = vweird.f32 %v1269
  %vm1276 = vmor %vm1274, %vm1275
  %v1277 = vsel %vm1276, %v1269, %v1273
  %v1278 = vand.u32 2147483647, %v1163
  %vm1279 = vcmp.eq.f32.partialorder %v1278, 8.507059e+37
  %v1280 = vand.u32 %v1163, 2147483648
  %v1281 = vor.u32 1.1754944e-38, %v1280
  %v1282 = vsel %vm1279, %v1281, %v1277
  %v1283 = vmul.f32 %v1139, %v1282
  %v1285 = vsel %vm580, %v1178, 0
  %1287 = vmatpush.msra.mxu0 0.0
  %1288 = vmatpush.msra.mxu0 0.0
  %1289 = vmatpush.msra.mxu0 0.0
  %1290 = vmatpush.msra.mxu0 0.0
  %1291 = vmatpush.msra.mxu0 0.0
  %1292 = vmatpush.msra.mxu0 0.0
  %1293 = vmatpush.msra.mxu0 0.0
  %1294 = vmatpush.msra.mxu0 0.0
  %1295 = vmatpush.msra.mxu0 0.0
  %1296 = vmatpush.msra.mxu0 0.0
  %1297 = vmatpush.msra.mxu0 0.0
  %1298 = vmatpush.msra.mxu0 0.0
  %1299 = vmatpush.msra.mxu0 0.0
  %1300 = vmatpush.msra.mxu0 0.0
  %1301 = vmatpush.msra.mxu0 0.0
  %1302 = vmatpush.msra.mxu0 %v59
  %1303 = vmatmul.f32.gmra.mxu0 %v1285
  %v1304 = vpop.f32.mrf.mxu0
  %v1305 = vadd.f32 0.0, %v1304
  %1306 = vdwg.mxu0
  %v1308 = vsel %vm580, %v1193, 0
  %1310 = vmatpush.msra.mxu0 0.0
  %1311 = vmatpush.msra.mxu0 0.0
  %1312 = vmatpush.msra.mxu0 0.0
  %1313 = vmatpush.msra.mxu0 0.0
  %1314 = vmatpush.msra.mxu0 0.0
  %1315 = vmatpush.msra.mxu0 0.0
  %1316 = vmatpush.msra.mxu0 0.0
  %1317 = vmatpush.msra.mxu0 0.0
  %1318 = vmatpush.msra.mxu0 0.0
  %1319 = vmatpush.msra.mxu0 0.0
  %1320 = vmatpush.msra.mxu0 0.0
  %1321 = vmatpush.msra.mxu0 0.0
  %1322 = vmatpush.msra.mxu0 0.0
  %1323 = vmatpush.msra.mxu0 0.0
  %1324 = vmatpush.msra.mxu0 0.0
  %1325 = vmatpush.msra.mxu0 %v60
  %1326 = vmatmul.f32.gmra.mxu0 %v1308
  %v1327 = vpop.f32.mrf.mxu0
  %v1328 = vadd.f32 0.0, %v1327
  %1329 = vdwg.mxu0
  %v1331 = vsel %vm580, %v1208, 0
  %1333 = vmatpush.msra.mxu0 0.0
  %1334 = vmatpush.msra.mxu0 0.0
  %1335 = vmatpush.msra.mxu0 0.0
  %1336 = vmatpush.msra.mxu0 0.0
  %1337 = vmatpush.msra.mxu0 0.0
  %1338 = vmatpush.msra.mxu0 0.0
  %1339 = vmatpush.msra.mxu0 0.0
  %1340 = vmatpush.msra.mxu0 0.0
  %1341 = vmatpush.msra.mxu0 0.0
  %1342 = vmatpush.msra.mxu0 0.0
  %1343 = vmatpush.msra.mxu0 0.0
  %1344 = vmatpush.msra.mxu0 0.0
  %1345 = vmatpush.msra.mxu0 0.0
  %1346 = vmatpush.msra.mxu0 0.0
  %1347 = vmatpush.msra.mxu0 0.0
  %1348 = vmatpush.msra.mxu0 %v61
  %1349 = vmatmul.f32.gmra.mxu0 %v1331
  %v1350 = vpop.f32.mrf.mxu0
  %v1351 = vadd.f32 0.0, %v1350
  %1352 = vdwg.mxu0
  %v1354 = vsel %vm580, %v1223, 0
  %1356 = vmatpush.msra.mxu0 0.0
  %1357 = vmatpush.msra.mxu0 0.0
  %1358 = vmatpush.msra.mxu0 0.0
  %1359 = vmatpush.msra.mxu0 0.0
  %1360 = vmatpush.msra.mxu0 0.0
  %1361 = vmatpush.msra.mxu0 0.0
  %1362 = vmatpush.msra.mxu0 0.0
  %1363 = vmatpush.msra.mxu0 0.0
  %1364 = vmatpush.msra.mxu0 0.0
  %1365 = vmatpush.msra.mxu0 0.0
  %1366 = vmatpush.msra.mxu0 0.0
  %1367 = vmatpush.msra.mxu0 0.0
  %1368 = vmatpush.msra.mxu0 0.0
  %1369 = vmatpush.msra.mxu0 0.0
  %1370 = vmatpush.msra.mxu0 0.0
  %1371 = vmatpush.msra.mxu0 %v62
  %1372 = vmatmul.f32.gmra.mxu0 %v1354
  %v1373 = vpop.f32.mrf.mxu0
  %v1374 = vadd.f32 0.0, %v1373
  %1375 = vdwg.mxu0
  %v1377 = vsel %vm580, %v1238, 0
  %1379 = vmatpush.msra.mxu0 0.0
  %1380 = vmatpush.msra.mxu0 0.0
  %1381 = vmatpush.msra.mxu0 0.0
  %1382 = vmatpush.msra.mxu0 0.0
  %1383 = vmatpush.msra.mxu0 0.0
  %1384 = vmatpush.msra.mxu0 0.0
  %1385 = vmatpush.msra.mxu0 0.0
  %1386 = vmatpush.msra.mxu0 0.0
  %1387 = vmatpush.msra.mxu0 0.0
  %1388 = vmatpush.msra.mxu0 0.0
  %1389 = vmatpush.msra.mxu0 0.0
  %1390 = vmatpush.msra.mxu0 0.0
  %1391 = vmatpush.msra.mxu0 0.0
  %1392 = vmatpush.msra.mxu0 0.0
  %1393 = vmatpush.msra.mxu0 0.0
  %1394 = vmatpush.msra.mxu0 %v63
  %1395 = vmatmul.f32.gmra.mxu0 %v1377
  %v1396 = vpop.f32.mrf.mxu0
  %v1397 = vadd.f32 0.0, %v1396
  %1398 = vdwg.mxu0
  %v1400 = vsel %vm580, %v1253, 0
  %1402 = vmatpush.msra.mxu0 0.0
  %1403 = vmatpush.msra.mxu0 0.0
  %1404 = vmatpush.msra.mxu0 0.0
  %1405 = vmatpush.msra.mxu0 0.0
  %1406 = vmatpush.msra.mxu0 0.0
  %1407 = vmatpush.msra.mxu0 0.0
  %1408 = vmatpush.msra.mxu0 0.0
  %1409 = vmatpush.msra.mxu0 0.0
  %1410 = vmatpush.msra.mxu0 0.0
  %1411 = vmatpush.msra.mxu0 0.0
  %1412 = vmatpush.msra.mxu0 0.0
  %1413 = vmatpush.msra.mxu0 0.0
  %1414 = vmatpush.msra.mxu0 0.0
  %1415 = vmatpush.msra.mxu0 0.0
  %1416 = vmatpush.msra.mxu0 0.0
  %1417 = vmatpush.msra.mxu0 %v64
  %1418 = vmatmul.f32.gmra.mxu0 %v1400
  %v1419 = vpop.f32.mrf.mxu0
  %v1420 = vadd.f32 0.0, %v1419
  %1421 = vdwg.mxu0
  %v1423 = vsel %vm580, %v1268, 0
  %1425 = vmatpush.msra.mxu0 0.0
  %1426 = vmatpush.msra.mxu0 0.0
  %1427 = vmatpush.msra.mxu0 0.0
  %1428 = vmatpush.msra.mxu0 0.0
  %1429 = vmatpush.msra.mxu0 0.0
  %1430 = vmatpush.msra.mxu0 0.0
  %1431 = vmatpush.msra.mxu0 0.0
  %1432 = vmatpush.msra.mxu0 0.0
  %1433 = vmatpush.msra.mxu0 0.0
  %1434 = vmatpush.msra.mxu0 0.0
  %1435 = vmatpush.msra.mxu0 0.0
  %1436 = vmatpush.msra.mxu0 0.0
  %1437 = vmatpush.msra.mxu0 0.0
  %1438 = vmatpush.msra.mxu0 0.0
  %1439 = vmatpush.msra.mxu0 0.0
  %1440 = vmatpush.msra.mxu0 %v65
  %1441 = vmatmul.f32.gmra.mxu0 %v1423
  %v1442 = vpop.f32.mrf.mxu0
  %v1443 = vadd.f32 0.0, %v1442
  %1444 = vdwg.mxu0
  %v1446 = vsel %vm580, %v1283, 0
  %1448 = vmatpush.msra.mxu0 0.0
  %1449 = vmatpush.msra.mxu0 0.0
  %1450 = vmatpush.msra.mxu0 0.0
  %1451 = vmatpush.msra.mxu0 0.0
  %1452 = vmatpush.msra.mxu0 0.0
  %1453 = vmatpush.msra.mxu0 0.0
  %1454 = vmatpush.msra.mxu0 0.0
  %1455 = vmatpush.msra.mxu0 0.0
  %1456 = vmatpush.msra.mxu0 0.0
  %1457 = vmatpush.msra.mxu0 0.0
  %1458 = vmatpush.msra.mxu0 0.0
  %1459 = vmatpush.msra.mxu0 0.0
  %1460 = vmatpush.msra.mxu0 0.0
  %1461 = vmatpush.msra.mxu0 0.0
  %1462 = vmatpush.msra.mxu0 0.0
  %1463 = vmatpush.msra.mxu0 %v66
  %1464 = vmatmul.f32.gmra.mxu0 %v1446
  %v1465 = vpop.f32.mrf.mxu0
  %v1466 = vadd.f32 0.0, %v1465
  %1467 = vdwg.mxu0
  %1468 = vrot.lane.b32.xlu0 %v883, 80
  %v1469 = vpop.permute.xlu0 %1468
  %v1479 = vrot.slane %v1328, 7
  %v1480 = vsel %vm777, %v1479, %v1305
  %v1481 = vrot.slane %v1351, 6
  %v1482 = vsel %vm780, %v1481, %v1480
  %v1483 = vrot.slane %v1374, 5
  %v1484 = vsel %vm783, %v1483, %v1482
  %v1485 = vrot.slane %v1397, 4
  %v1486 = vsel %vm786, %v1485, %v1484
  %v1487 = vrot.slane %v1420, 3
  %v1488 = vsel %vm789, %v1487, %v1486
  %v1489 = vrot.slane %v1443, 2
  %v1490 = vsel %vm792, %v1489, %v1488
  %v1491 = vrot.slane %v1466, 1
  %v1492 = vsel %vm795, %v1491, %v1490
  %1493 = vrot.lane.b32.xlu0 %v1492, 16
  %v1494 = vpop.permute.xlu0 %1493
  %v1496 = vsel %vm67, %v1469, %v1494
  %v1497 = vld [vmem:[%s1] sm:$0xff]
  %v1498 = vld [vmem:[%s1 + $0x8] sm:$0xff]
  %v1499 = vld [vmem:[%s1 + $0x10] sm:$0xff]
  %v1500 = vld [vmem:[%s1 + $0x18] sm:$0xff]
  %v1501 = vld [vmem:[%s1 + $0x20] sm:$0xff]
  %v1502 = vld [vmem:[%s1 + $0x28] sm:$0xff]
  %v1503 = vld [vmem:[%s1 + $0x30] sm:$0xff]
  %v1504 = vld [vmem:[%s1 + $0x38] sm:$0xff]
  %v1506 = vsel %vm67, %v1497, 0
  %1508 = vmatpush.xpose.msra.mxu0 0.0
  %1509 = vmatpush.xpose.msra.mxu0 0.0
  %1510 = vmatpush.xpose.msra.mxu0 0.0
  %1511 = vmatpush.xpose.msra.mxu0 0.0
  %1512 = vmatpush.xpose.msra.mxu0 0.0
  %1513 = vmatpush.xpose.msra.mxu0 0.0
  %1514 = vmatpush.xpose.msra.mxu0 0.0
  %1515 = vmatpush.xpose.msra.mxu0 0.0
  %1516 = vmatpush.xpose.msra.mxu0 0.0
  %1517 = vmatpush.xpose.msra.mxu0 0.0
  %1518 = vmatpush.xpose.msra.mxu0 0.0
  %1519 = vmatpush.xpose.msra.mxu0 0.0
  %1520 = vmatpush.xpose.msra.mxu0 0.0
  %1521 = vmatpush.xpose.msra.mxu0 0.0
  %1522 = vmatpush.xpose.msra.mxu0 0.0
  %1523 = vmatpush.xpose.msra.mxu0 %v1506
  %1524 = vmatmul.f32.gmra.mxu0 %v166
  %v1525 = vpop.f32.mrf.mxu0
  %v1526 = vadd.f32 0.0, %v1525
  %1527 = vdwg.mxu0
  %v1529 = vsel %vm67, %v1498, 0
  %1531 = vmatpush.xpose.msra.mxu0 0.0
  %1532 = vmatpush.xpose.msra.mxu0 0.0
  %1533 = vmatpush.xpose.msra.mxu0 0.0
  %1534 = vmatpush.xpose.msra.mxu0 0.0
  %1535 = vmatpush.xpose.msra.mxu0 0.0
  %1536 = vmatpush.xpose.msra.mxu0 0.0
  %1537 = vmatpush.xpose.msra.mxu0 0.0
  %1538 = vmatpush.xpose.msra.mxu0 0.0
  %1539 = vmatpush.xpose.msra.mxu0 0.0
  %1540 = vmatpush.xpose.msra.mxu0 0.0
  %1541 = vmatpush.xpose.msra.mxu0 0.0
  %1542 = vmatpush.xpose.msra.mxu0 0.0
  %1543 = vmatpush.xpose.msra.mxu0 0.0
  %1544 = vmatpush.xpose.msra.mxu0 0.0
  %1545 = vmatpush.xpose.msra.mxu0 0.0
  %1546 = vmatpush.xpose.msra.mxu0 %v1529
  %1547 = vmatmul.f32.gmra.mxu0 %v194
  %v1548 = vpop.f32.mrf.mxu0
  %v1549 = vadd.f32 0.0, %v1548
  %1550 = vdwg.mxu0
  %v1552 = vsel %vm67, %v1499, 0
  %1554 = vmatpush.xpose.msra.mxu0 0.0
  %1555 = vmatpush.xpose.msra.mxu0 0.0
  %1556 = vmatpush.xpose.msra.mxu0 0.0
  %1557 = vmatpush.xpose.msra.mxu0 0.0
  %1558 = vmatpush.xpose.msra.mxu0 0.0
  %1559 = vmatpush.xpose.msra.mxu0 0.0
  %1560 = vmatpush.xpose.msra.mxu0 0.0
  %1561 = vmatpush.xpose.msra.mxu0 0.0
  %1562 = vmatpush.xpose.msra.mxu0 0.0
  %1563 = vmatpush.xpose.msra.mxu0 0.0
  %1564 = vmatpush.xpose.msra.mxu0 0.0
  %1565 = vmatpush.xpose.msra.mxu0 0.0
  %1566 = vmatpush.xpose.msra.mxu0 0.0
  %1567 = vmatpush.xpose.msra.mxu0 0.0
  %1568 = vmatpush.xpose.msra.mxu0 0.0
  %1569 = vmatpush.xpose.msra.mxu0 %v1552
  %1570 = vmatmul.f32.gmra.mxu0 %v222
  %v1571 = vpop.f32.mrf.mxu0
  %v1572 = vadd.f32 0.0, %v1571
  %1573 = vdwg.mxu0
  %v1575 = vsel %vm67, %v1500, 0
  %1577 = vmatpush.xpose.msra.mxu0 0.0
  %1578 = vmatpush.xpose.msra.mxu0 0.0
  %1579 = vmatpush.xpose.msra.mxu0 0.0
  %1580 = vmatpush.xpose.msra.mxu0 0.0
  %1581 = vmatpush.xpose.msra.mxu0 0.0
  %1582 = vmatpush.xpose.msra.mxu0 0.0
  %1583 = vmatpush.xpose.msra.mxu0 0.0
  %1584 = vmatpush.xpose.msra.mxu0 0.0
  %1585 = vmatpush.xpose.msra.mxu0 0.0
  %1586 = vmatpush.xpose.msra.mxu0 0.0
  %1587 = vmatpush.xpose.msra.mxu0 0.0
  %1588 = vmatpush.xpose.msra.mxu0 0.0
  %1589 = vmatpush.xpose.msra.mxu0 0.0
  %1590 = vmatpush.xpose.msra.mxu0 0.0
  %1591 = vmatpush.xpose.msra.mxu0 0.0
  %1592 = vmatpush.xpose.msra.mxu0 %v1575
  %1593 = vmatmul.f32.gmra.mxu0 %v250
  %v1594 = vpop.f32.mrf.mxu0
  %v1595 = vadd.f32 0.0, %v1594
  %1596 = vdwg.mxu0
  %v1598 = vsel %vm67, %v1501, 0
  %1600 = vmatpush.xpose.msra.mxu0 0.0
  %1601 = vmatpush.xpose.msra.mxu0 0.0
  %1602 = vmatpush.xpose.msra.mxu0 0.0
  %1603 = vmatpush.xpose.msra.mxu0 0.0
  %1604 = vmatpush.xpose.msra.mxu0 0.0
  %1605 = vmatpush.xpose.msra.mxu0 0.0
  %1606 = vmatpush.xpose.msra.mxu0 0.0
  %1607 = vmatpush.xpose.msra.mxu0 0.0
  %1608 = vmatpush.xpose.msra.mxu0 0.0
  %1609 = vmatpush.xpose.msra.mxu0 0.0
  %1610 = vmatpush.xpose.msra.mxu0 0.0
  %1611 = vmatpush.xpose.msra.mxu0 0.0
  %1612 = vmatpush.xpose.msra.mxu0 0.0
  %1613 = vmatpush.xpose.msra.mxu0 0.0
  %1614 = vmatpush.xpose.msra.mxu0 0.0
  %1615 = vmatpush.xpose.msra.mxu0 %v1598
  %1616 = vmatmul.f32.gmra.mxu0 %v278
  %v1617 = vpop.f32.mrf.mxu0
  %v1618 = vadd.f32 0.0, %v1617
  %1619 = vdwg.mxu0
  %v1621 = vsel %vm67, %v1502, 0
  %1623 = vmatpush.xpose.msra.mxu0 0.0
  %1624 = vmatpush.xpose.msra.mxu0 0.0
  %1625 = vmatpush.xpose.msra.mxu0 0.0
  %1626 = vmatpush.xpose.msra.mxu0 0.0
  %1627 = vmatpush.xpose.msra.mxu0 0.0
  %1628 = vmatpush.xpose.msra.mxu0 0.0
  %1629 = vmatpush.xpose.msra.mxu0 0.0
  %1630 = vmatpush.xpose.msra.mxu0 0.0
  %1631 = vmatpush.xpose.msra.mxu0 0.0
  %1632 = vmatpush.xpose.msra.mxu0 0.0
  %1633 = vmatpush.xpose.msra.mxu0 0.0
  %1634 = vmatpush.xpose.msra.mxu0 0.0
  %1635 = vmatpush.xpose.msra.mxu0 0.0
  %1636 = vmatpush.xpose.msra.mxu0 0.0
  %1637 = vmatpush.xpose.msra.mxu0 0.0
  %1638 = vmatpush.xpose.msra.mxu0 %v1621
  %1639 = vmatmul.f32.gmra.mxu0 %v306
  %v1640 = vpop.f32.mrf.mxu0
  %v1641 = vadd.f32 0.0, %v1640
  %1642 = vdwg.mxu0
  %v1644 = vsel %vm67, %v1503, 0
  %1646 = vmatpush.xpose.msra.mxu0 0.0
  %1647 = vmatpush.xpose.msra.mxu0 0.0
  %1648 = vmatpush.xpose.msra.mxu0 0.0
  %1649 = vmatpush.xpose.msra.mxu0 0.0
  %1650 = vmatpush.xpose.msra.mxu0 0.0
  %1651 = vmatpush.xpose.msra.mxu0 0.0
  %1652 = vmatpush.xpose.msra.mxu0 0.0
  %1653 = vmatpush.xpose.msra.mxu0 0.0
  %1654 = vmatpush.xpose.msra.mxu0 0.0
  %1655 = vmatpush.xpose.msra.mxu0 0.0
  %1656 = vmatpush.xpose.msra.mxu0 0.0
  %1657 = vmatpush.xpose.msra.mxu0 0.0
  %1658 = vmatpush.xpose.msra.mxu0 0.0
  %1659 = vmatpush.xpose.msra.mxu0 0.0
  %1660 = vmatpush.xpose.msra.mxu0 0.0
  %1661 = vmatpush.xpose.msra.mxu0 %v1644
  %1662 = vmatmul.f32.gmra.mxu0 %v334
  %v1663 = vpop.f32.mrf.mxu0
  %v1664 = vadd.f32 0.0, %v1663
  %1665 = vdwg.mxu0
  %v1667 = vsel %vm67, %v1504, 0
  %1669 = vmatpush.xpose.msra.mxu0 0.0
  %1670 = vmatpush.xpose.msra.mxu0 0.0
  %1671 = vmatpush.xpose.msra.mxu0 0.0
  %1672 = vmatpush.xpose.msra.mxu0 0.0
  %1673 = vmatpush.xpose.msra.mxu0 0.0
  %1674 = vmatpush.xpose.msra.mxu0 0.0
  %1675 = vmatpush.xpose.msra.mxu0 0.0
  %1676 = vmatpush.xpose.msra.mxu0 0.0
  %1677 = vmatpush.xpose.msra.mxu0 0.0
  %1678 = vmatpush.xpose.msra.mxu0 0.0
  %1679 = vmatpush.xpose.msra.mxu0 0.0
  %1680 = vmatpush.xpose.msra.mxu0 0.0
  %1681 = vmatpush.xpose.msra.mxu0 0.0
  %1682 = vmatpush.xpose.msra.mxu0 0.0
  %1683 = vmatpush.xpose.msra.mxu0 0.0
  %1684 = vmatpush.xpose.msra.mxu0 %v1667
  %1685 = vmatmul.f32.gmra.mxu0 %v362
  %v1686 = vpop.f32.mrf.mxu0
  %v1687 = vadd.f32 0.0, %v1686
  %1688 = vdwg.mxu0
  %v1689 = vsel %vm387, %v1526, -inf
  %1690 = vmax.xlane.f32.xlu0 %v1689
  %v1691 = vpop.xlane.xlu0 %1690
  %v1692 = vsel %vm387, %v1549, -inf
  %1693 = vmax.xlane.f32.xlu0 %v1692
  %v1694 = vpop.xlane.xlu0 %1693
  %v1695 = vsel %vm387, %v1572, -inf
  %1696 = vmax.xlane.f32.xlu0 %v1695
  %v1697 = vpop.xlane.xlu0 %1696
  %v1698 = vsel %vm387, %v1595, -inf
  %1699 = vmax.xlane.f32.xlu0 %v1698
  %v1700 = vpop.xlane.xlu0 %1699
  %v1701 = vsel %vm387, %v1618, -inf
  %1702 = vmax.xlane.f32.xlu0 %v1701
  %v1703 = vpop.xlane.xlu0 %1702
  %v1704 = vsel %vm387, %v1641, -inf
  %1705 = vmax.xlane.f32.xlu0 %v1704
  %v1706 = vpop.xlane.xlu0 %1705
  %v1707 = vsel %vm387, %v1664, -inf
  %1708 = vmax.xlane.f32.xlu0 %v1707
  %v1709 = vpop.xlane.xlu0 %1708
  %v1710 = vsel %vm387, %v1687, -inf
  %1711 = vmax.xlane.f32.xlu0 %v1710
  %v1712 = vpop.xlane.xlu0 %1711
  %v1713 = vsub.f32 %v1526, %v1691
  %v1714 = vsub.f32 %v1549, %v1694
  %v1715 = vsub.f32 %v1572, %v1697
  %v1716 = vsub.f32 %v1595, %v1700
  %v1717 = vsub.f32 %v1618, %v1703
  %v1718 = vsub.f32 %v1641, %v1706
  %v1719 = vsub.f32 %v1664, %v1709
  %v1720 = vsub.f32 %v1687, %v1712
  %v1721 = vmul.f32 %v1713, 1.442695
  %v1722 = vpow.pop %v1721
  %v1723 = vmul.f32 %v1714, 1.442695
  %v1724 = vpow.pop %v1723
  %v1725 = vmul.f32 %v1715, 1.442695
  %v1726 = vpow.pop %v1725
  %v1727 = vmul.f32 %v1716, 1.442695
  %v1728 = vpow.pop %v1727
  %v1729 = vmul.f32 %v1717, 1.442695
  %v1730 = vpow.pop %v1729
  %v1731 = vmul.f32 %v1718, 1.442695
  %v1732 = vpow.pop %v1731
  %v1733 = vmul.f32 %v1719, 1.442695
  %v1734 = vpow.pop %v1733
  %v1735 = vmul.f32 %v1720, 1.442695
  %v1736 = vpow.pop %v1735
  %v1737 = vsel %vm387, %v1722, 0.0
  %1738 = vadd.xlane.f32.xlu0 %v1737
  %v1739 = vpop.xlane.xlu0 %1738
  %v1740 = vsel %vm387, %v1724, 0.0
  %1741 = vadd.xlane.f32.xlu0 %v1740
  %v1742 = vpop.xlane.xlu0 %1741
  %v1743 = vsel %vm387, %v1726, 0.0
  %1744 = vadd.xlane.f32.xlu0 %v1743
  %v1745 = vpop.xlane.xlu0 %1744
  %v1746 = vsel %vm387, %v1728, 0.0
  %1747 = vadd.xlane.f32.xlu0 %v1746
  %v1748 = vpop.xlane.xlu0 %1747
  %v1749 = vsel %vm387, %v1730, 0.0
  %1750 = vadd.xlane.f32.xlu0 %v1749
  %v1751 = vpop.xlane.xlu0 %1750
  %v1752 = vsel %vm387, %v1732, 0.0
  %1753 = vadd.xlane.f32.xlu0 %v1752
  %v1754 = vpop.xlane.xlu0 %1753
  %v1755 = vsel %vm387, %v1734, 0.0
  %1756 = vadd.xlane.f32.xlu0 %v1755
  %v1757 = vpop.xlane.xlu0 %1756
  %v1758 = vsel %vm387, %v1736, 0.0
  %1759 = vadd.xlane.f32.xlu0 %v1758
  %v1760 = vpop.xlane.xlu0 %1759
  %v1761 = vrcp.pop %v1739
  %v1762 = vmul.f32 %v1739, %v1761
  %v1763 = vsub.f32 1.0, %v1762
  %v1764 = vmul.f32 %v1761, %v1763
  %v1765 = vadd.f32 %v1761, %v1764
  %vm1766 = vweird.f32 %v1739
  %vm1767 = vweird.f32 %v1761
  %vm1768 = vmor %vm1766, %vm1767
  %v1769 = vsel %vm1768, %v1761, %v1765
  %v1770 = vand.u32 2147483647, %v1739
  %vm1771 = vcmp.eq.f32.partialorder %v1770, 8.507059e+37
  %v1772 = vand.u32 %v1739, 2147483648
  %v1773 = vor.u32 1.1754944e-38, %v1772
  %v1774 = vsel %vm1771, %v1773, %v1769
  %v1775 = vmul.f32 %v1722, %v1774
  %v1776 = vrcp.pop %v1742
  %v1777 = vmul.f32 %v1742, %v1776
  %v1778 = vsub.f32 1.0, %v1777
  %v1779 = vmul.f32 %v1776, %v1778
  %v1780 = vadd.f32 %v1776, %v1779
  %vm1781 = vweird.f32 %v1742
  %vm1782 = vweird.f32 %v1776
  %vm1783 = vmor %vm1781, %vm1782
  %v1784 = vsel %vm1783, %v1776, %v1780
  %v1785 = vand.u32 2147483647, %v1742
  %vm1786 = vcmp.eq.f32.partialorder %v1785, 8.507059e+37
  %v1787 = vand.u32 %v1742, 2147483648
  %v1788 = vor.u32 1.1754944e-38, %v1787
  %v1789 = vsel %vm1786, %v1788, %v1784
  %v1790 = vmul.f32 %v1724, %v1789
  %v1791 = vrcp.pop %v1745
  %v1792 = vmul.f32 %v1745, %v1791
  %v1793 = vsub.f32 1.0, %v1792
  %v1794 = vmul.f32 %v1791, %v1793
  %v1795 = vadd.f32 %v1791, %v1794
  %vm1796 = vweird.f32 %v1745
  %vm1797 = vweird.f32 %v1791
  %vm1798 = vmor %vm1796, %vm1797
  %v1799 = vsel %vm1798, %v1791, %v1795
  %v1800 = vand.u32 2147483647, %v1745
  %vm1801 = vcmp.eq.f32.partialorder %v1800, 8.507059e+37
  %v1802 = vand.u32 %v1745, 2147483648
  %v1803 = vor.u32 1.1754944e-38, %v1802
  %v1804 = vsel %vm1801, %v1803, %v1799
  %v1805 = vmul.f32 %v1726, %v1804
  %v1806 = vrcp.pop %v1748
  %v1807 = vmul.f32 %v1748, %v1806
  %v1808 = vsub.f32 1.0, %v1807
  %v1809 = vmul.f32 %v1806, %v1808
  %v1810 = vadd.f32 %v1806, %v1809
  %vm1811 = vweird.f32 %v1748
  %vm1812 = vweird.f32 %v1806
  %vm1813 = vmor %vm1811, %vm1812
  %v1814 = vsel %vm1813, %v1806, %v1810
  %v1815 = vand.u32 2147483647, %v1748
  %vm1816 = vcmp.eq.f32.partialorder %v1815, 8.507059e+37
  %v1817 = vand.u32 %v1748, 2147483648
  %v1818 = vor.u32 1.1754944e-38, %v1817
  %v1819 = vsel %vm1816, %v1818, %v1814
  %v1820 = vmul.f32 %v1728, %v1819
  %v1821 = vrcp.pop %v1751
  %v1822 = vmul.f32 %v1751, %v1821
  %v1823 = vsub.f32 1.0, %v1822
  %v1824 = vmul.f32 %v1821, %v1823
  %v1825 = vadd.f32 %v1821, %v1824
  %vm1826 = vweird.f32 %v1751
  %vm1827 = vweird.f32 %v1821
  %vm1828 = vmor %vm1826, %vm1827
  %v1829 = vsel %vm1828, %v1821, %v1825
  %v1830 = vand.u32 2147483647, %v1751
  %vm1831 = vcmp.eq.f32.partialorder %v1830, 8.507059e+37
  %v1832 = vand.u32 %v1751, 2147483648
  %v1833 = vor.u32 1.1754944e-38, %v1832
  %v1834 = vsel %vm1831, %v1833, %v1829
  %v1835 = vmul.f32 %v1730, %v1834
  %v1836 = vrcp.pop %v1754
  %v1837 = vmul.f32 %v1754, %v1836
  %v1838 = vsub.f32 1.0, %v1837
  %v1839 = vmul.f32 %v1836, %v1838
  %v1840 = vadd.f32 %v1836, %v1839
  %vm1841 = vweird.f32 %v1754
  %vm1842 = vweird.f32 %v1836
  %vm1843 = vmor %vm1841, %vm1842
  %v1844 = vsel %vm1843, %v1836, %v1840
  %v1845 = vand.u32 2147483647, %v1754
  %vm1846 = vcmp.eq.f32.partialorder %v1845, 8.507059e+37
  %v1847 = vand.u32 %v1754, 2147483648
  %v1848 = vor.u32 1.1754944e-38, %v1847
  %v1849 = vsel %vm1846, %v1848, %v1844
  %v1850 = vmul.f32 %v1732, %v1849
  %v1851 = vrcp.pop %v1757
  %v1852 = vmul.f32 %v1757, %v1851
  %v1853 = vsub.f32 1.0, %v1852
  %v1854 = vmul.f32 %v1851, %v1853
  %v1855 = vadd.f32 %v1851, %v1854
  %vm1856 = vweird.f32 %v1757
  %vm1857 = vweird.f32 %v1851
  %vm1858 = vmor %vm1856, %vm1857
  %v1859 = vsel %vm1858, %v1851, %v1855
  %v1860 = vand.u32 2147483647, %v1757
  %vm1861 = vcmp.eq.f32.partialorder %v1860, 8.507059e+37
  %v1862 = vand.u32 %v1757, 2147483648
  %v1863 = vor.u32 1.1754944e-38, %v1862
  %v1864 = vsel %vm1861, %v1863, %v1859
  %v1865 = vmul.f32 %v1734, %v1864
  %v1866 = vrcp.pop %v1760
  %v1867 = vmul.f32 %v1760, %v1866
  %v1868 = vsub.f32 1.0, %v1867
  %v1869 = vmul.f32 %v1866, %v1868
  %v1870 = vadd.f32 %v1866, %v1869
  %vm1871 = vweird.f32 %v1760
  %vm1872 = vweird.f32 %v1866
  %vm1873 = vmor %vm1871, %vm1872
  %v1874 = vsel %vm1873, %v1866, %v1870
  %v1875 = vand.u32 2147483647, %v1760
  %vm1876 = vcmp.eq.f32.partialorder %v1875, 8.507059e+37
  %v1877 = vand.u32 %v1760, 2147483648
  %v1878 = vor.u32 1.1754944e-38, %v1877
  %v1879 = vsel %vm1876, %v1878, %v1874
  %v1880 = vmul.f32 %v1736, %v1879
  %v1882 = vsel %vm580, %v1775, 0
  %1884 = vmatpush.msra.mxu0 0.0
  %1885 = vmatpush.msra.mxu0 0.0
  %1886 = vmatpush.msra.mxu0 0.0
  %1887 = vmatpush.msra.mxu0 0.0
  %1888 = vmatpush.msra.mxu0 0.0
  %1889 = vmatpush.msra.mxu0 0.0
  %1890 = vmatpush.msra.mxu0 0.0
  %1891 = vmatpush.msra.mxu0 0.0
  %1892 = vmatpush.msra.mxu0 0.0
  %1893 = vmatpush.msra.mxu0 0.0
  %1894 = vmatpush.msra.mxu0 0.0
  %1895 = vmatpush.msra.mxu0 0.0
  %1896 = vmatpush.msra.mxu0 0.0
  %1897 = vmatpush.msra.mxu0 0.0
  %1898 = vmatpush.msra.mxu0 0.0
  %1899 = vmatpush.msra.mxu0 %v1497
  %1900 = vmatmul.f32.gmra.mxu0 %v1882
  %v1901 = vpop.f32.mrf.mxu0
  %v1902 = vadd.f32 0.0, %v1901
  %1903 = vdwg.mxu0
  %v1905 = vsel %vm580, %v1790, 0
  %1907 = vmatpush.msra.mxu0 0.0
  %1908 = vmatpush.msra.mxu0 0.0
  %1909 = vmatpush.msra.mxu0 0.0
  %1910 = vmatpush.msra.mxu0 0.0
  %1911 = vmatpush.msra.mxu0 0.0
  %1912 = vmatpush.msra.mxu0 0.0
  %1913 = vmatpush.msra.mxu0 0.0
  %1914 = vmatpush.msra.mxu0 0.0
  %1915 = vmatpush.msra.mxu0 0.0
  %1916 = vmatpush.msra.mxu0 0.0
  %1917 = vmatpush.msra.mxu0 0.0
  %1918 = vmatpush.msra.mxu0 0.0
  %1919 = vmatpush.msra.mxu0 0.0
  %1920 = vmatpush.msra.mxu0 0.0
  %1921 = vmatpush.msra.mxu0 0.0
  %1922 = vmatpush.msra.mxu0 %v1498
  %1923 = vmatmul.f32.gmra.mxu0 %v1905
  %v1924 = vpop.f32.mrf.mxu0
  %v1925 = vadd.f32 0.0, %v1924
  %1926 = vdwg.mxu0
  %v1928 = vsel %vm580, %v1805, 0
  %1930 = vmatpush.msra.mxu0 0.0
  %1931 = vmatpush.msra.mxu0 0.0
  %1932 = vmatpush.msra.mxu0 0.0
  %1933 = vmatpush.msra.mxu0 0.0
  %1934 = vmatpush.msra.mxu0 0.0
  %1935 = vmatpush.msra.mxu0 0.0
  %1936 = vmatpush.msra.mxu0 0.0
  %1937 = vmatpush.msra.mxu0 0.0
  %1938 = vmatpush.msra.mxu0 0.0
  %1939 = vmatpush.msra.mxu0 0.0
  %1940 = vmatpush.msra.mxu0 0.0
  %1941 = vmatpush.msra.mxu0 0.0
  %1942 = vmatpush.msra.mxu0 0.0
  %1943 = vmatpush.msra.mxu0 0.0
  %1944 = vmatpush.msra.mxu0 0.0
  %1945 = vmatpush.msra.mxu0 %v1499
  %1946 = vmatmul.f32.gmra.mxu0 %v1928
  %v1947 = vpop.f32.mrf.mxu0
  %v1948 = vadd.f32 0.0, %v1947
  %1949 = vdwg.mxu0
  %v1951 = vsel %vm580, %v1820, 0
  %1953 = vmatpush.msra.mxu0 0.0
  %1954 = vmatpush.msra.mxu0 0.0
  %1955 = vmatpush.msra.mxu0 0.0
  %1956 = vmatpush.msra.mxu0 0.0
  %1957 = vmatpush.msra.mxu0 0.0
  %1958 = vmatpush.msra.mxu0 0.0
  %1959 = vmatpush.msra.mxu0 0.0
  %1960 = vmatpush.msra.mxu0 0.0
  %1961 = vmatpush.msra.mxu0 0.0
  %1962 = vmatpush.msra.mxu0 0.0
  %1963 = vmatpush.msra.mxu0 0.0
  %1964 = vmatpush.msra.mxu0 0.0
  %1965 = vmatpush.msra.mxu0 0.0
  %1966 = vmatpush.msra.mxu0 0.0
  %1967 = vmatpush.msra.mxu0 0.0
  %1968 = vmatpush.msra.mxu0 %v1500
  %1969 = vmatmul.f32.gmra.mxu0 %v1951
  %v1970 = vpop.f32.mrf.mxu0
  %v1971 = vadd.f32 0.0, %v1970
  %1972 = vdwg.mxu0
  %v1974 = vsel %vm580, %v1835, 0
  %1976 = vmatpush.msra.mxu0 0.0
  %1977 = vmatpush.msra.mxu0 0.0
  %1978 = vmatpush.msra.mxu0 0.0
  %1979 = vmatpush.msra.mxu0 0.0
  %1980 = vmatpush.msra.mxu0 0.0
  %1981 = vmatpush.msra.mxu0 0.0
  %1982 = vmatpush.msra.mxu0 0.0
  %1983 = vmatpush.msra.mxu0 0.0
  %1984 = vmatpush.msra.mxu0 0.0
  %1985 = vmatpush.msra.mxu0 0.0
  %1986 = vmatpush.msra.mxu0 0.0
  %1987 = vmatpush.msra.mxu0 0.0
  %1988 = vmatpush.msra.mxu0 0.0
  %1989 = vmatpush.msra.mxu0 0.0
  %1990 = vmatpush.msra.mxu0 0.0
  %1991 = vmatpush.msra.mxu0 %v1501
  %1992 = vmatmul.f32.gmra.mxu0 %v1974
  %v1993 = vpop.f32.mrf.mxu0
  %v1994 = vadd.f32 0.0, %v1993
  %1995 = vdwg.mxu0
  %v1997 = vsel %vm580, %v1850, 0
  %1999 = vmatpush.msra.mxu0 0.0
  %2000 = vmatpush.msra.mxu0 0.0
  %2001 = vmatpush.msra.mxu0 0.0
  %2002 = vmatpush.msra.mxu0 0.0
  %2003 = vmatpush.msra.mxu0 0.0
  %2004 = vmatpush.msra.mxu0 0.0
  %2005 = vmatpush.msra.mxu0 0.0
  %2006 = vmatpush.msra.mxu0 0.0
  %2007 = vmatpush.msra.mxu0 0.0
  %2008 = vmatpush.msra.mxu0 0.0
  %2009 = vmatpush.msra.mxu0 0.0
  %2010 = vmatpush.msra.mxu0 0.0
  %2011 = vmatpush.msra.mxu0 0.0
  %2012 = vmatpush.msra.mxu0 0.0
  %2013 = vmatpush.msra.mxu0 0.0
  %2014 = vmatpush.msra.mxu0 %v1502
  %2015 = vmatmul.f32.gmra.mxu0 %v1997
  %v2016 = vpop.f32.mrf.mxu0
  %v2017 = vadd.f32 0.0, %v2016
  %2018 = vdwg.mxu0
  %v2020 = vsel %vm580, %v1865, 0
  %2022 = vmatpush.msra.mxu0 0.0
  %2023 = vmatpush.msra.mxu0 0.0
  %2024 = vmatpush.msra.mxu0 0.0
  %2025 = vmatpush.msra.mxu0 0.0
  %2026 = vmatpush.msra.mxu0 0.0
  %2027 = vmatpush.msra.mxu0 0.0
  %2028 = vmatpush.msra.mxu0 0.0
  %2029 = vmatpush.msra.mxu0 0.0
  %2030 = vmatpush.msra.mxu0 0.0
  %2031 = vmatpush.msra.mxu0 0.0
  %2032 = vmatpush.msra.mxu0 0.0
  %2033 = vmatpush.msra.mxu0 0.0
  %2034 = vmatpush.msra.mxu0 0.0
  %2035 = vmatpush.msra.mxu0 0.0
  %2036 = vmatpush.msra.mxu0 0.0
  %2037 = vmatpush.msra.mxu0 %v1503
  %2038 = vmatmul.f32.gmra.mxu0 %v2020
  %v2039 = vpop.f32.mrf.mxu0
  %v2040 = vadd.f32 0.0, %v2039
  %2041 = vdwg.mxu0
  %v2043 = vsel %vm580, %v1880, 0
  %2045 = vmatpush.msra.mxu0 0.0
  %2046 = vmatpush.msra.mxu0 0.0
  %2047 = vmatpush.msra.mxu0 0.0
  %2048 = vmatpush.msra.mxu0 0.0
  %2049 = vmatpush.msra.mxu0 0.0
  %2050 = vmatpush.msra.mxu0 0.0
  %2051 = vmatpush.msra.mxu0 0.0
  %2052 = vmatpush.msra.mxu0 0.0
  %2053 = vmatpush.msra.mxu0 0.0
  %2054 = vmatpush.msra.mxu0 0.0
  %2055 = vmatpush.msra.mxu0 0.0
  %2056 = vmatpush.msra.mxu0 0.0
  %2057 = vmatpush.msra.mxu0 0.0
  %2058 = vmatpush.msra.mxu0 0.0
  %2059 = vmatpush.msra.mxu0 0.0
  %2060 = vmatpush.msra.mxu0 %v1504
  %2061 = vmatmul.f32.gmra.mxu0 %v2043
  %v2062 = vpop.f32.mrf.mxu0
  %v2063 = vadd.f32 0.0, %v2062
  %2064 = vdwg.mxu0
  %v2073 = vrot.slane %v1925, 7
  %v2074 = vsel %vm777, %v2073, %v1902
  %v2075 = vrot.slane %v1948, 6
  %v2076 = vsel %vm780, %v2075, %v2074
  %v2077 = vrot.slane %v1971, 5
  %v2078 = vsel %vm783, %v2077, %v2076
  %v2079 = vrot.slane %v1994, 4
  %v2080 = vsel %vm786, %v2079, %v2078
  %v2081 = vrot.slane %v2017, 3
  %v2082 = vsel %vm789, %v2081, %v2080
  %v2083 = vrot.slane %v2040, 2
  %v2084 = vsel %vm792, %v2083, %v2082
  %v2085 = vrot.slane %v2063, 1
  %v2086 = vsel %vm795, %v2085, %v2084
  %2087 = vrot.lane.b32.xlu0 %v2086, 16
  %v2088 = vpop.permute.xlu0 %2087
  %v2090 = vsel %vm67, %v766, %v2088
  %v2092 = vsel %vm91, %v2090, 0
  %2094 = vmatpush.msra.mxu0 0.0
  %2095 = vmatpush.msra.mxu0 0.0
  %2096 = vmatpush.msra.mxu0 0.0
  %2097 = vmatpush.msra.mxu0 0.0
  %2098 = vmatpush.msra.mxu0 0.0
  %2099 = vmatpush.msra.mxu0 0.0
  %2100 = vmatpush.msra.mxu0 0.0
  %2101 = vmatpush.msra.mxu0 0.0
  %2102 = vmatpush.msra.mxu0 0.0
  %2103 = vmatpush.msra.mxu0 0.0
  %2104 = vmatpush.msra.mxu0 0.0
  %2105 = vmatpush.msra.mxu0 0.0
  %2106 = vmatpush.msra.mxu0 %v55
  %2107 = vmatpush.msra.mxu0 %v54
  %2108 = vmatpush.msra.mxu0 %v53
  %2109 = vmatpush.msra.mxu0 %v52
  %2110 = vmatmul.f32.gmra.mxu0 %v2092
  %v2111 = vpop.f32.mrf.mxu0
  %v2112 = vadd.f32 %v821, %v2111
  %2113 = vdwg.mxu0
  %v2114 = vadd.f32 %v2112, %v115
  %v2115 = vxor.u32 %v2114, 2147483648
  %v2116 = vmul.f32 %v2115, 1.442695
  %v2117 = vpow.pop %v2116
  %v2118 = vadd.f32 %v2117, 1.0
  %v2119 = vrcp.pop %v2118
  %v2120 = vmul.f32 %v2118, %v2119
  %v2121 = vsub.f32 1.0, %v2120
  %v2122 = vmul.f32 %v2119, %v2121
  %v2123 = vadd.f32 %v2119, %v2122
  %vm2124 = vweird.f32 %v2118
  %vm2125 = vweird.f32 %v2119
  %vm2126 = vmor %vm2124, %vm2125
  %v2127 = vsel %vm2126, %v2119, %v2123
  %v2128 = vand.u32 2147483647, %v2118
  %vm2129 = vcmp.eq.f32.partialorder %v2128, 8.507059e+37
  %v2130 = vand.u32 %v2118, 2147483648
  %v2131 = vor.u32 1.1754944e-38, %v2130
  %v2132 = vsel %vm2129, %v2131, %v2127
  %v2133 = vmul.f32 1.0, %v2132
  %v2134 = vtanh.pop %v2114
  %v2135 = vmul.f32 %v2133, %v148
  %2137 = vrot.lane.b32.xlu0 %v2134, 96
  %v2138 = vpop.permute.xlu0 %2137
  %v2140 = vmul.f32 %v2133, %v2138
  %2142 = vrot.lane.b32.xlu0 %v2140, 16
  %v2143 = vpop.permute.xlu0 %2142
  %v2145 = vadd.f32 %v2135, %v2143
  %v2146 = vtanh.pop %v2145
  %2148 = vrot.lane.b32.xlu0 %v2146, 32
  %v2149 = vpop.permute.xlu0 %2148
  %v2151 = vmul.f32 %v2133, %v2149
  %v2153 = vrot.slane %v2151, 1
  %v2154 = vrot.slane %v2151, 2
  %v2155 = vrot.slane %v2151, 3
  %v2156 = vrot.slane %v2151, 4
  %v2157 = vrot.slane %v2151, 5
  %v2158 = vrot.slane %v2151, 6
  %v2159 = vrot.slane %v2151, 7
  %v2160 = vperm.slane %v2151, 0
  %2161 = vrot.lane.b32.xlu0 %v2160, 80
  %v2162 = vpop.permute.xlu0 %2161
  %v2163 = vsel %vm67, %v2162, 0
  %2165 = vmatpush.xpose.msra.mxu0 0.0
  %2166 = vmatpush.xpose.msra.mxu0 0.0
  %2167 = vmatpush.xpose.msra.mxu0 0.0
  %2168 = vmatpush.xpose.msra.mxu0 0.0
  %2169 = vmatpush.xpose.msra.mxu0 0.0
  %2170 = vmatpush.xpose.msra.mxu0 0.0
  %2171 = vmatpush.xpose.msra.mxu0 0.0
  %2172 = vmatpush.xpose.msra.mxu0 0.0
  %2173 = vmatpush.xpose.msra.mxu0 0.0
  %2174 = vmatpush.xpose.msra.mxu0 0.0
  %2175 = vmatpush.xpose.msra.mxu0 0.0
  %2176 = vmatpush.xpose.msra.mxu0 0.0
  %2177 = vmatpush.xpose.msra.mxu0 0.0
  %2178 = vmatpush.xpose.msra.mxu0 0.0
  %2179 = vmatpush.xpose.msra.mxu0 0.0
  %2180 = vmatpush.xpose.msra.mxu0 %v1506
  %2181 = vmatmul.f32.gmra.mxu0 %v2163
  %v2182 = vpop.f32.mrf.mxu0
  %v2183 = vadd.f32 0.0, %v2182
  %2184 = vdwg.mxu0
  %v2185 = vperm.slane %v2153, 0
  %2186 = vrot.lane.b32.xlu0 %v2185, 80
  %v2187 = vpop.permute.xlu0 %2186
  %v2188 = vsel %vm67, %v2187, 0
  %2190 = vmatpush.xpose.msra.mxu0 0.0
  %2191 = vmatpush.xpose.msra.mxu0 0.0
  %2192 = vmatpush.xpose.msra.mxu0 0.0
  %2193 = vmatpush.xpose.msra.mxu0 0.0
  %2194 = vmatpush.xpose.msra.mxu0 0.0
  %2195 = vmatpush.xpose.msra.mxu0 0.0
  %2196 = vmatpush.xpose.msra.mxu0 0.0
  %2197 = vmatpush.xpose.msra.mxu0 0.0
  %2198 = vmatpush.xpose.msra.mxu0 0.0
  %2199 = vmatpush.xpose.msra.mxu0 0.0
  %2200 = vmatpush.xpose.msra.mxu0 0.0
  %2201 = vmatpush.xpose.msra.mxu0 0.0
  %2202 = vmatpush.xpose.msra.mxu0 0.0
  %2203 = vmatpush.xpose.msra.mxu0 0.0
  %2204 = vmatpush.xpose.msra.mxu0 0.0
  %2205 = vmatpush.xpose.msra.mxu0 %v1529
  %2206 = vmatmul.f32.gmra.mxu0 %v2188
  %v2207 = vpop.f32.mrf.mxu0
  %v2208 = vadd.f32 0.0, %v2207
  %2209 = vdwg.mxu0
  %v2210 = vperm.slane %v2154, 0
  %2211 = vrot.lane.b32.xlu0 %v2210, 80
  %v2212 = vpop.permute.xlu0 %2211
  %v2213 = vsel %vm67, %v2212, 0
  %2215 = vmatpush.xpose.msra.mxu0 0.0
  %2216 = vmatpush.xpose.msra.mxu0 0.0
  %2217 = vmatpush.xpose.msra.mxu0 0.0
  %2218 = vmatpush.xpose.msra.mxu0 0.0
  %2219 = vmatpush.xpose.msra.mxu0 0.0
  %2220 = vmatpush.xpose.msra.mxu0 0.0
  %2221 = vmatpush.xpose.msra.mxu0 0.0
  %2222 = vmatpush.xpose.msra.mxu0 0.0
  %2223 = vmatpush.xpose.msra.mxu0 0.0
  %2224 = vmatpush.xpose.msra.mxu0 0.0
  %2225 = vmatpush.xpose.msra.mxu0 0.0
  %2226 = vmatpush.xpose.msra.mxu0 0.0
  %2227 = vmatpush.xpose.msra.mxu0 0.0
  %2228 = vmatpush.xpose.msra.mxu0 0.0
  %2229 = vmatpush.xpose.msra.mxu0 0.0
  %2230 = vmatpush.xpose.msra.mxu0 %v1552
  %2231 = vmatmul.f32.gmra.mxu0 %v2213
  %v2232 = vpop.f32.mrf.mxu0
  %v2233 = vadd.f32 0.0, %v2232
  %2234 = vdwg.mxu0
  %v2235 = vperm.slane %v2155, 0
  %2236 = vrot.lane.b32.xlu0 %v2235, 80
  %v2237 = vpop.permute.xlu0 %2236
  %v2238 = vsel %vm67, %v2237, 0
  %2240 = vmatpush.xpose.msra.mxu0 0.0
  %2241 = vmatpush.xpose.msra.mxu0 0.0
  %2242 = vmatpush.xpose.msra.mxu0 0.0
  %2243 = vmatpush.xpose.msra.mxu0 0.0
  %2244 = vmatpush.xpose.msra.mxu0 0.0
  %2245 = vmatpush.xpose.msra.mxu0 0.0
  %2246 = vmatpush.xpose.msra.mxu0 0.0
  %2247 = vmatpush.xpose.msra.mxu0 0.0
  %2248 = vmatpush.xpose.msra.mxu0 0.0
  %2249 = vmatpush.xpose.msra.mxu0 0.0
  %2250 = vmatpush.xpose.msra.mxu0 0.0
  %2251 = vmatpush.xpose.msra.mxu0 0.0
  %2252 = vmatpush.xpose.msra.mxu0 0.0
  %2253 = vmatpush.xpose.msra.mxu0 0.0
  %2254 = vmatpush.xpose.msra.mxu0 0.0
  %2255 = vmatpush.xpose.msra.mxu0 %v1575
  %2256 = vmatmul.f32.gmra.mxu0 %v2238
  %v2257 = vpop.f32.mrf.mxu0
  %v2258 = vadd.f32 0.0, %v2257
  %2259 = vdwg.mxu0
  %v2260 = vperm.slane %v2156, 0
  %2261 = vrot.lane.b32.xlu0 %v2260, 80
  %v2262 = vpop.permute.xlu0 %2261
  %v2263 = vsel %vm67, %v2262, 0
  %2265 = vmatpush.xpose.msra.mxu0 0.0
  %2266 = vmatpush.xpose.msra.mxu0 0.0
  %2267 = vmatpush.xpose.msra.mxu0 0.0
  %2268 = vmatpush.xpose.msra.mxu0 0.0
  %2269 = vmatpush.xpose.msra.mxu0 0.0
  %2270 = vmatpush.xpose.msra.mxu0 0.0
  %2271 = vmatpush.xpose.msra.mxu0 0.0
  %2272 = vmatpush.xpose.msra.mxu0 0.0
  %2273 = vmatpush.xpose.msra.mxu0 0.0
  %2274 = vmatpush.xpose.msra.mxu0 0.0
  %2275 = vmatpush.xpose.msra.mxu0 0.0
  %2276 = vmatpush.xpose.msra.mxu0 0.0
  %2277 = vmatpush.xpose.msra.mxu0 0.0
  %2278 = vmatpush.xpose.msra.mxu0 0.0
  %2279 = vmatpush.xpose.msra.mxu0 0.0
  %2280 = vmatpush.xpose.msra.mxu0 %v1598
  %2281 = vmatmul.f32.gmra.mxu0 %v2263
  %v2282 = vpop.f32.mrf.mxu0
  %v2283 = vadd.f32 0.0, %v2282
  %2284 = vdwg.mxu0
  %v2285 = vperm.slane %v2157, 0
  %2286 = vrot.lane.b32.xlu0 %v2285, 80
  %v2287 = vpop.permute.xlu0 %2286
  %v2288 = vsel %vm67, %v2287, 0
  %2290 = vmatpush.xpose.msra.mxu0 0.0
  %2291 = vmatpush.xpose.msra.mxu0 0.0
  %2292 = vmatpush.xpose.msra.mxu0 0.0
  %2293 = vmatpush.xpose.msra.mxu0 0.0
  %2294 = vmatpush.xpose.msra.mxu0 0.0
  %2295 = vmatpush.xpose.msra.mxu0 0.0
  %2296 = vmatpush.xpose.msra.mxu0 0.0
  %2297 = vmatpush.xpose.msra.mxu0 0.0
  %2298 = vmatpush.xpose.msra.mxu0 0.0
  %2299 = vmatpush.xpose.msra.mxu0 0.0
  %2300 = vmatpush.xpose.msra.mxu0 0.0
  %2301 = vmatpush.xpose.msra.mxu0 0.0
  %2302 = vmatpush.xpose.msra.mxu0 0.0
  %2303 = vmatpush.xpose.msra.mxu0 0.0
  %2304 = vmatpush.xpose.msra.mxu0 0.0
  %2305 = vmatpush.xpose.msra.mxu0 %v1621
  %2306 = vmatmul.f32.gmra.mxu0 %v2288
  %v2307 = vpop.f32.mrf.mxu0
  %v2308 = vadd.f32 0.0, %v2307
  %2309 = vdwg.mxu0
  %v2310 = vperm.slane %v2158, 0
  %2311 = vrot.lane.b32.xlu0 %v2310, 80
  %v2312 = vpop.permute.xlu0 %2311
  %v2313 = vsel %vm67, %v2312, 0
  %2315 = vmatpush.xpose.msra.mxu0 0.0
  %2316 = vmatpush.xpose.msra.mxu0 0.0
  %2317 = vmatpush.xpose.msra.mxu0 0.0
  %2318 = vmatpush.xpose.msra.mxu0 0.0
  %2319 = vmatpush.xpose.msra.mxu0 0.0
  %2320 = vmatpush.xpose.msra.mxu0 0.0
  %2321 = vmatpush.xpose.msra.mxu0 0.0
  %2322 = vmatpush.xpose.msra.mxu0 0.0
  %2323 = vmatpush.xpose.msra.mxu0 0.0
  %2324 = vmatpush.xpose.msra.mxu0 0.0
  %2325 = vmatpush.xpose.msra.mxu0 0.0
  %2326 = vmatpush.xpose.msra.mxu0 0.0
  %2327 = vmatpush.xpose.msra.mxu0 0.0
  %2328 = vmatpush.xpose.msra.mxu0 0.0
  %2329 = vmatpush.xpose.msra.mxu0 0.0
  %2330 = vmatpush.xpose.msra.mxu0 %v1644
  %2331 = vmatmul.f32.gmra.mxu0 %v2313
  %v2332 = vpop.f32.mrf.mxu0
  %v2333 = vadd.f32 0.0, %v2332
  %2334 = vdwg.mxu0
  %v2335 = vperm.slane %v2159, 0
  %2336 = vrot.lane.b32.xlu0 %v2335, 80
  %v2337 = vpop.permute.xlu0 %2336
  %v2338 = vsel %vm67, %v2337, 0
  %2340 = vmatpush.xpose.msra.mxu0 0.0
  %2341 = vmatpush.xpose.msra.mxu0 0.0
  %2342 = vmatpush.xpose.msra.mxu0 0.0
  %2343 = vmatpush.xpose.msra.mxu0 0.0
  %2344 = vmatpush.xpose.msra.mxu0 0.0
  %2345 = vmatpush.xpose.msra.mxu0 0.0
  %2346 = vmatpush.xpose.msra.mxu0 0.0
  %2347 = vmatpush.xpose.msra.mxu0 0.0
  %2348 = vmatpush.xpose.msra.mxu0 0.0
  %2349 = vmatpush.xpose.msra.mxu0 0.0
  %2350 = vmatpush.xpose.msra.mxu0 0.0
  %2351 = vmatpush.xpose.msra.mxu0 0.0
  %2352 = vmatpush.xpose.msra.mxu0 0.0
  %2353 = vmatpush.xpose.msra.mxu0 0.0
  %2354 = vmatpush.xpose.msra.mxu0 0.0
  %2355 = vmatpush.xpose.msra.mxu0 %v1667
  %2356 = vmatmul.f32.gmra.mxu0 %v2338
  %v2357 = vpop.f32.mrf.mxu0
  %v2358 = vadd.f32 0.0, %v2357
  %2359 = vdwg.mxu0
  %v2360 = vsel %vm387, %v2183, -inf
  %2361 = vmax.xlane.f32.xlu0 %v2360
  %v2362 = vpop.xlane.xlu0 %2361
  %v2363 = vsel %vm387, %v2208, -inf
  %2364 = vmax.xlane.f32.xlu0 %v2363
  %v2365 = vpop.xlane.xlu0 %2364
  %v2366 = vsel %vm387, %v2233, -inf
  %2367 = vmax.xlane.f32.xlu0 %v2366
  %v2368 = vpop.xlane.xlu0 %2367
  %v2369 = vsel %vm387, %v2258, -inf
  %2370 = vmax.xlane.f32.xlu0 %v2369
  %v2371 = vpop.xlane.xlu0 %2370
  %v2372 = vsel %vm387, %v2283, -inf
  %2373 = vmax.xlane.f32.xlu0 %v2372
  %v2374 = vpop.xlane.xlu0 %2373
  %v2375 = vsel %vm387, %v2308, -inf
  %2376 = vmax.xlane.f32.xlu0 %v2375
  %v2377 = vpop.xlane.xlu0 %2376
  %v2378 = vsel %vm387, %v2333, -inf
  %2379 = vmax.xlane.f32.xlu0 %v2378
  %v2380 = vpop.xlane.xlu0 %2379
  %v2381 = vsel %vm387, %v2358, -inf
  %2382 = vmax.xlane.f32.xlu0 %v2381
  %v2383 = vpop.xlane.xlu0 %2382
  %v2384 = vsub.f32 %v2183, %v2362
  %v2385 = vsub.f32 %v2208, %v2365
  %v2386 = vsub.f32 %v2233, %v2368
  %v2387 = vsub.f32 %v2258, %v2371
  %v2388 = vsub.f32 %v2283, %v2374
  %v2389 = vsub.f32 %v2308, %v2377
  %v2390 = vsub.f32 %v2333, %v2380
  %v2391 = vsub.f32 %v2358, %v2383
  %v2392 = vmul.f32 %v2384, 1.442695
  %v2393 = vpow.pop %v2392
  %v2394 = vmul.f32 %v2385, 1.442695
  %v2395 = vpow.pop %v2394
  %v2396 = vmul.f32 %v2386, 1.442695
  %v2397 = vpow.pop %v2396
  %v2398 = vmul.f32 %v2387, 1.442695
  %v2399 = vpow.pop %v2398
  %v2400 = vmul.f32 %v2388, 1.442695
  %v2401 = vpow.pop %v2400
  %v2402 = vmul.f32 %v2389, 1.442695
  %v2403 = vpow.pop %v2402
  %v2404 = vmul.f32 %v2390, 1.442695
  %v2405 = vpow.pop %v2404
  %v2406 = vmul.f32 %v2391, 1.442695
  %v2407 = vpow.pop %v2406
  %v2408 = vsel %vm387, %v2393, 0.0
  %2409 = vadd.xlane.f32.xlu0 %v2408
  %v2410 = vpop.xlane.xlu0 %2409
  %v2411 = vsel %vm387, %v2395, 0.0
  %2412 = vadd.xlane.f32.xlu0 %v2411
  %v2413 = vpop.xlane.xlu0 %2412
  %v2414 = vsel %vm387, %v2397, 0.0
  %2415 = vadd.xlane.f32.xlu0 %v2414
  %v2416 = vpop.xlane.xlu0 %2415
  %v2417 = vsel %vm387, %v2399, 0.0
  %2418 = vadd.xlane.f32.xlu0 %v2417
  %v2419 = vpop.xlane.xlu0 %2418
  %v2420 = vsel %vm387, %v2401, 0.0
  %2421 = vadd.xlane.f32.xlu0 %v2420
  %v2422 = vpop.xlane.xlu0 %2421
  %v2423 = vsel %vm387, %v2403, 0.0
  %2424 = vadd.xlane.f32.xlu0 %v2423
  %v2425 = vpop.xlane.xlu0 %2424
  %v2426 = vsel %vm387, %v2405, 0.0
  %2427 = vadd.xlane.f32.xlu0 %v2426
  %v2428 = vpop.xlane.xlu0 %2427
  %v2429 = vsel %vm387, %v2407, 0.0
  %2430 = vadd.xlane.f32.xlu0 %v2429
  %v2431 = vpop.xlane.xlu0 %2430
  %v2432 = vrcp.pop %v2410
  %v2433 = vmul.f32 %v2410, %v2432
  %v2434 = vsub.f32 1.0, %v2433
  %v2435 = vmul.f32 %v2432, %v2434
  %v2436 = vadd.f32 %v2432, %v2435
  %vm2437 = vweird.f32 %v2410
  %vm2438 = vweird.f32 %v2432
  %vm2439 = vmor %vm2437, %vm2438
  %v2440 = vsel %vm2439, %v2432, %v2436
  %v2441 = vand.u32 2147483647, %v2410
  %vm2442 = vcmp.eq.f32.partialorder %v2441, 8.507059e+37
  %v2443 = vand.u32 %v2410, 2147483648
  %v2444 = vor.u32 1.1754944e-38, %v2443
  %v2445 = vsel %vm2442, %v2444, %v2440
  %v2446 = vmul.f32 %v2393, %v2445
  %v2447 = vrcp.pop %v2413
  %v2448 = vmul.f32 %v2413, %v2447
  %v2449 = vsub.f32 1.0, %v2448
  %v2450 = vmul.f32 %v2447, %v2449
  %v2451 = vadd.f32 %v2447, %v2450
  %vm2452 = vweird.f32 %v2413
  %vm2453 = vweird.f32 %v2447
  %vm2454 = vmor %vm2452, %vm2453
  %v2455 = vsel %vm2454, %v2447, %v2451
  %v2456 = vand.u32 2147483647, %v2413
  %vm2457 = vcmp.eq.f32.partialorder %v2456, 8.507059e+37
  %v2458 = vand.u32 %v2413, 2147483648
  %v2459 = vor.u32 1.1754944e-38, %v2458
  %v2460 = vsel %vm2457, %v2459, %v2455
  %v2461 = vmul.f32 %v2395, %v2460
  %v2462 = vrcp.pop %v2416
  %v2463 = vmul.f32 %v2416, %v2462
  %v2464 = vsub.f32 1.0, %v2463
  %v2465 = vmul.f32 %v2462, %v2464
  %v2466 = vadd.f32 %v2462, %v2465
  %vm2467 = vweird.f32 %v2416
  %vm2468 = vweird.f32 %v2462
  %vm2469 = vmor %vm2467, %vm2468
  %v2470 = vsel %vm2469, %v2462, %v2466
  %v2471 = vand.u32 2147483647, %v2416
  %vm2472 = vcmp.eq.f32.partialorder %v2471, 8.507059e+37
  %v2473 = vand.u32 %v2416, 2147483648
  %v2474 = vor.u32 1.1754944e-38, %v2473
  %v2475 = vsel %vm2472, %v2474, %v2470
  %v2476 = vmul.f32 %v2397, %v2475
  %v2477 = vrcp.pop %v2419
  %v2478 = vmul.f32 %v2419, %v2477
  %v2479 = vsub.f32 1.0, %v2478
  %v2480 = vmul.f32 %v2477, %v2479
  %v2481 = vadd.f32 %v2477, %v2480
  %vm2482 = vweird.f32 %v2419
  %vm2483 = vweird.f32 %v2477
  %vm2484 = vmor %vm2482, %vm2483
  %v2485 = vsel %vm2484, %v2477, %v2481
  %v2486 = vand.u32 2147483647, %v2419
  %vm2487 = vcmp.eq.f32.partialorder %v2486, 8.507059e+37
  %v2488 = vand.u32 %v2419, 2147483648
  %v2489 = vor.u32 1.1754944e-38, %v2488
  %v2490 = vsel %vm2487, %v2489, %v2485
  %v2491 = vmul.f32 %v2399, %v2490
  %v2492 = vrcp.pop %v2422
  %v2493 = vmul.f32 %v2422, %v2492
  %v2494 = vsub.f32 1.0, %v2493
  %v2495 = vmul.f32 %v2492, %v2494
  %v2496 = vadd.f32 %v2492, %v2495
  %vm2497 = vweird.f32 %v2422
  %vm2498 = vweird.f32 %v2492
  %vm2499 = vmor %vm2497, %vm2498
  %v2500 = vsel %vm2499, %v2492, %v2496
  %v2501 = vand.u32 2147483647, %v2422
  %vm2502 = vcmp.eq.f32.partialorder %v2501, 8.507059e+37
  %v2503 = vand.u32 %v2422, 2147483648
  %v2504 = vor.u32 1.1754944e-38, %v2503
  %v2505 = vsel %vm2502, %v2504, %v2500
  %v2506 = vmul.f32 %v2401, %v2505
  %v2507 = vrcp.pop %v2425
  %v2508 = vmul.f32 %v2425, %v2507
  %v2509 = vsub.f32 1.0, %v2508
  %v2510 = vmul.f32 %v2507, %v2509
  %v2511 = vadd.f32 %v2507, %v2510
  %vm2512 = vweird.f32 %v2425
  %vm2513 = vweird.f32 %v2507
  %vm2514 = vmor %vm2512, %vm2513
  %v2515 = vsel %vm2514, %v2507, %v2511
  %v2516 = vand.u32 2147483647, %v2425
  %vm2517 = vcmp.eq.f32.partialorder %v2516, 8.507059e+37
  %v2518 = vand.u32 %v2425, 2147483648
  %v2519 = vor.u32 1.1754944e-38, %v2518
  %v2520 = vsel %vm2517, %v2519, %v2515
  %v2521 = vmul.f32 %v2403, %v2520
  %v2522 = vrcp.pop %v2428
  %v2523 = vmul.f32 %v2428, %v2522
  %v2524 = vsub.f32 1.0, %v2523
  %v2525 = vmul.f32 %v2522, %v2524
  %v2526 = vadd.f32 %v2522, %v2525
  %vm2527 = vweird.f32 %v2428
  %vm2528 = vweird.f32 %v2522
  %vm2529 = vmor %vm2527, %vm2528
  %v2530 = vsel %vm2529, %v2522, %v2526
  %v2531 = vand.u32 2147483647, %v2428
  %vm2532 = vcmp.eq.f32.partialorder %v2531, 8.507059e+37
  %v2533 = vand.u32 %v2428, 2147483648
  %v2534 = vor.u32 1.1754944e-38, %v2533
  %v2535 = vsel %vm2532, %v2534, %v2530
  %v2536 = vmul.f32 %v2405, %v2535
  %v2537 = vrcp.pop %v2431
  %v2538 = vmul.f32 %v2431, %v2537
  %v2539 = vsub.f32 1.0, %v2538
  %v2540 = vmul.f32 %v2537, %v2539
  %v2541 = vadd.f32 %v2537, %v2540
  %vm2542 = vweird.f32 %v2431
  %vm2543 = vweird.f32 %v2537
  %vm2544 = vmor %vm2542, %vm2543
  %v2545 = vsel %vm2544, %v2537, %v2541
  %v2546 = vand.u32 2147483647, %v2431
  %vm2547 = vcmp.eq.f32.partialorder %v2546, 8.507059e+37
  %v2548 = vand.u32 %v2431, 2147483648
  %v2549 = vor.u32 1.1754944e-38, %v2548
  %v2550 = vsel %vm2547, %v2549, %v2545
  %v2551 = vmul.f32 %v2407, %v2550
  %v2553 = vsel %vm580, %v2446, 0
  %2555 = vmatpush.msra.mxu0 0.0
  %2556 = vmatpush.msra.mxu0 0.0
  %2557 = vmatpush.msra.mxu0 0.0
  %2558 = vmatpush.msra.mxu0 0.0
  %2559 = vmatpush.msra.mxu0 0.0
  %2560 = vmatpush.msra.mxu0 0.0
  %2561 = vmatpush.msra.mxu0 0.0
  %2562 = vmatpush.msra.mxu0 0.0
  %2563 = vmatpush.msra.mxu0 0.0
  %2564 = vmatpush.msra.mxu0 0.0
  %2565 = vmatpush.msra.mxu0 0.0
  %2566 = vmatpush.msra.mxu0 0.0
  %2567 = vmatpush.msra.mxu0 0.0
  %2568 = vmatpush.msra.mxu0 0.0
  %2569 = vmatpush.msra.mxu0 0.0
  %2570 = vmatpush.msra.mxu0 %v1497
  %2571 = vmatmul.f32.gmra.mxu0 %v2553
  %v2572 = vpop.f32.mrf.mxu0
  %v2573 = vadd.f32 0.0, %v2572
  %2574 = vdwg.mxu0
  %v2576 = vsel %vm580, %v2461, 0
  %2578 = vmatpush.msra.mxu0 0.0
  %2579 = vmatpush.msra.mxu0 0.0
  %2580 = vmatpush.msra.mxu0 0.0
  %2581 = vmatpush.msra.mxu0 0.0
  %2582 = vmatpush.msra.mxu0 0.0
  %2583 = vmatpush.msra.mxu0 0.0
  %2584 = vmatpush.msra.mxu0 0.0
  %2585 = vmatpush.msra.mxu0 0.0
  %2586 = vmatpush.msra.mxu0 0.0
  %2587 = vmatpush.msra.mxu0 0.0
  %2588 = vmatpush.msra.mxu0 0.0
  %2589 = vmatpush.msra.mxu0 0.0
  %2590 = vmatpush.msra.mxu0 0.0
  %2591 = vmatpush.msra.mxu0 0.0
  %2592 = vmatpush.msra.mxu0 0.0
  %2593 = vmatpush.msra.mxu0 %v1498
  %2594 = vmatmul.f32.gmra.mxu0 %v2576
  %v2595 = vpop.f32.mrf.mxu0
  %v2596 = vadd.f32 0.0, %v2595
  %2597 = vdwg.mxu0
  %v2599 = vsel %vm580, %v2476, 0
  %2601 = vmatpush.msra.mxu0 0.0
  %2602 = vmatpush.msra.mxu0 0.0
  %2603 = vmatpush.msra.mxu0 0.0
  %2604 = vmatpush.msra.mxu0 0.0
  %2605 = vmatpush.msra.mxu0 0.0
  %2606 = vmatpush.msra.mxu0 0.0
  %2607 = vmatpush.msra.mxu0 0.0
  %2608 = vmatpush.msra.mxu0 0.0
  %2609 = vmatpush.msra.mxu0 0.0
  %2610 = vmatpush.msra.mxu0 0.0
  %2611 = vmatpush.msra.mxu0 0.0
  %2612 = vmatpush.msra.mxu0 0.0
  %2613 = vmatpush.msra.mxu0 0.0
  %2614 = vmatpush.msra.mxu0 0.0
  %2615 = vmatpush.msra.mxu0 0.0
  %2616 = vmatpush.msra.mxu0 %v1499
  %2617 = vmatmul.f32.gmra.mxu0 %v2599
  %v2618 = vpop.f32.mrf.mxu0
  %v2619 = vadd.f32 0.0, %v2618
  %2620 = vdwg.mxu0
  %v2622 = vsel %vm580, %v2491, 0
  %2624 = vmatpush.msra.mxu0 0.0
  %2625 = vmatpush.msra.mxu0 0.0
  %2626 = vmatpush.msra.mxu0 0.0
  %2627 = vmatpush.msra.mxu0 0.0
  %2628 = vmatpush.msra.mxu0 0.0
  %2629 = vmatpush.msra.mxu0 0.0
  %2630 = vmatpush.msra.mxu0 0.0
  %2631 = vmatpush.msra.mxu0 0.0
  %2632 = vmatpush.msra.mxu0 0.0
  %2633 = vmatpush.msra.mxu0 0.0
  %2634 = vmatpush.msra.mxu0 0.0
  %2635 = vmatpush.msra.mxu0 0.0
  %2636 = vmatpush.msra.mxu0 0.0
  %2637 = vmatpush.msra.mxu0 0.0
  %2638 = vmatpush.msra.mxu0 0.0
  %2639 = vmatpush.msra.mxu0 %v1500
  %2640 = vmatmul.f32.gmra.mxu0 %v2622
  %v2641 = vpop.f32.mrf.mxu0
  %v2642 = vadd.f32 0.0, %v2641
  %2643 = vdwg.mxu0
  %v2645 = vsel %vm580, %v2506, 0
  %2647 = vmatpush.msra.mxu0 0.0
  %2648 = vmatpush.msra.mxu0 0.0
  %2649 = vmatpush.msra.mxu0 0.0
  %2650 = vmatpush.msra.mxu0 0.0
  %2651 = vmatpush.msra.mxu0 0.0
  %2652 = vmatpush.msra.mxu0 0.0
  %2653 = vmatpush.msra.mxu0 0.0
  %2654 = vmatpush.msra.mxu0 0.0
  %2655 = vmatpush.msra.mxu0 0.0
  %2656 = vmatpush.msra.mxu0 0.0
  %2657 = vmatpush.msra.mxu0 0.0
  %2658 = vmatpush.msra.mxu0 0.0
  %2659 = vmatpush.msra.mxu0 0.0
  %2660 = vmatpush.msra.mxu0 0.0
  %2661 = vmatpush.msra.mxu0 0.0
  %2662 = vmatpush.msra.mxu0 %v1501
  %2663 = vmatmul.f32.gmra.mxu0 %v2645
  %v2664 = vpop.f32.mrf.mxu0
  %v2665 = vadd.f32 0.0, %v2664
  %2666 = vdwg.mxu0
  %v2668 = vsel %vm580, %v2521, 0
  %2670 = vmatpush.msra.mxu0 0.0
  %2671 = vmatpush.msra.mxu0 0.0
  %2672 = vmatpush.msra.mxu0 0.0
  %2673 = vmatpush.msra.mxu0 0.0
  %2674 = vmatpush.msra.mxu0 0.0
  %2675 = vmatpush.msra.mxu0 0.0
  %2676 = vmatpush.msra.mxu0 0.0
  %2677 = vmatpush.msra.mxu0 0.0
  %2678 = vmatpush.msra.mxu0 0.0
  %2679 = vmatpush.msra.mxu0 0.0
  %2680 = vmatpush.msra.mxu0 0.0
  %2681 = vmatpush.msra.mxu0 0.0
  %2682 = vmatpush.msra.mxu0 0.0
  %2683 = vmatpush.msra.mxu0 0.0
  %2684 = vmatpush.msra.mxu0 0.0
  %2685 = vmatpush.msra.mxu0 %v1502
  %2686 = vmatmul.f32.gmra.mxu0 %v2668
  %v2687 = vpop.f32.mrf.mxu0
  %v2688 = vadd.f32 0.0, %v2687
  %2689 = vdwg.mxu0
  %v2691 = vsel %vm580, %v2536, 0
  %2693 = vmatpush.msra.mxu0 0.0
  %2694 = vmatpush.msra.mxu0 0.0
  %2695 = vmatpush.msra.mxu0 0.0
  %2696 = vmatpush.msra.mxu0 0.0
  %2697 = vmatpush.msra.mxu0 0.0
  %2698 = vmatpush.msra.mxu0 0.0
  %2699 = vmatpush.msra.mxu0 0.0
  %2700 = vmatpush.msra.mxu0 0.0
  %2701 = vmatpush.msra.mxu0 0.0
  %2702 = vmatpush.msra.mxu0 0.0
  %2703 = vmatpush.msra.mxu0 0.0
  %2704 = vmatpush.msra.mxu0 0.0
  %2705 = vmatpush.msra.mxu0 0.0
  %2706 = vmatpush.msra.mxu0 0.0
  %2707 = vmatpush.msra.mxu0 0.0
  %2708 = vmatpush.msra.mxu0 %v1503
  %2709 = vmatmul.f32.gmra.mxu0 %v2691
  %v2710 = vpop.f32.mrf.mxu0
  %v2711 = vadd.f32 0.0, %v2710
  %2712 = vdwg.mxu0
  %v2714 = vsel %vm580, %v2551, 0
  %2716 = vmatpush.msra.mxu0 0.0
  %2717 = vmatpush.msra.mxu0 0.0
  %2718 = vmatpush.msra.mxu0 0.0
  %2719 = vmatpush.msra.mxu0 0.0
  %2720 = vmatpush.msra.mxu0 0.0
  %2721 = vmatpush.msra.mxu0 0.0
  %2722 = vmatpush.msra.mxu0 0.0
  %2723 = vmatpush.msra.mxu0 0.0
  %2724 = vmatpush.msra.mxu0 0.0
  %2725 = vmatpush.msra.mxu0 0.0
  %2726 = vmatpush.msra.mxu0 0.0
  %2727 = vmatpush.msra.mxu0 0.0
  %2728 = vmatpush.msra.mxu0 0.0
  %2729 = vmatpush.msra.mxu0 0.0
  %2730 = vmatpush.msra.mxu0 0.0
  %2731 = vmatpush.msra.mxu0 %v1504
  %2732 = vmatmul.f32.gmra.mxu0 %v2714
  %v2733 = vpop.f32.mrf.mxu0
  %v2734 = vadd.f32 0.0, %v2733
  %2735 = vdwg.mxu0
  %2736 = vrot.lane.b32.xlu0 %v2151, 80
  %v2737 = vpop.permute.xlu0 %2736
  %v2747 = vrot.slane %v2596, 7
  %v2748 = vsel %vm777, %v2747, %v2573
  %v2749 = vrot.slane %v2619, 6
  %v2750 = vsel %vm780, %v2749, %v2748
  %v2751 = vrot.slane %v2642, 5
  %v2752 = vsel %vm783, %v2751, %v2750
  %v2753 = vrot.slane %v2665, 4
  %v2754 = vsel %vm786, %v2753, %v2752
  %v2755 = vrot.slane %v2688, 3
  %v2756 = vsel %vm789, %v2755, %v2754
  %v2757 = vrot.slane %v2711, 2
  %v2758 = vsel %vm792, %v2757, %v2756
  %v2759 = vrot.slane %v2734, 1
  %v2760 = vsel %vm795, %v2759, %v2758
  %2761 = vrot.lane.b32.xlu0 %v2760, 16
  %v2762 = vpop.permute.xlu0 %2761
  %v2764 = vsel %vm67, %v2737, %v2762
  %v2765 = vld [vmem:[%s2] sm:$0xff]
  %v2766 = vld [vmem:[%s3] sm:$0xff]
  %2768 = vrot.lane.b32.xlu0 %v2765, 32
  %v2769 = vpop.permute.xlu0 %2768
  %2772 = vrot.lane.b32.xlu0 %v2764, 64
  %v2773 = vpop.permute.xlu0 %2772
  %2776 = vrot.lane.b32.xlu0 %v2766, 96
  %v2777 = vpop.permute.xlu0 %2776
  %v2779 = vsel %vm91, %v1496, %v2769
  %vm2780 = vcmask 523264
  %v2781 = vsel %vm2780, %v2779, %v2773
  %vm2782 = vcmask 785408
  %v2783 = vsel %vm2782, %v2781, %v2777
  %v2784 = vld [vmem:[%s7] sm:$0xff]
  %v2785 = vld [vmem:[%s7 + $0x8] sm:$0xff]
  %v2786 = vld [vmem:[%s7 + $0x10] sm:$0xff]
  %v2787 = vld [vmem:[%s7 + $0x18] sm:$0xff]
  %v2788 = vld [vmem:[%s7 + $0x20] sm:$0xff]
  %v2789 = vld [vmem:[%s7 + $0x28] sm:$0xff]
  %v2790 = vld [vmem:[%s7 + $0x30] sm:$0xff]
  %v2791 = vld [vmem:[%s7 + $0x38] sm:$0xff]
  %v2792 = vld [vmem:[%s7 + $0x40] sm:$0xff]
  %v2793 = vld [vmem:[%s7 + $0x48] sm:$0xff]
  %v2794 = vld [vmem:[%s7 + $0x50] sm:$0xff]
  %v2795 = vld [vmem:[%s7 + $0x58] sm:$0xff]
  %v2796 = vld [vmem:[%s7 + $0x60] sm:$0xff]
  %v2797 = vld [vmem:[%s7 + $0x68] sm:$0xff]
  %v2798 = vld [vmem:[%s7 + $0x70] sm:$0xff]
  %v2799 = vld [vmem:[%s7 + $0x78] sm:$0xff]
  %v2800 = vld [vmem:[%s8] sm:$0x1]
  %v2802 = vperm.slane %v2800, 0
  %2804 = vmatpush.msra.mxu0 %v2799
  %2805 = vmatpush.msra.mxu0 %v2798
  %2806 = vmatpush.msra.mxu0 %v2797
  %2807 = vmatpush.msra.mxu0 %v2796
  %2808 = vmatpush.msra.mxu0 %v2795
  %2809 = vmatpush.msra.mxu0 %v2794
  %2810 = vmatpush.msra.mxu0 %v2793
  %2811 = vmatpush.msra.mxu0 %v2792
  %2812 = vmatpush.msra.mxu0 %v2791
  %2813 = vmatpush.msra.mxu0 %v2790
  %2814 = vmatpush.msra.mxu0 %v2789
  %2815 = vmatpush.msra.mxu0 %v2788
  %2816 = vmatpush.msra.mxu0 %v2787
  %2817 = vmatpush.msra.mxu0 %v2786
  %2818 = vmatpush.msra.mxu0 %v2785
  %2819 = vmatpush.msra.mxu0 %v2784
  %2820 = vmatmul.f32.gmra.mxu0 %v2783
  %v2821 = vpop.f32.mrf.mxu0
  %v2822 = vadd.f32 %v2802, %v2821
  %2823 = vdwg.mxu0
  %v2824 = vmax.f32 %v2822, 0.0
  %v2825 = vld [vmem:[%s9] sm:$0xff]
  %v2826 = vld [vmem:[%s9 + $0x8] sm:$0xff]
  %v2827 = vld [vmem:[%s10] sm:$0x1]
  %v2829 = vperm.slane %v2827, 0
  %v2832 = vsel %vm67, %v2824, 0
  %2834 = vmatpush.msra.mxu0 0.0
  %2835 = vmatpush.msra.mxu0 0.0
  %2836 = vmatpush.msra.mxu0 0.0
  %2837 = vmatpush.msra.mxu0 0.0
  %2838 = vmatpush.msra.mxu0 0.0
  %2839 = vmatpush.msra.mxu0 0.0
  %2840 = vmatpush.msra.mxu0 0.0
  %2841 = vmatpush.msra.mxu0 0.0
  %2842 = vmatpush.msra.mxu0 0.0
  %2843 = vmatpush.msra.mxu0 0.0
  %2844 = vmatpush.msra.mxu0 0.0
  %2845 = vmatpush.msra.mxu0 0.0
  %2846 = vmatpush.msra.mxu0 0.0
  %2847 = vmatpush.msra.mxu0 0.0
  %2848 = vmatpush.msra.mxu0 %v2826
  %2849 = vmatpush.msra.mxu0 %v2825
  %2850 = vmatmul.f32.gmra.mxu0 %v2832
  %v2851 = vpop.f32.mrf.mxu0
  %v2852 = vadd.f32 %v2829, %v2851
  %2853 = vdwg.mxu0
  %v2854 = vmax.f32 %v2852, 0.0
  %v2855 = vld [vmem:[%s11] sm:$0xff]
  %v2856 = vld [vmem:[%s11 + $0x8] sm:$0xff]
  %v2857 = vld [vmem:[%s11 + $0x10] sm:$0xff]
  %v2858 = vld [vmem:[%s11 + $0x18] sm:$0xff]
  %v2859 = vld [vmem:[%s11 + $0x20] sm:$0xff]
  %v2860 = vld [vmem:[%s11 + $0x28] sm:$0xff]
  %v2861 = vld [vmem:[%s11 + $0x30] sm:$0xff]
  %v2862 = vld [vmem:[%s11 + $0x38] sm:$0xff]
  %v2863 = vld [vmem:[%s12] sm:$0x1]
  %v2865 = vperm.slane %v2863, 0
  %v2868 = vsel %vm2780, %v2854, 0
  %2870 = vmatpush.msra.mxu0 0.0
  %2871 = vmatpush.msra.mxu0 0.0
  %2872 = vmatpush.msra.mxu0 0.0
  %2873 = vmatpush.msra.mxu0 0.0
  %2874 = vmatpush.msra.mxu0 0.0
  %2875 = vmatpush.msra.mxu0 0.0
  %2876 = vmatpush.msra.mxu0 0.0
  %2877 = vmatpush.msra.mxu0 0.0
  %2878 = vmatpush.msra.mxu0 %v2862
  %2879 = vmatpush.msra.mxu0 %v2861
  %2880 = vmatpush.msra.mxu0 %v2860
  %2881 = vmatpush.msra.mxu0 %v2859
  %2882 = vmatpush.msra.mxu0 %v2858
  %2883 = vmatpush.msra.mxu0 %v2857
  %2884 = vmatpush.msra.mxu0 %v2856
  %2885 = vmatpush.msra.mxu0 %v2855
  %2886 = vmatmul.f32.gmra.mxu0 %v2868
  %v2887 = vpop.f32.mrf.mxu0
  %v2888 = vadd.f32 %v2865, %v2887
  %2889 = vdwg.mxu0
  %v2890 = vmax.f32 %v2888, 0.0
  %v2891 = vld [vmem:[%s13] sm:$0xff]
  %v2892 = vld [vmem:[%s13 + $0x8] sm:$0xff]
  %v2893 = vld [vmem:[%s13 + $0x10] sm:$0xff]
  %v2894 = vld [vmem:[%s13 + $0x18] sm:$0xff]
  %v2895 = vld [vmem:[#allocation2] sm:$0x1]
  %v2897 = vperm.slane %v2895, 0
  %v2900 = vsel %vm91, %v2890, 0
  %2902 = vmatpush.msra.mxu0 0.0
  %2903 = vmatpush.msra.mxu0 0.0
  %2904 = vmatpush.msra.mxu0 0.0
  %2905 = vmatpush.msra.mxu0 0.0
  %2906 = vmatpush.msra.mxu0 0.0
  %2907 = vmatpush.msra.mxu0 0.0
  %2908 = vmatpush.msra.mxu0 0.0
  %2909 = vmatpush.msra.mxu0 0.0
  %2910 = vmatpush.msra.mxu0 0.0
  %2911 = vmatpush.msra.mxu0 0.0
  %2912 = vmatpush.msra.mxu0 0.0
  %2913 = vmatpush.msra.mxu0 0.0
  %2914 = vmatpush.msra.mxu0 %v2894
  %2915 = vmatpush.msra.mxu0 %v2893
  %2916 = vmatpush.msra.mxu0 %v2892
  %2917 = vmatpush.msra.mxu0 %v2891
  %2918 = vmatmul.f32.gmra.mxu0 %v2900
  %v2919 = vpop.f32.mrf.mxu0
  %v2920 = vadd.f32 %v2897, %v2919
  %2921 = vdwg.mxu0
  %vm2922 = vcmask 7168
  %2923 = vst.msk [vmem:[%s15] sm:$0xff] %vm2922, %v2920
  // Predicated region
  $region62: #{my_new_gcn_forward.5} parent=0 // pred_check
    _
  $region63: #{my_new_gcn_forward.5} parent=0 // pred_check_branch
    %2925 = sbr.rel (0) target = $region65
  $region64: #{my_new_gcn_forward.5} parent=0 // pred_region
    _
  $region65: #{my_new_gcn_forward.5} parent=0 // pred_fallthru
    _
  // Predicated region
  $region66: #{my_new_gcn_forward.5} parent=0 // pred_check
    _
  $region67: #{my_new_gcn_forward.5} parent=0 // pred_check_branch
    %2927 = sbr.rel (0) target = $region69
  $region68: #{my_new_gcn_forward.5} parent=0 // pred_region
    _
  $region69: #{my_new_gcn_forward.5} parent=0 // pred_fallthru
    _

</llo_original>
